<compile_context>
chip_gen: v7x
topology: tpu7x:2x2x1
jax: 0.10.0
libtpu: 0.0.40
codegen_flags: <defaults>
</compile_context>

<pallas_src>
import jax
import jax.numpy as jnp
from jax import lax
from jax.experimental import pallas as pl
from jax.experimental.pallas import tpu as pltpu


def _round_up(x, m):
    return ((x + m - 1) // m) * m


def _sigmoid_via_tanh(x):
    # sigmoid(x) == 0.5*tanh(0.5*x) + 0.5: one EUP push + cheap VALU mul/add.
    return 0.5 * jnp.tanh(0.5 * x) + 0.5


# ----------------------------------------------------------------------------
# Fused Pallas kernel: num_layers x LSTM + final Linear, all in VMEM.
# ----------------------------------------------------------------------------
def make_fused_lstm_fc_kernel(num_layers, T, TB, E, HP, OP, unroll):
    """Ref order: x, (w_ih, w_hh, b) * num_layers, fc_w, fc_b, out, gx, hseq.

    Shapes (per batch tile):
      x:      (T*TB, E)    bf16, time-major rows [t*TB + j]
      w_ih:   (E|HP, 4HP)  bf16, pre-transposed, gate-wise zero-padded H -> HP
      w_hh:   (HP, 4HP)    bf16
      b:      (1, 4HP)     f32  (b_ih + b_hh)
      fc_w:   (HP, OP)     bf16
      fc_b:   (1, OP)      f32
      out:    (TB, OP)     f32, lane-dense
      gx:     (T*TB, 4HP)  f32 VMEM scratch: hoisted input projection
      hseq:   (T*TB, HP)   f32 VMEM scratch: inter-layer hidden sequence
    Gate order (PyTorch): i, f, g, o.
    """

    def kernel(*refs):
        x_ref = refs[0]
        layer_refs = refs[1:1 + 3 * num_layers]
        fc_w_ref = refs[1 + 3 * num_layers]
        fc_b_ref = refs[2 + 3 * num_layers]
        out_ref = refs[3 + 3 * num_layers]
        gx_ref = refs[4 + 3 * num_layers]
        hseq_ref = refs[5 + 3 * num_layers]

        h_final = None
        for layer in range(num_layers):
            w_ih_ref = layer_refs[3 * layer + 0]
            w_hh_ref = layer_refs[3 * layer + 1]
            b_ref = layer_refs[3 * layer + 2]

            # ---- hoisted input projection: one big bf16 MXU matmul over all T*TB rows.
            if layer == 0:
                x_flat = x_ref[...]                                    # bf16 (T*TB, E)
            else:
                x_flat = hseq_ref[...].astype(jnp.bfloat16)            # (T*TB, HP)
            gx_ref[...] = (jnp.dot(x_flat, w_ih_ref[...],
                                   preferred_element_type=jnp.float32)
                           + b_ref[...])                               # f32 (T*TB, 4HP)

            w_hh = w_hh_ref[...]                                       # bf16, reused all steps
            store_seq = layer < num_layers - 1                         # last layer: carry only

            def step(t, carry, w_hh=w_hh, store_seq=store_seq):
                h, c = carry
                row0 = pl.multiple_of(t * TB, TB)
                gates = gx_ref[pl.ds(row0, TB), :] + jnp.dot(
                    h.astype(jnp.bfloat16), w_hh,
                    preferred_element_type=jnp.float32)                # f32 (TB, 4HP)
                # HP is a multiple of 128 -> each gate slice is lane-aligned.
                i = _sigmoid_via_tanh(gates[:, 0 * HP:1 * HP])
                f = _sigmoid_via_tanh(gates[:, 1 * HP:2 * HP])
                g = jnp.tanh(gates[:, 2 * HP:3 * HP])
                o = _sigmoid_via_tanh(gates[:, 3 * HP:4 * HP])
                c_new = f * c + i * g
                h_new = o * jnp.tanh(c_new)
                if store_seq:
                    hseq_ref[pl.ds(row0, TB), :] = h_new
                return (h_new, c_new)

            h0 = jnp.zeros((TB, HP), jnp.float32)
            c0 = jnp.zeros((TB, HP), jnp.float32)
            h_final, _ = lax.fori_loop(0, T, step, (h0, c0), unroll=unroll)

        # ---- final FC (Dropout(0.5) -> identity in eval mode), lane-dense store.
        out_ref[...] = (jnp.dot(h_final.astype(jnp.bfloat16), fc_w_ref[...],
                                preferred_element_type=jnp.float32)
                        + fc_b_ref[...])

    return kernel


def _vmem_limit_bytes(T, TB, E, HP, OP, num_layers):
    """Size the VMEM budget from the actual per-tile footprint (+headroom)."""
    f32, bf16 = 4, 2
    total = 2 * T * TB * E * bf16                    # x block (double-buffered)
    total += 2 * TB * OP * f32                       # out block (double-buffered)
    w = 0
    d_in = E
    for _ in range(num_layers):
        w += (d_in * 4 * HP + HP * 4 * HP) * bf16 + 4 * HP * f32
        d_in = HP
    w += HP * OP * bf16 + OP * f32
    total += 2 * w                                   # conservative: weights 2x buffered
    total += T * TB * 4 * HP * f32                   # gx scratch
    total += (T * TB if num_layers > 1 else 8) * HP * f32   # hseq scratch
    total = int(total * 1.25) + (2 << 20)            # headroom
    return min(max(total, 8 << 20), 128 << 20)


def fused_lstm_fc(x_tiles, layer_params, fc_w, fc_b, *, T, TB):
    """x_tiles: (n_bt, T*TB, E) bf16. Returns (n_bt*TB, OP) f32 logits."""
    n_bt, _, E = x_tiles.shape
    HP = layer_params[0][1].shape[0]
    OP = fc_w.shape[1]
    num_layers = len(layer_params)
    BP = n_bt * TB

    unroll = T if T <= 32 else 8
    kernel = make_fused_lstm_fc_kernel(num_layers, T, TB, E, HP, OP, unroll)

    inputs = [x_tiles]
    in_specs = [pl.BlockSpec((None, T * TB, E), lambda b: (b, 0, 0))]
    for (w_ih, w_hh, b) in layer_params:
        d_in = w_ih.shape[0]
        inputs += [w_ih, w_hh, b]
        in_specs += [
            pl.BlockSpec((d_in, 4 * HP), lambda b: (0, 0)),
            pl.BlockSpec((HP, 4 * HP), lambda b: (0, 0)),
            pl.BlockSpec((1, 4 * HP), lambda b: (0, 0)),
        ]
    inputs += [fc_w, fc_b]
    in_specs += [
        pl.BlockSpec((HP, OP), lambda b: (0, 0)),
        pl.BlockSpec((1, OP), lambda b: (0, 0)),
    ]

    hseq_rows = T * TB if num_layers > 1 else 8
    return pl.pallas_call(
        kernel,
        out_shape=jax.ShapeDtypeStruct((BP, OP), jnp.float32),
        grid=(n_bt,),
        in_specs=in_specs,
        out_specs=pl.BlockSpec((TB, OP), lambda b: (b, 0)),
        scratch_shapes=[
            pltpu.VMEM((T * TB, 4 * HP), jnp.float32),   # hoisted gates_x stream
            pltpu.VMEM((hseq_rows, HP), jnp.float32),    # inter-layer hidden sequence
        ],
        compiler_params=pltpu.CompilerParams(
            dimension_semantics=("parallel",),
            vmem_limit_bytes=_vmem_limit_bytes(T, TB, E, HP, OP, num_layers),
        ),
    )(*inputs)


# ----------------------------------------------------------------------------
# Forward wrapper: embedding gather + padding / layout glue around the kernel.
# ----------------------------------------------------------------------------
def _pad_gate_cols(w, H, HP):
    """Pad the 4H gate axis [i|f|g|o] gate-wise from H to HP with zeros."""
    lead = w.shape[:-1]
    w4 = w.reshape(lead + (4, H))
    w4 = jnp.pad(w4, [(0, 0)] * len(lead) + [(0, 0), (0, HP - H)])
    return w4.reshape(lead + (4 * HP,))


@jax.jit
def lstm_model_forward(input_seq, params):
    """Forward pass matching LSTMModel.forward (eval mode).

    input_seq: (B, T) int32 token ids.  Returns (B, output_dim) f32 logits.
    """
    B, T = input_seq.shape
    emb = params["embedding"]
    E = emb.shape[1]
    H = params["lstm_layers"][0][1].shape[0]       # w_hh_t is (H, 4H)
    O = params["fc_w_t"].shape[1]

    HP = _round_up(H, 128)                         # lane-aligned gate slices
    OP = _round_up(O, 128)                         # lane-dense FC output
    BP = _round_up(max(B, 8), 8)                   # f32 sublane multiple
    if BP > 128:                                   # batch-tile grid for big batches
        BP = _round_up(BP, 128)
        TB = 128
    else:
        TB = BP
    n_bt = BP // TB

    # Embedding lookup is plain-JAX glue (gather has no tidy BlockSpec form);
    # dropout(0.5) on embeddings is identity in eval mode.
    embeds = jnp.take(emb, input_seq, axis=0).astype(jnp.float32)     # (B, T, E)
    embeds = jnp.pad(embeds, ((0, BP - B), (0, 0), (0, 0)))           # (BP, T, E)
    # Per-batch-tile, time-major, pre-flattened (no in-kernel reshapes), bf16.
    x_tiles = (embeds.reshape(n_bt, TB, T, E)
               .transpose(0, 2, 1, 3)                                 # (n_bt, T, TB, E)
               .reshape(n_bt, T * TB, E)
               .astype(jnp.bfloat16))

    # Zero-pad LSTM weights gate-wise (exact: padded hidden units stay 0), bf16.
    padded_layers = []
    for li, (w_ih_t, w_hh_t, b) in enumerate(params["lstm_layers"]):
        w_ih_p = _pad_gate_cols(w_ih_t, H, HP)                        # (D_in, 4HP)
        if li > 0:                                                    # rows are prev hidden
            w_ih_p = jnp.pad(w_ih_p, ((0, HP - H), (0, 0)))           # (HP, 4HP)
        w_hh_p = _pad_gate_cols(w_hh_t, H, HP)
        w_hh_p = jnp.pad(w_hh_p, ((0, HP - H), (0, 0)))               # (HP, 4HP)
        b_p = _pad_gate_cols(b, H, HP)                                # (1, 4HP)
        padded_layers.append((w_ih_p.astype(jnp.bfloat16),
                              w_hh_p.astype(jnp.bfloat16),
                              b_p.astype(jnp.float32)))

    fc_w_p = jnp.pad(params["fc_w_t"], ((0, HP - H), (0, OP - O))).astype(jnp.bfloat16)
    fc_b_p = jnp.pad(params["fc_b"], ((0, 0), (0, OP - O))).astype(jnp.float32)

    logits_padded = fused_lstm_fc(x_tiles, padded_layers, fc_w_p, fc_b_p, T=T, TB=TB)
    return logits_padded[:B, :O]


# ----------------------------------------------------------------------------
# Deterministic parameter construction (synthetic; matches nn.Module shapes)
# ----------------------------------------------------------------------------
def init_params(key, vocab_size, embedding_dim, hidden_size, num_layers,
                output_dim, pad_idx=0):
    keys = jax.random.split(key, 4 + 4 * num_layers)
    k_iter = iter(keys)

    emb = jax.random.normal(next(k_iter), (vocab_size, embedding_dim), jnp.float32)
    emb = emb.at[pad_idx].set(0.0)

    stdv = 1.0 / jnp.sqrt(hidden_size)
    lstm_layers = []
    in_dim = embedding_dim
    for _ in range(num_layers):
        w_ih = jax.random.uniform(next(k_iter), (4 * hidden_size, in_dim),
                                  jnp.float32, -stdv, stdv)
        w_hh = jax.random.uniform(next(k_iter), (4 * hidden_size, hidden_size),
                                  jnp.float32, -stdv, stdv)
        b_ih = jax.random.uniform(next(k_iter), (4 * hidden_size,),
                                  jnp.float32, -stdv, stdv)
        b_hh = jax.random.uniform(next(k_iter), (4 * hidden_size,),
                                  jnp.float32, -stdv, stdv)
        lstm_layers.append((w_ih.T, w_hh.T, (b_ih + b_hh)[None, :]))
        in_dim = hidden_size

    fc_stdv = 1.0 / jnp.sqrt(hidden_size)
    fc_w = jax.random.uniform(next(k_iter), (output_dim, hidden_size),
                              jnp.float32, -fc_stdv, fc_stdv)
    fc_b = jax.random.uniform(next(k_iter), (output_dim,),
                              jnp.float32, -fc_stdv, fc_stdv)

    return {
        "embedding": emb,
        "lstm_layers": lstm_layers,
        "fc_w_t": fc_w.T,
        "fc_b": fc_b[None, :],
    }


# ----------------------------------------------------------------------------
# Pure-JAX reference.  matmul_dtype=bfloat16 mirrors the kernel's MXU casts.
# ----------------------------------------------------------------------------
def reference_forward(input_seq, params, matmul_dtype=jnp.float32):
    cast = lambda a: a.astype(matmul_dtype)
    embeds = jnp.take(params["embedding"], input_seq, axis=0).astype(jnp.float32)
    x = jnp.transpose(embeds, (1, 0, 2))                              # (T, B, E)
    T, B, _ = x.shape
    for (w_ih_t, w_hh_t, b) in params["lstm_layers"]:
        H = w_hh_t.shape[0]
        gx = (jnp.dot(cast(x.reshape(T * B, -1)), cast(w_ih_t),
                      preferred_element_type=jnp.float32) + b).reshape(T, B, 4 * H)
        h = jnp.zeros((B, H), jnp.float32)
        c = jnp.zeros((B, H), jnp.float32)
        outs = []
        for t in range(T):
            gates = gx[t] + jnp.dot(cast(h), cast(w_hh_t),
                                    preferred_element_type=jnp.float32)
            i = _sigmoid_via_tanh(gates[:, 0 * H:1 * H])
            f = _sigmoid_via_tanh(gates[:, 1 * H:2 * H])
            g = jnp.tanh(gates[:, 2 * H:3 * H])
            o = _sigmoid_via_tanh(gates[:, 3 * H:4 * H])
            c = f * c + i * g
            h = o * jnp.tanh(c)
            outs.append(h)
        x = jnp.stack(outs, axis=0)
    return (jnp.dot(cast(x[-1]), cast(params["fc_w_t"]),
                    preferred_element_type=jnp.float32) + params["fc_b"])


if __name__ == "__main__":
    VOCAB, EMB, HID, LAYERS, OUT = 50, 32, 32, 2, 10
    B, T = 2, 8

    key = jax.random.PRNGKey(0)
    k_par, k_ids = jax.random.split(key)
    params = init_params(k_par, VOCAB, EMB, HID, LAYERS, OUT, pad_idx=0)
    input_seq = jax.random.randint(k_ids, (B, T), 0, VOCAB, dtype=jnp.int32)

    out = lstm_model_forward(input_seq, params)
    out = jax.block_until_ready(out)
    assert out.shape == (B, OUT), out.shape

    # Tight check vs. a reference that mirrors the kernel's bf16 MXU casts.
    ref_bf16 = reference_forward(input_seq, params, matmul_dtype=jnp.bfloat16)
    assert jnp.allclose(out, ref_bf16, atol=2e-3, rtol=2e-3), (out, ref_bf16)

    # Loose check vs. the pure-f32 PyTorch-parity reference (bf16 MXU quantization).
    ref_f32 = reference_forward(input_seq, params, matmul_dtype=jnp.float32)
    assert jnp.allclose(out, ref_f32, atol=5e-2, rtol=5e-2), (out, ref_f32)

    print("KERNEL_OK")
</pallas_src>

<mosaic_0001>
module attributes {stable_mosaic.version = 11 : i64} {
  func.func @kernel(%arg0: i32, %arg1: memref<1x64x32xbf16, #tpu.memory_space<vmem>>, %arg2: memref<32x512xbf16, #tpu.memory_space<vmem>>, %arg3: memref<128x512xbf16, #tpu.memory_space<vmem>>, %arg4: memref<1x512xf32, #tpu.memory_space<vmem>>, %arg5: memref<128x512xbf16, #tpu.memory_space<vmem>>, %arg6: memref<128x512xbf16, #tpu.memory_space<vmem>>, %arg7: memref<1x512xf32, #tpu.memory_space<vmem>>, %arg8: memref<128x128xbf16, #tpu.memory_space<vmem>>, %arg9: memref<1x128xf32, #tpu.memory_space<vmem>>, %arg10: memref<8x128xf32, #tpu.memory_space<vmem>>, %arg11: memref<64x512xf32, #tpu.memory_space<vmem>>, %arg12: memref<64x128xf32, #tpu.memory_space<vmem>>) attributes {dimension_semantics = [#tpu.dimension_semantics<parallel>], iteration_bounds = array<i64: 1>, scalar_prefetch = 0 : i64, scratch_operands = 2 : i64, tpu.core_type = #tpu.core_type<tc>, window_params = [{transform_indices = @transform_0, window_bounds = array<i64: 1, 64, 32>}, {pipeline_mode = #tpu.pipeline_mode<synchronous>, transform_indices = @transform_1, window_bounds = array<i64: 32, 512>}, {pipeline_mode = #tpu.pipeline_mode<synchronous>, transform_indices = @transform_2, window_bounds = array<i64: 128, 512>}, {pipeline_mode = #tpu.pipeline_mode<synchronous>, transform_indices = @transform_3, window_bounds = array<i64: 1, 512>}, {pipeline_mode = #tpu.pipeline_mode<synchronous>, transform_indices = @transform_4, window_bounds = array<i64: 128, 512>}, {pipeline_mode = #tpu.pipeline_mode<synchronous>, transform_indices = @transform_5, window_bounds = array<i64: 128, 512>}, {pipeline_mode = #tpu.pipeline_mode<synchronous>, transform_indices = @transform_6, window_bounds = array<i64: 1, 512>}, {pipeline_mode = #tpu.pipeline_mode<synchronous>, transform_indices = @transform_7, window_bounds = array<i64: 128, 128>}, {pipeline_mode = #tpu.pipeline_mode<synchronous>, transform_indices = @transform_8, window_bounds = array<i64: 1, 128>}, {transform_indices = @transform_9, window_bounds = array<i64: 8, 128>}]} {
    %c0 = arith.constant 0 : index
    %c0_0 = arith.constant 0 : index
    %c0_1 = arith.constant 0 : index
    %0 = vector.load %arg1[%c0, %c0_0, %c0_1] : memref<1x64x32xbf16, #tpu.memory_space<vmem>>, vector<1x64x32xbf16>
    %1 = vector.shape_cast %0 : vector<1x64x32xbf16> to vector<64x32xbf16>
    %c0_2 = arith.constant 0 : index
    %c0_3 = arith.constant 0 : index
    %2 = vector.load %arg2[%c0_2, %c0_3] : memref<32x512xbf16, #tpu.memory_space<vmem>>, vector<32x512xbf16>
    %cst = arith.constant dense<0.000000e+00> : vector<64x512xf32>
    %3 = tpu.matmul %1, %2, %cst {dimension_numbers = #tpu.dot_dimension_numbers<[1], [0], [0], [1], [0, 0, 1, 1], [], []>} : vector<64x32xbf16>, vector<32x512xbf16>, vector<64x512xf32> -> vector<64x512xf32>
    %c0_4 = arith.constant 0 : index
    %c0_5 = arith.constant 0 : index
    %4 = vector.load %arg4[%c0_4, %c0_5] : memref<1x512xf32, #tpu.memory_space<vmem>>, vector<1x512xf32>
    %5 = vector.broadcast %4 : vector<1x512xf32> to vector<64x512xf32>
    %6 = arith.addf %3, %5 : vector<64x512xf32>
    %c0_6 = arith.constant 0 : index
    %c0_7 = arith.constant 0 : index
    %7 = vector.load %arg11[%c0_6, %c0_7] : memref<64x512xf32, #tpu.memory_space<vmem>>, vector<64x512xf32>
    tpu.vector_store %arg11[%c0_6, %c0_7], %6 {strides = array<i32>} : memref<64x512xf32, #tpu.memory_space<vmem>>, vector<64x512xf32>,
    %c0_8 = arith.constant 0 : index
    %c0_9 = arith.constant 0 : index
    %8 = vector.load %arg3[%c0_8, %c0_9] : memref<128x512xbf16, #tpu.memory_space<vmem>>, vector<128x512xbf16>
    %cst_10 = arith.constant 0.000000e+00 : f32
    %9 = vector.broadcast %cst_10 : f32 to vector<8x128xf32>
    %cst_11 = arith.constant 0.000000e+00 : f32
    %10 = vector.broadcast %cst_11 : f32 to vector<8x128xf32>
    %c0_i32 = arith.constant 0 : i32
    %c8_i32 = arith.constant 8 : i32
    %11 = arith.muli %c0_i32, %c8_i32 : i32
    %12 = tpu.assume_multiple %11, 8 : i32
    %13 = arith.index_cast %12 : i32 to index
    %c0_12 = arith.constant 0 : index
    %14 = vector.load %arg11[%13, %c0_12] : memref<64x512xf32, #tpu.memory_space<vmem>>, vector<8x512xf32>
    %15 = arith.truncf %9 : vector<8x128xf32> to vector<8x128xbf16>
    %cst_13 = arith.constant dense<0.000000e+00> : vector<8x512xf32>
    %16 = tpu.matmul %15, %8, %cst_13 {dimension_numbers = #tpu.dot_dimension_numbers<[1], [0], [0], [1], [0, 0, 1, 1], [], []>} : vector<8x128xbf16>, vector<128x512xbf16>, vector<8x512xf32> -> vector<8x512xf32>
    %17 = arith.addf %14, %16 : vector<8x512xf32>
    %18 = vector.extract_strided_slice %17 {offsets = [0, 0], sizes = [8, 128], strides = [1, 1]} : vector<8x512xf32> to vector<8x128xf32>
    %cst_14 = arith.constant 5.000000e-01 : f32
    %19 = vector.broadcast %cst_14 : f32 to vector<8x128xf32>
    %20 = arith.mulf %19, %18 : vector<8x128xf32>
    %21 = math.tanh %20 : vector<8x128xf32>
    %cst_15 = arith.constant 5.000000e-01 : f32
    %22 = vector.broadcast %cst_15 : f32 to vector<8x128xf32>
    %23 = arith.mulf %22, %21 : vector<8x128xf32>
    %cst_16 = arith.constant 5.000000e-01 : f32
    %24 = vector.broadcast %cst_16 : f32 to vector<8x128xf32>
    %25 = arith.addf %23, %24 : vector<8x128xf32>
    %26 = vector.extract_strided_slice %17 {offsets = [0, 128], sizes = [8, 128], strides = [1, 1]} : vector<8x512xf32> to vector<8x128xf32>
    %cst_17 = arith.constant 5.000000e-01 : f32
    %27 = vector.broadcast %cst_17 : f32 to vector<8x128xf32>
    %28 = arith.mulf %27, %26 : vector<8x128xf32>
    %29 = math.tanh %28 : vector<8x128xf32>
    %cst_18 = arith.constant 5.000000e-01 : f32
    %30 = vector.broadcast %cst_18 : f32 to vector<8x128xf32>
    %31 = arith.mulf %30, %29 : vector<8x128xf32>
    %cst_19 = arith.constant 5.000000e-01 : f32
    %32 = vector.broadcast %cst_19 : f32 to vector<8x128xf32>
    %33 = arith.addf %31, %32 : vector<8x128xf32>
    %34 = vector.extract_strided_slice %17 {offsets = [0, 256], sizes = [8, 128], strides = [1, 1]} : vector<8x512xf32> to vector<8x128xf32>
    %35 = math.tanh %34 : vector<8x128xf32>
    %36 = vector.extract_strided_slice %17 {offsets = [0, 384], sizes = [8, 128], strides = [1, 1]} : vector<8x512xf32> to vector<8x128xf32>
    %cst_20 = arith.constant 5.000000e-01 : f32
    %37 = vector.broadcast %cst_20 : f32 to vector<8x128xf32>
    %38 = arith.mulf %37, %36 : vector<8x128xf32>
    %39 = math.tanh %38 : vector<8x128xf32>
    %cst_21 = arith.constant 5.000000e-01 : f32
    %40 = vector.broadcast %cst_21 : f32 to vector<8x128xf32>
    %41 = arith.mulf %40, %39 : vector<8x128xf32>
    %cst_22 = arith.constant 5.000000e-01 : f32
    %42 = vector.broadcast %cst_22 : f32 to vector<8x128xf32>
    %43 = arith.addf %41, %42 : vector<8x128xf32>
    %44 = arith.mulf %33, %10 : vector<8x128xf32>
    %45 = arith.mulf %25, %35 : vector<8x128xf32>
    %46 = arith.addf %44, %45 : vector<8x128xf32>
    %47 = math.tanh %46 : vector<8x128xf32>
    %48 = arith.mulf %43, %47 : vector<8x128xf32>
    %49 = arith.index_cast %12 : i32 to index
    %c0_23 = arith.constant 0 : index
    %50 = vector.load %arg12[%49, %c0_23] : memref<64x128xf32, #tpu.memory_space<vmem>>, vector<8x128xf32>
    tpu.vector_store %arg12[%49, %c0_23], %48 {strides = array<i32>} : memref<64x128xf32, #tpu.memory_space<vmem>>, vector<8x128xf32>,
    %c1_i32 = arith.constant 1 : i32
    %c8_i32_24 = arith.constant 8 : i32
    %51 = arith.muli %c1_i32, %c8_i32_24 : i32
    %52 = tpu.assume_multiple %51, 8 : i32
    %53 = arith.index_cast %52 : i32 to index
    %c0_25 = arith.constant 0 : index
    %54 = vector.load %arg11[%53, %c0_25] : memref<64x512xf32, #tpu.memory_space<vmem>>, vector<8x512xf32>
    %55 = arith.truncf %48 : vector<8x128xf32> to vector<8x128xbf16>
    %cst_26 = arith.constant dense<0.000000e+00> : vector<8x512xf32>
    %56 = tpu.matmul %55, %8, %cst_26 {dimension_numbers = #tpu.dot_dimension_numbers<[1], [0], [0], [1], [0, 0, 1, 1], [], []>} : vector<8x128xbf16>, vector<128x512xbf16>, vector<8x512xf32> -> vector<8x512xf32>
    %57 = arith.addf %54, %56 : vector<8x512xf32>
    %58 = vector.extract_strided_slice %57 {offsets = [0, 0], sizes = [8, 128], strides = [1, 1]} : vector<8x512xf32> to vector<8x128xf32>
    %cst_27 = arith.constant 5.000000e-01 : f32
    %59 = vector.broadcast %cst_27 : f32 to vector<8x128xf32>
    %60 = arith.mulf %59, %58 : vector<8x128xf32>
    %61 = math.tanh %60 : vector<8x128xf32>
    %cst_28 = arith.constant 5.000000e-01 : f32
    %62 = vector.broadcast %cst_28 : f32 to vector<8x128xf32>
    %63 = arith.mulf %62, %61 : vector<8x128xf32>
    %cst_29 = arith.constant 5.000000e-01 : f32
    %64 = vector.broadcast %cst_29 : f32 to vector<8x128xf32>
    %65 = arith.addf %63, %64 : vector<8x128xf32>
    %66 = vector.extract_strided_slice %57 {offsets = [0, 128], sizes = [8, 128], strides = [1, 1]} : vector<8x512xf32> to vector<8x128xf32>
    %cst_30 = arith.constant 5.000000e-01 : f32
    %67 = vector.broadcast %cst_30 : f32 to vector<8x128xf32>
    %68 = arith.mulf %67, %66 : vector<8x128xf32>
    %69 = math.tanh %68 : vector<8x128xf32>
    %cst_31 = arith.constant 5.000000e-01 : f32
    %70 = vector.broadcast %cst_31 : f32 to vector<8x128xf32>
    %71 = arith.mulf %70, %69 : vector<8x128xf32>
    %cst_32 = arith.constant 5.000000e-01 : f32
    %72 = vector.broadcast %cst_32 : f32 to vector<8x128xf32>
    %73 = arith.addf %71, %72 : vector<8x128xf32>
    %74 = vector.extract_strided_slice %57 {offsets = [0, 256], sizes = [8, 128], strides = [1, 1]} : vector<8x512xf32> to vector<8x128xf32>
    %75 = math.tanh %74 : vector<8x128xf32>
    %76 = vector.extract_strided_slice %57 {offsets = [0, 384], sizes = [8, 128], strides = [1, 1]} : vector<8x512xf32> to vector<8x128xf32>
    %cst_33 = arith.constant 5.000000e-01 : f32
    %77 = vector.broadcast %cst_33 : f32 to vector<8x128xf32>
    %78 = arith.mulf %77, %76 : vector<8x128xf32>
    %79 = math.tanh %78 : vector<8x128xf32>
    %cst_34 = arith.constant 5.000000e-01 : f32
    %80 = vector.broadcast %cst_34 : f32 to vector<8x128xf32>
    %81 = arith.mulf %80, %79 : vector<8x128xf32>
    %cst_35 = arith.constant 5.000000e-01 : f32
    %82 = vector.broadcast %cst_35 : f32 to vector<8x128xf32>
    %83 = arith.addf %81, %82 : vector<8x128xf32>
    %84 = arith.mulf %73, %46 : vector<8x128xf32>
    %85 = arith.mulf %65, %75 : vector<8x128xf32>
    %86 = arith.addf %84, %85 : vector<8x128xf32>
    %87 = math.tanh %86 : vector<8x128xf32>
    %88 = arith.mulf %83, %87 : vector<8x128xf32>
    %89 = arith.index_cast %52 : i32 to index
    %c0_36 = arith.constant 0 : index
    %90 = vector.load %arg12[%89, %c0_36] : memref<64x128xf32, #tpu.memory_space<vmem>>, vector<8x128xf32>
    tpu.vector_store %arg12[%89, %c0_36], %88 {strides = array<i32>} : memref<64x128xf32, #tpu.memory_space<vmem>>, vector<8x128xf32>,
    %c2_i32 = arith.constant 2 : i32
    %c8_i32_37 = arith.constant 8 : i32
    %91 = arith.muli %c2_i32, %c8_i32_37 : i32
    %92 = tpu.assume_multiple %91, 8 : i32
    %93 = arith.index_cast %92 : i32 to index
    %c0_38 = arith.constant 0 : index
    %94 = vector.load %arg11[%93, %c0_38] : memref<64x512xf32, #tpu.memory_space<vmem>>, vector<8x512xf32>
    %95 = arith.truncf %88 : vector<8x128xf32> to vector<8x128xbf16>
    %cst_39 = arith.constant dense<0.000000e+00> : vector<8x512xf32>
    %96 = tpu.matmul %95, %8, %cst_39 {dimension_numbers = #tpu.dot_dimension_numbers<[1], [0], [0], [1], [0, 0, 1, 1], [], []>} : vector<8x128xbf16>, vector<128x512xbf16>, vector<8x512xf32> -> vector<8x512xf32>
    %97 = arith.addf %94, %96 : vector<8x512xf32>
    %98 = vector.extract_strided_slice %97 {offsets = [0, 0], sizes = [8, 128], strides = [1, 1]} : vector<8x512xf32> to vector<8x128xf32>
    %cst_40 = arith.constant 5.000000e-01 : f32
    %99 = vector.broadcast %cst_40 : f32 to vector<8x128xf32>
    %100 = arith.mulf %99, %98 : vector<8x128xf32>
    %101 = math.tanh %100 : vector<8x128xf32>
    %cst_41 = arith.constant 5.000000e-01 : f32
    %102 = vector.broadcast %cst_41 : f32 to vector<8x128xf32>
    %103 = arith.mulf %102, %101 : vector<8x128xf32>
    %cst_42 = arith.constant 5.000000e-01 : f32
    %104 = vector.broadcast %cst_42 : f32 to vector<8x128xf32>
    %105 = arith.addf %103, %104 : vector<8x128xf32>
    %106 = vector.extract_strided_slice %97 {offsets = [0, 128], sizes = [8, 128], strides = [1, 1]} : vector<8x512xf32> to vector<8x128xf32>
    %cst_43 = arith.constant 5.000000e-01 : f32
    %107 = vector.broadcast %cst_43 : f32 to vector<8x128xf32>
    %108 = arith.mulf %107, %106 : vector<8x128xf32>
    %109 = math.tanh %108 : vector<8x128xf32>
    %cst_44 = arith.constant 5.000000e-01 : f32
    %110 = vector.broadcast %cst_44 : f32 to vector<8x128xf32>
    %111 = arith.mulf %110, %109 : vector<8x128xf32>
    %cst_45 = arith.constant 5.000000e-01 : f32
    %112 = vector.broadcast %cst_45 : f32 to vector<8x128xf32>
    %113 = arith.addf %111, %112 : vector<8x128xf32>
    %114 = vector.extract_strided_slice %97 {offsets = [0, 256], sizes = [8, 128], strides = [1, 1]} : vector<8x512xf32> to vector<8x128xf32>
    %115 = math.tanh %114 : vector<8x128xf32>
    %116 = vector.extract_strided_slice %97 {offsets = [0, 384], sizes = [8, 128], strides = [1, 1]} : vector<8x512xf32> to vector<8x128xf32>
    %cst_46 = arith.constant 5.000000e-01 : f32
    %117 = vector.broadcast %cst_46 : f32 to vector<8x128xf32>
    %118 = arith.mulf %117, %116 : vector<8x128xf32>
    %119 = math.tanh %118 : vector<8x128xf32>
    %cst_47 = arith.constant 5.000000e-01 : f32
    %120 = vector.broadcast %cst_47 : f32 to vector<8x128xf32>
    %121 = arith.mulf %120, %119 : vector<8x128xf32>
    %cst_48 = arith.constant 5.000000e-01 : f32
    %122 = vector.broadcast %cst_48 : f32 to vector<8x128xf32>
    %123 = arith.addf %121, %122 : vector<8x128xf32>
    %124 = arith.mulf %113, %86 : vector<8x128xf32>
    %125 = arith.mulf %105, %115 : vector<8x128xf32>
    %126 = arith.addf %124, %125 : vector<8x128xf32>
    %127 = math.tanh %126 : vector<8x128xf32>
    %128 = arith.mulf %123, %127 : vector<8x128xf32>
    %129 = arith.index_cast %92 : i32 to index
    %c0_49 = arith.constant 0 : index
    %130 = vector.load %arg12[%129, %c0_49] : memref<64x128xf32, #tpu.memory_space<vmem>>, vector<8x128xf32>
    tpu.vector_store %arg12[%129, %c0_49], %128 {strides = array<i32>} : memref<64x128xf32, #tpu.memory_space<vmem>>, vector<8x128xf32>,
    %c3_i32 = arith.constant 3 : i32
    %c8_i32_50 = arith.constant 8 : i32
    %131 = arith.muli %c3_i32, %c8_i32_50 : i32
    %132 = tpu.assume_multiple %131, 8 : i32
    %133 = arith.index_cast %132 : i32 to index
    %c0_51 = arith.constant 0 : index
    %134 = vector.load %arg11[%133, %c0_51] : memref<64x512xf32, #tpu.memory_space<vmem>>, vector<8x512xf32>
    %135 = arith.truncf %128 : vector<8x128xf32> to vector<8x128xbf16>
    %cst_52 = arith.constant dense<0.000000e+00> : vector<8x512xf32>
    %136 = tpu.matmul %135, %8, %cst_52 {dimension_numbers = #tpu.dot_dimension_numbers<[1], [0], [0], [1], [0, 0, 1, 1], [], []>} : vector<8x128xbf16>, vector<128x512xbf16>, vector<8x512xf32> -> vector<8x512xf32>
    %137 = arith.addf %134, %136 : vector<8x512xf32>
    %138 = vector.extract_strided_slice %137 {offsets = [0, 0], sizes = [8, 128], strides = [1, 1]} : vector<8x512xf32> to vector<8x128xf32>
    %cst_53 = arith.constant 5.000000e-01 : f32
    %139 = vector.broadcast %cst_53 : f32 to vector<8x128xf32>
    %140 = arith.mulf %139, %138 : vector<8x128xf32>
    %141 = math.tanh %140 : vector<8x128xf32>
    %cst_54 = arith.constant 5.000000e-01 : f32
    %142 = vector.broadcast %cst_54 : f32 to vector<8x128xf32>
    %143 = arith.mulf %142, %141 : vector<8x128xf32>
    %cst_55 = arith.constant 5.000000e-01 : f32
    %144 = vector.broadcast %cst_55 : f32 to vector<8x128xf32>
    %145 = arith.addf %143, %144 : vector<8x128xf32>
    %146 = vector.extract_strided_slice %137 {offsets = [0, 128], sizes = [8, 128], strides = [1, 1]} : vector<8x512xf32> to vector<8x128xf32>
    %cst_56 = arith.constant 5.000000e-01 : f32
    %147 = vector.broadcast %cst_56 : f32 to vector<8x128xf32>
    %148 = arith.mulf %147, %146 : vector<8x128xf32>
    %149 = math.tanh %148 : vector<8x128xf32>
    %cst_57 = arith.constant 5.000000e-01 : f32
    %150 = vector.broadcast %cst_57 : f32 to vector<8x128xf32>
    %151 = arith.mulf %150, %149 : vector<8x128xf32>
    %cst_58 = arith.constant 5.000000e-01 : f32
    %152 = vector.broadcast %cst_58 : f32 to vector<8x128xf32>
    %153 = arith.addf %151, %152 : vector<8x128xf32>
    %154 = vector.extract_strided_slice %137 {offsets = [0, 256], sizes = [8, 128], strides = [1, 1]} : vector<8x512xf32> to vector<8x128xf32>
    %155 = math.tanh %154 : vector<8x128xf32>
    %156 = vector.extract_strided_slice %137 {offsets = [0, 384], sizes = [8, 128], strides = [1, 1]} : vector<8x512xf32> to vector<8x128xf32>
    %cst_59 = arith.constant 5.000000e-01 : f32
    %157 = vector.broadcast %cst_59 : f32 to vector<8x128xf32>
    %158 = arith.mulf %157, %156 : vector<8x128xf32>
    %159 = math.tanh %158 : vector<8x128xf32>
    %cst_60 = arith.constant 5.000000e-01 : f32
    %160 = vector.broadcast %cst_60 : f32 to vector<8x128xf32>
    %161 = arith.mulf %160, %159 : vector<8x128xf32>
    %cst_61 = arith.constant 5.000000e-01 : f32
    %162 = vector.broadcast %cst_61 : f32 to vector<8x128xf32>
    %163 = arith.addf %161, %162 : vector<8x128xf32>
    %164 = arith.mulf %153, %126 : vector<8x128xf32>
    %165 = arith.mulf %145, %155 : vector<8x128xf32>
    %166 = arith.addf %164, %165 : vector<8x128xf32>
    %167 = math.tanh %166 : vector<8x128xf32>
    %168 = arith.mulf %163, %167 : vector<8x128xf32>
    %169 = arith.index_cast %132 : i32 to index
    %c0_62 = arith.constant 0 : index
    %170 = vector.load %arg12[%169, %c0_62] : memref<64x128xf32, #tpu.memory_space<vmem>>, vector<8x128xf32>
    tpu.vector_store %arg12[%169, %c0_62], %168 {strides = array<i32>} : memref<64x128xf32, #tpu.memory_space<vmem>>, vector<8x128xf32>,
    %c4_i32 = arith.constant 4 : i32
    %c8_i32_63 = arith.constant 8 : i32
    %171 = arith.muli %c4_i32, %c8_i32_63 : i32
    %172 = tpu.assume_multiple %171, 8 : i32
    %173 = arith.index_cast %172 : i32 to index
    %c0_64 = arith.constant 0 : index
    %174 = vector.load %arg11[%173, %c0_64] : memref<64x512xf32, #tpu.memory_space<vmem>>, vector<8x512xf32>
    %175 = arith.truncf %168 : vector<8x128xf32> to vector<8x128xbf16>
    %cst_65 = arith.constant dense<0.000000e+00> : vector<8x512xf32>
    %176 = tpu.matmul %175, %8, %cst_65 {dimension_numbers = #tpu.dot_dimension_numbers<[1], [0], [0], [1], [0, 0, 1, 1], [], []>} : vector<8x128xbf16>, vector<128x512xbf16>, vector<8x512xf32> -> vector<8x512xf32>
    %177 = arith.addf %174, %176 : vector<8x512xf32>
    %178 = vector.extract_strided_slice %177 {offsets = [0, 0], sizes = [8, 128], strides = [1, 1]} : vector<8x512xf32> to vector<8x128xf32>
    %cst_66 = arith.constant 5.000000e-01 : f32
    %179 = vector.broadcast %cst_66 : f32 to vector<8x128xf32>
    %180 = arith.mulf %179, %178 : vector<8x128xf32>
    %181 = math.tanh %180 : vector<8x128xf32>
    %cst_67 = arith.constant 5.000000e-01 : f32
    %182 = vector.broadcast %cst_67 : f32 to vector<8x128xf32>
    %183 = arith.mulf %182, %181 : vector<8x128xf32>
    %cst_68 = arith.constant 5.000000e-01 : f32
    %184 = vector.broadcast %cst_68 : f32 to vector<8x128xf32>
    %185 = arith.addf %183, %184 : vector<8x128xf32>
    %186 = vector.extract_strided_slice %177 {offsets = [0, 128], sizes = [8, 128], strides = [1, 1]} : vector<8x512xf32> to vector<8x128xf32>
    %cst_69 = arith.constant 5.000000e-01 : f32
    %187 = vector.broadcast %cst_69 : f32 to vector<8x128xf32>
    %188 = arith.mulf %187, %186 : vector<8x128xf32>
    %189 = math.tanh %188 : vector<8x128xf32>
    %cst_70 = arith.constant 5.000000e-01 : f32
    %190 = vector.broadcast %cst_70 : f32 to vector<8x128xf32>
    %191 = arith.mulf %190, %189 : vector<8x128xf32>
    %cst_71 = arith.constant 5.000000e-01 : f32
    %192 = vector.broadcast %cst_71 : f32 to vector<8x128xf32>
    %193 = arith.addf %191, %192 : vector<8x128xf32>
    %194 = vector.extract_strided_slice %177 {offsets = [0, 256], sizes = [8, 128], strides = [1, 1]} : vector<8x512xf32> to vector<8x128xf32>
    %195 = math.tanh %194 : vector<8x128xf32>
    %196 = vector.extract_strided_slice %177 {offsets = [0, 384], sizes = [8, 128], strides = [1, 1]} : vector<8x512xf32> to vector<8x128xf32>
    %cst_72 = arith.constant 5.000000e-01 : f32
    %197 = vector.broadcast %cst_72 : f32 to vector<8x128xf32>
    %198 = arith.mulf %197, %196 : vector<8x128xf32>
    %199 = math.tanh %198 : vector<8x128xf32>
    %cst_73 = arith.constant 5.000000e-01 : f32
    %200 = vector.broadcast %cst_73 : f32 to vector<8x128xf32>
    %201 = arith.mulf %200, %199 : vector<8x128xf32>
    %cst_74 = arith.constant 5.000000e-01 : f32
    %202 = vector.broadcast %cst_74 : f32 to vector<8x128xf32>
    %203 = arith.addf %201, %202 : vector<8x128xf32>
    %204 = arith.mulf %193, %166 : vector<8x128xf32>
    %205 = arith.mulf %185, %195 : vector<8x128xf32>
    %206 = arith.addf %204, %205 : vector<8x128xf32>
    %207 = math.tanh %206 : vector<8x128xf32>
    %208 = arith.mulf %203, %207 : vector<8x128xf32>
    %209 = arith.index_cast %172 : i32 to index
    %c0_75 = arith.constant 0 : index
    %210 = vector.load %arg12[%209, %c0_75] : memref<64x128xf32, #tpu.memory_space<vmem>>, vector<8x128xf32>
    tpu.vector_store %arg12[%209, %c0_75], %208 {strides = array<i32>} : memref<64x128xf32, #tpu.memory_space<vmem>>, vector<8x128xf32>,
    %c5_i32 = arith.constant 5 : i32
    %c8_i32_76 = arith.constant 8 : i32
    %211 = arith.muli %c5_i32, %c8_i32_76 : i32
    %212 = tpu.assume_multiple %211, 8 : i32
    %213 = arith.index_cast %212 : i32 to index
    %c0_77 = arith.constant 0 : index
    %214 = vector.load %arg11[%213, %c0_77] : memref<64x512xf32, #tpu.memory_space<vmem>>, vector<8x512xf32>
    %215 = arith.truncf %208 : vector<8x128xf32> to vector<8x128xbf16>
    %cst_78 = arith.constant dense<0.000000e+00> : vector<8x512xf32>
    %216 = tpu.matmul %215, %8, %cst_78 {dimension_numbers = #tpu.dot_dimension_numbers<[1], [0], [0], [1], [0, 0, 1, 1], [], []>} : vector<8x128xbf16>, vector<128x512xbf16>, vector<8x512xf32> -> vector<8x512xf32>
    %217 = arith.addf %214, %216 : vector<8x512xf32>
    %218 = vector.extract_strided_slice %217 {offsets = [0, 0], sizes = [8, 128], strides = [1, 1]} : vector<8x512xf32> to vector<8x128xf32>
    %cst_79 = arith.constant 5.000000e-01 : f32
    %219 = vector.broadcast %cst_79 : f32 to vector<8x128xf32>
    %220 = arith.mulf %219, %218 : vector<8x128xf32>
    %221 = math.tanh %220 : vector<8x128xf32>
    %cst_80 = arith.constant 5.000000e-01 : f32
    %222 = vector.broadcast %cst_80 : f32 to vector<8x128xf32>
    %223 = arith.mulf %222, %221 : vector<8x128xf32>
    %cst_81 = arith.constant 5.000000e-01 : f32
    %224 = vector.broadcast %cst_81 : f32 to vector<8x128xf32>
    %225 = arith.addf %223, %224 : vector<8x128xf32>
    %226 = vector.extract_strided_slice %217 {offsets = [0, 128], sizes = [8, 128], strides = [1, 1]} : vector<8x512xf32> to vector<8x128xf32>
    %cst_82 = arith.constant 5.000000e-01 : f32
    %227 = vector.broadcast %cst_82 : f32 to vector<8x128xf32>
    %228 = arith.mulf %227, %226 : vector<8x128xf32>
    %229 = math.tanh %228 : vector<8x128xf32>
    %cst_83 = arith.constant 5.000000e-01 : f32
    %230 = vector.broadcast %cst_83 : f32 to vector<8x128xf32>
    %231 = arith.mulf %230, %229 : vector<8x128xf32>
    %cst_84 = arith.constant 5.000000e-01 : f32
    %232 = vector.broadcast %cst_84 : f32 to vector<8x128xf32>
    %233 = arith.addf %231, %232 : vector<8x128xf32>
    %234 = vector.extract_strided_slice %217 {offsets = [0, 256], sizes = [8, 128], strides = [1, 1]} : vector<8x512xf32> to vector<8x128xf32>
    %235 = math.tanh %234 : vector<8x128xf32>
    %236 = vector.extract_strided_slice %217 {offsets = [0, 384], sizes = [8, 128], strides = [1, 1]} : vector<8x512xf32> to vector<8x128xf32>
    %cst_85 = arith.constant 5.000000e-01 : f32
    %237 = vector.broadcast %cst_85 : f32 to vector<8x128xf32>
    %238 = arith.mulf %237, %236 : vector<8x128xf32>
    %239 = math.tanh %238 : vector<8x128xf32>
    %cst_86 = arith.constant 5.000000e-01 : f32
    %240 = vector.broadcast %cst_86 : f32 to vector<8x128xf32>
    %241 = arith.mulf %240, %239 : vector<8x128xf32>
    %cst_87 = arith.constant 5.000000e-01 : f32
    %242 = vector.broadcast %cst_87 : f32 to vector<8x128xf32>
    %243 = arith.addf %241, %242 : vector<8x128xf32>
    %244 = arith.mulf %233, %206 : vector<8x128xf32>
    %245 = arith.mulf %225, %235 : vector<8x128xf32>
    %246 = arith.addf %244, %245 : vector<8x128xf32>
    %247 = math.tanh %246 : vector<8x128xf32>
    %248 = arith.mulf %243, %247 : vector<8x128xf32>
    %249 = arith.index_cast %212 : i32 to index
    %c0_88 = arith.constant 0 : index
    %250 = vector.load %arg12[%249, %c0_88] : memref<64x128xf32, #tpu.memory_space<vmem>>, vector<8x128xf32>
    tpu.vector_store %arg12[%249, %c0_88], %248 {strides = array<i32>} : memref<64x128xf32, #tpu.memory_space<vmem>>, vector<8x128xf32>,
    %c6_i32 = arith.constant 6 : i32
    %c8_i32_89 = arith.constant 8 : i32
    %251 = arith.muli %c6_i32, %c8_i32_89 : i32
    %252 = tpu.assume_multiple %251, 8 : i32
    %253 = arith.index_cast %252 : i32 to index
    %c0_90 = arith.constant 0 : index
    %254 = vector.load %arg11[%253, %c0_90] : memref<64x512xf32, #tpu.memory_space<vmem>>, vector<8x512xf32>
    %255 = arith.truncf %248 : vector<8x128xf32> to vector<8x128xbf16>
    %cst_91 = arith.constant dense<0.000000e+00> : vector<8x512xf32>
    %256 = tpu.matmul %255, %8, %cst_91 {dimension_numbers = #tpu.dot_dimension_numbers<[1], [0], [0], [1], [0, 0, 1, 1], [], []>} : vector<8x128xbf16>, vector<128x512xbf16>, vector<8x512xf32> -> vector<8x512xf32>
    %257 = arith.addf %254, %256 : vector<8x512xf32>
    %258 = vector.extract_strided_slice %257 {offsets = [0, 0], sizes = [8, 128], strides = [1, 1]} : vector<8x512xf32> to vector<8x128xf32>
    %cst_92 = arith.constant 5.000000e-01 : f32
    %259 = vector.broadcast %cst_92 : f32 to vector<8x128xf32>
    %260 = arith.mulf %259, %258 : vector<8x128xf32>
    %261 = math.tanh %260 : vector<8x128xf32>
    %cst_93 = arith.constant 5.000000e-01 : f32
    %262 = vector.broadcast %cst_93 : f32 to vector<8x128xf32>
    %263 = arith.mulf %262, %261 : vector<8x128xf32>
    %cst_94 = arith.constant 5.000000e-01 : f32
    %264 = vector.broadcast %cst_94 : f32 to vector<8x128xf32>
    %265 = arith.addf %263, %264 : vector<8x128xf32>
    %266 = vector.extract_strided_slice %257 {offsets = [0, 128], sizes = [8, 128], strides = [1, 1]} : vector<8x512xf32> to vector<8x128xf32>
    %cst_95 = arith.constant 5.000000e-01 : f32
    %267 = vector.broadcast %cst_95 : f32 to vector<8x128xf32>
    %268 = arith.mulf %267, %266 : vector<8x128xf32>
    %269 = math.tanh %268 : vector<8x128xf32>
    %cst_96 = arith.constant 5.000000e-01 : f32
    %270 = vector.broadcast %cst_96 : f32 to vector<8x128xf32>
    %271 = arith.mulf %270, %269 : vector<8x128xf32>
    %cst_97 = arith.constant 5.000000e-01 : f32
    %272 = vector.broadcast %cst_97 : f32 to vector<8x128xf32>
    %273 = arith.addf %271, %272 : vector<8x128xf32>
    %274 = vector.extract_strided_slice %257 {offsets = [0, 256], sizes = [8, 128], strides = [1, 1]} : vector<8x512xf32> to vector<8x128xf32>
    %275 = math.tanh %274 : vector<8x128xf32>
    %276 = vector.extract_strided_slice %257 {offsets = [0, 384], sizes = [8, 128], strides = [1, 1]} : vector<8x512xf32> to vector<8x128xf32>
    %cst_98 = arith.constant 5.000000e-01 : f32
    %277 = vector.broadcast %cst_98 : f32 to vector<8x128xf32>
    %278 = arith.mulf %277, %276 : vector<8x128xf32>
    %279 = math.tanh %278 : vector<8x128xf32>
    %cst_99 = arith.constant 5.000000e-01 : f32
    %280 = vector.broadcast %cst_99 : f32 to vector<8x128xf32>
    %281 = arith.mulf %280, %279 : vector<8x128xf32>
    %cst_100 = arith.constant 5.000000e-01 : f32
    %282 = vector.broadcast %cst_100 : f32 to vector<8x128xf32>
    %283 = arith.addf %281, %282 : vector<8x128xf32>
    %284 = arith.mulf %273, %246 : vector<8x128xf32>
    %285 = arith.mulf %265, %275 : vector<8x128xf32>
    %286 = arith.addf %284, %285 : vector<8x128xf32>
    %287 = math.tanh %286 : vector<8x128xf32>
    %288 = arith.mulf %283, %287 : vector<8x128xf32>
    %289 = arith.index_cast %252 : i32 to index
    %c0_101 = arith.constant 0 : index
    %290 = vector.load %arg12[%289, %c0_101] : memref<64x128xf32, #tpu.memory_space<vmem>>, vector<8x128xf32>
    tpu.vector_store %arg12[%289, %c0_101], %288 {strides = array<i32>} : memref<64x128xf32, #tpu.memory_space<vmem>>, vector<8x128xf32>,
    %c7_i32 = arith.constant 7 : i32
    %c8_i32_102 = arith.constant 8 : i32
    %291 = arith.muli %c7_i32, %c8_i32_102 : i32
    %292 = tpu.assume_multiple %291, 8 : i32
    %293 = arith.index_cast %292 : i32 to index
    %c0_103 = arith.constant 0 : index
    %294 = vector.load %arg11[%293, %c0_103] : memref<64x512xf32, #tpu.memory_space<vmem>>, vector<8x512xf32>
    %295 = arith.truncf %288 : vector<8x128xf32> to vector<8x128xbf16>
    %cst_104 = arith.constant dense<0.000000e+00> : vector<8x512xf32>
    %296 = tpu.matmul %295, %8, %cst_104 {dimension_numbers = #tpu.dot_dimension_numbers<[1], [0], [0], [1], [0, 0, 1, 1], [], []>} : vector<8x128xbf16>, vector<128x512xbf16>, vector<8x512xf32> -> vector<8x512xf32>
    %297 = arith.addf %294, %296 : vector<8x512xf32>
    %298 = vector.extract_strided_slice %297 {offsets = [0, 0], sizes = [8, 128], strides = [1, 1]} : vector<8x512xf32> to vector<8x128xf32>
    %cst_105 = arith.constant 5.000000e-01 : f32
    %299 = vector.broadcast %cst_105 : f32 to vector<8x128xf32>
    %300 = arith.mulf %299, %298 : vector<8x128xf32>
    %301 = math.tanh %300 : vector<8x128xf32>
    %cst_106 = arith.constant 5.000000e-01 : f32
    %302 = vector.broadcast %cst_106 : f32 to vector<8x128xf32>
    %303 = arith.mulf %302, %301 : vector<8x128xf32>
    %cst_107 = arith.constant 5.000000e-01 : f32
    %304 = vector.broadcast %cst_107 : f32 to vector<8x128xf32>
    %305 = arith.addf %303, %304 : vector<8x128xf32>
    %306 = vector.extract_strided_slice %297 {offsets = [0, 128], sizes = [8, 128], strides = [1, 1]} : vector<8x512xf32> to vector<8x128xf32>
    %cst_108 = arith.constant 5.000000e-01 : f32
    %307 = vector.broadcast %cst_108 : f32 to vector<8x128xf32>
    %308 = arith.mulf %307, %306 : vector<8x128xf32>
    %309 = math.tanh %308 : vector<8x128xf32>
    %cst_109 = arith.constant 5.000000e-01 : f32
    %310 = vector.broadcast %cst_109 : f32 to vector<8x128xf32>
    %311 = arith.mulf %310, %309 : vector<8x128xf32>
    %cst_110 = arith.constant 5.000000e-01 : f32
    %312 = vector.broadcast %cst_110 : f32 to vector<8x128xf32>
    %313 = arith.addf %311, %312 : vector<8x128xf32>
    %314 = vector.extract_strided_slice %297 {offsets = [0, 256], sizes = [8, 128], strides = [1, 1]} : vector<8x512xf32> to vector<8x128xf32>
    %315 = math.tanh %314 : vector<8x128xf32>
    %316 = vector.extract_strided_slice %297 {offsets = [0, 384], sizes = [8, 128], strides = [1, 1]} : vector<8x512xf32> to vector<8x128xf32>
    %cst_111 = arith.constant 5.000000e-01 : f32
    %317 = vector.broadcast %cst_111 : f32 to vector<8x128xf32>
    %318 = arith.mulf %317, %316 : vector<8x128xf32>
    %319 = math.tanh %318 : vector<8x128xf32>
    %cst_112 = arith.constant 5.000000e-01 : f32
    %320 = vector.broadcast %cst_112 : f32 to vector<8x128xf32>
    %321 = arith.mulf %320, %319 : vector<8x128xf32>
    %cst_113 = arith.constant 5.000000e-01 : f32
    %322 = vector.broadcast %cst_113 : f32 to vector<8x128xf32>
    %323 = arith.addf %321, %322 : vector<8x128xf32>
    %324 = arith.mulf %313, %286 : vector<8x128xf32>
    %325 = arith.mulf %305, %315 : vector<8x128xf32>
    %326 = arith.addf %324, %325 : vector<8x128xf32>
    %327 = math.tanh %326 : vector<8x128xf32>
    %328 = arith.mulf %323, %327 : vector<8x128xf32>
    %329 = arith.index_cast %292 : i32 to index
    %c0_114 = arith.constant 0 : index
    %330 = vector.load %arg12[%329, %c0_114] : memref<64x128xf32, #tpu.memory_space<vmem>>, vector<8x128xf32>
    tpu.vector_store %arg12[%329, %c0_114], %328 {strides = array<i32>} : memref<64x128xf32, #tpu.memory_space<vmem>>, vector<8x128xf32>,
    %c8_i32_115 = arith.constant 8 : i32
    %c0_116 = arith.constant 0 : index
    %c0_117 = arith.constant 0 : index
    %331 = vector.load %arg12[%c0_116, %c0_117] : memref<64x128xf32, #tpu.memory_space<vmem>>, vector<64x128xf32>
    %332 = arith.truncf %331 : vector<64x128xf32> to vector<64x128xbf16>
    %c0_118 = arith.constant 0 : index
    %c0_119 = arith.constant 0 : index
    %333 = vector.load %arg5[%c0_118, %c0_119] : memref<128x512xbf16, #tpu.memory_space<vmem>>, vector<128x512xbf16>
    %cst_120 = arith.constant dense<0.000000e+00> : vector<64x512xf32>
    %334 = tpu.matmul %332, %333, %cst_120 {dimension_numbers = #tpu.dot_dimension_numbers<[1], [0], [0], [1], [0, 0, 1, 1], [], []>} : vector<64x128xbf16>, vector<128x512xbf16>, vector<64x512xf32> -> vector<64x512xf32>
    %c0_121 = arith.constant 0 : index
    %c0_122 = arith.constant 0 : index
    %335 = vector.load %arg7[%c0_121, %c0_122] : memref<1x512xf32, #tpu.memory_space<vmem>>, vector<1x512xf32>
    %336 = vector.broadcast %335 : vector<1x512xf32> to vector<64x512xf32>
    %337 = arith.addf %334, %336 : vector<64x512xf32>
    %c0_123 = arith.constant 0 : index
    %c0_124 = arith.constant 0 : index
    %338 = vector.load %arg11[%c0_123, %c0_124] : memref<64x512xf32, #tpu.memory_space<vmem>>, vector<64x512xf32>
    tpu.vector_store %arg11[%c0_123, %c0_124], %337 {strides = array<i32>} : memref<64x512xf32, #tpu.memory_space<vmem>>, vector<64x512xf32>,
    %c0_125 = arith.constant 0 : index
    %c0_126 = arith.constant 0 : index
    %339 = vector.load %arg6[%c0_125, %c0_126] : memref<128x512xbf16, #tpu.memory_space<vmem>>, vector<128x512xbf16>
    %cst_127 = arith.constant 0.000000e+00 : f32
    %340 = vector.broadcast %cst_127 : f32 to vector<8x128xf32>
    %cst_128 = arith.constant 0.000000e+00 : f32
    %341 = vector.broadcast %cst_128 : f32 to vector<8x128xf32>
    %c0_i32_129 = arith.constant 0 : i32
    %c8_i32_130 = arith.constant 8 : i32
    %342 = arith.muli %c0_i32_129, %c8_i32_130 : i32
    %343 = tpu.assume_multiple %342, 8 : i32
    %344 = arith.index_cast %343 : i32 to index
    %c0_131 = arith.constant 0 : index
    %345 = vector.load %arg11[%344, %c0_131] : memref<64x512xf32, #tpu.memory_space<vmem>>, vector<8x512xf32>
    %346 = arith.truncf %340 : vector<8x128xf32> to vector<8x128xbf16>
    %cst_132 = arith.constant dense<0.000000e+00> : vector<8x512xf32>
    %347 = tpu.matmul %346, %339, %cst_132 {dimension_numbers = #tpu.dot_dimension_numbers<[1], [0], [0], [1], [0, 0, 1, 1], [], []>} : vector<8x128xbf16>, vector<128x512xbf16>, vector<8x512xf32> -> vector<8x512xf32>
    %348 = arith.addf %345, %347 : vector<8x512xf32>
    %349 = vector.extract_strided_slice %348 {offsets = [0, 0], sizes = [8, 128], strides = [1, 1]} : vector<8x512xf32> to vector<8x128xf32>
    %cst_133 = arith.constant 5.000000e-01 : f32
    %350 = vector.broadcast %cst_133 : f32 to vector<8x128xf32>
    %351 = arith.mulf %350, %349 : vector<8x128xf32>
    %352 = math.tanh %351 : vector<8x128xf32>
    %cst_134 = arith.constant 5.000000e-01 : f32
    %353 = vector.broadcast %cst_134 : f32 to vector<8x128xf32>
    %354 = arith.mulf %353, %352 : vector<8x128xf32>
    %cst_135 = arith.constant 5.000000e-01 : f32
    %355 = vector.broadcast %cst_135 : f32 to vector<8x128xf32>
    %356 = arith.addf %354, %355 : vector<8x128xf32>
    %357 = vector.extract_strided_slice %348 {offsets = [0, 128], sizes = [8, 128], strides = [1, 1]} : vector<8x512xf32> to vector<8x128xf32>
    %cst_136 = arith.constant 5.000000e-01 : f32
    %358 = vector.broadcast %cst_136 : f32 to vector<8x128xf32>
    %359 = arith.mulf %358, %357 : vector<8x128xf32>
    %360 = math.tanh %359 : vector<8x128xf32>
    %cst_137 = arith.constant 5.000000e-01 : f32
    %361 = vector.broadcast %cst_137 : f32 to vector<8x128xf32>
    %362 = arith.mulf %361, %360 : vector<8x128xf32>
    %cst_138 = arith.constant 5.000000e-01 : f32
    %363 = vector.broadcast %cst_138 : f32 to vector<8x128xf32>
    %364 = arith.addf %362, %363 : vector<8x128xf32>
    %365 = vector.extract_strided_slice %348 {offsets = [0, 256], sizes = [8, 128], strides = [1, 1]} : vector<8x512xf32> to vector<8x128xf32>
    %366 = math.tanh %365 : vector<8x128xf32>
    %367 = vector.extract_strided_slice %348 {offsets = [0, 384], sizes = [8, 128], strides = [1, 1]} : vector<8x512xf32> to vector<8x128xf32>
    %cst_139 = arith.constant 5.000000e-01 : f32
    %368 = vector.broadcast %cst_139 : f32 to vector<8x128xf32>
    %369 = arith.mulf %368, %367 : vector<8x128xf32>
    %370 = math.tanh %369 : vector<8x128xf32>
    %cst_140 = arith.constant 5.000000e-01 : f32
    %371 = vector.broadcast %cst_140 : f32 to vector<8x128xf32>
    %372 = arith.mulf %371, %370 : vector<8x128xf32>
    %cst_141 = arith.constant 5.000000e-01 : f32
    %373 = vector.broadcast %cst_141 : f32 to vector<8x128xf32>
    %374 = arith.addf %372, %373 : vector<8x128xf32>
    %375 = arith.mulf %364, %341 : vector<8x128xf32>
    %376 = arith.mulf %356, %366 : vector<8x128xf32>
    %377 = arith.addf %375, %376 : vector<8x128xf32>
    %378 = math.tanh %377 : vector<8x128xf32>
    %379 = arith.mulf %374, %378 : vector<8x128xf32>
    %c1_i32_142 = arith.constant 1 : i32
    %c8_i32_143 = arith.constant 8 : i32
    %380 = arith.muli %c1_i32_142, %c8_i32_143 : i32
    %381 = tpu.assume_multiple %380, 8 : i32
    %382 = arith.index_cast %381 : i32 to index
    %c0_144 = arith.constant 0 : index
    %383 = vector.load %arg11[%382, %c0_144] : memref<64x512xf32, #tpu.memory_space<vmem>>, vector<8x512xf32>
    %384 = arith.truncf %379 : vector<8x128xf32> to vector<8x128xbf16>
    %cst_145 = arith.constant dense<0.000000e+00> : vector<8x512xf32>
    %385 = tpu.matmul %384, %339, %cst_145 {dimension_numbers = #tpu.dot_dimension_numbers<[1], [0], [0], [1], [0, 0, 1, 1], [], []>} : vector<8x128xbf16>, vector<128x512xbf16>, vector<8x512xf32> -> vector<8x512xf32>
    %386 = arith.addf %383, %385 : vector<8x512xf32>
    %387 = vector.extract_strided_slice %386 {offsets = [0, 0], sizes = [8, 128], strides = [1, 1]} : vector<8x512xf32> to vector<8x128xf32>
    %cst_146 = arith.constant 5.000000e-01 : f32
    %388 = vector.broadcast %cst_146 : f32 to vector<8x128xf32>
    %389 = arith.mulf %388, %387 : vector<8x128xf32>
    %390 = math.tanh %389 : vector<8x128xf32>
    %cst_147 = arith.constant 5.000000e-01 : f32
    %391 = vector.broadcast %cst_147 : f32 to vector<8x128xf32>
    %392 = arith.mulf %391, %390 : vector<8x128xf32>
    %cst_148 = arith.constant 5.000000e-01 : f32
    %393 = vector.broadcast %cst_148 : f32 to vector<8x128xf32>
    %394 = arith.addf %392, %393 : vector<8x128xf32>
    %395 = vector.extract_strided_slice %386 {offsets = [0, 128], sizes = [8, 128], strides = [1, 1]} : vector<8x512xf32> to vector<8x128xf32>
    %cst_149 = arith.constant 5.000000e-01 : f32
    %396 = vector.broadcast %cst_149 : f32 to vector<8x128xf32>
    %397 = arith.mulf %396, %395 : vector<8x128xf32>
    %398 = math.tanh %397 : vector<8x128xf32>
    %cst_150 = arith.constant 5.000000e-01 : f32
    %399 = vector.broadcast %cst_150 : f32 to vector<8x128xf32>
    %400 = arith.mulf %399, %398 : vector<8x128xf32>
    %cst_151 = arith.constant 5.000000e-01 : f32
    %401 = vector.broadcast %cst_151 : f32 to vector<8x128xf32>
    %402 = arith.addf %400, %401 : vector<8x128xf32>
    %403 = vector.extract_strided_slice %386 {offsets = [0, 256], sizes = [8, 128], strides = [1, 1]} : vector<8x512xf32> to vector<8x128xf32>
    %404 = math.tanh %403 : vector<8x128xf32>
    %405 = vector.extract_strided_slice %386 {offsets = [0, 384], sizes = [8, 128], strides = [1, 1]} : vector<8x512xf32> to vector<8x128xf32>
    %cst_152 = arith.constant 5.000000e-01 : f32
    %406 = vector.broadcast %cst_152 : f32 to vector<8x128xf32>
    %407 = arith.mulf %406, %405 : vector<8x128xf32>
    %408 = math.tanh %407 : vector<8x128xf32>
    %cst_153 = arith.constant 5.000000e-01 : f32
    %409 = vector.broadcast %cst_153 : f32 to vector<8x128xf32>
    %410 = arith.mulf %409, %408 : vector<8x128xf32>
    %cst_154 = arith.constant 5.000000e-01 : f32
    %411 = vector.broadcast %cst_154 : f32 to vector<8x128xf32>
    %412 = arith.addf %410, %411 : vector<8x128xf32>
    %413 = arith.mulf %402, %377 : vector<8x128xf32>
    %414 = arith.mulf %394, %404 : vector<8x128xf32>
    %415 = arith.addf %413, %414 : vector<8x128xf32>
    %416 = math.tanh %415 : vector<8x128xf32>
    %417 = arith.mulf %412, %416 : vector<8x128xf32>
    %c2_i32_155 = arith.constant 2 : i32
    %c8_i32_156 = arith.constant 8 : i32
    %418 = arith.muli %c2_i32_155, %c8_i32_156 : i32
    %419 = tpu.assume_multiple %418, 8 : i32
    %420 = arith.index_cast %419 : i32 to index
    %c0_157 = arith.constant 0 : index
    %421 = vector.load %arg11[%420, %c0_157] : memref<64x512xf32, #tpu.memory_space<vmem>>, vector<8x512xf32>
    %422 = arith.truncf %417 : vector<8x128xf32> to vector<8x128xbf16>
    %cst_158 = arith.constant dense<0.000000e+00> : vector<8x512xf32>
    %423 = tpu.matmul %422, %339, %cst_158 {dimension_numbers = #tpu.dot_dimension_numbers<[1], [0], [0], [1], [0, 0, 1, 1], [], []>} : vector<8x128xbf16>, vector<128x512xbf16>, vector<8x512xf32> -> vector<8x512xf32>
    %424 = arith.addf %421, %423 : vector<8x512xf32>
    %425 = vector.extract_strided_slice %424 {offsets = [0, 0], sizes = [8, 128], strides = [1, 1]} : vector<8x512xf32> to vector<8x128xf32>
    %cst_159 = arith.constant 5.000000e-01 : f32
    %426 = vector.broadcast %cst_159 : f32 to vector<8x128xf32>
    %427 = arith.mulf %426, %425 : vector<8x128xf32>
    %428 = math.tanh %427 : vector<8x128xf32>
    %cst_160 = arith.constant 5.000000e-01 : f32
    %429 = vector.broadcast %cst_160 : f32 to vector<8x128xf32>
    %430 = arith.mulf %429, %428 : vector<8x128xf32>
    %cst_161 = arith.constant 5.000000e-01 : f32
    %431 = vector.broadcast %cst_161 : f32 to vector<8x128xf32>
    %432 = arith.addf %430, %431 : vector<8x128xf32>
    %433 = vector.extract_strided_slice %424 {offsets = [0, 128], sizes = [8, 128], strides = [1, 1]} : vector<8x512xf32> to vector<8x128xf32>
    %cst_162 = arith.constant 5.000000e-01 : f32
    %434 = vector.broadcast %cst_162 : f32 to vector<8x128xf32>
    %435 = arith.mulf %434, %433 : vector<8x128xf32>
    %436 = math.tanh %435 : vector<8x128xf32>
    %cst_163 = arith.constant 5.000000e-01 : f32
    %437 = vector.broadcast %cst_163 : f32 to vector<8x128xf32>
    %438 = arith.mulf %437, %436 : vector<8x128xf32>
    %cst_164 = arith.constant 5.000000e-01 : f32
    %439 = vector.broadcast %cst_164 : f32 to vector<8x128xf32>
    %440 = arith.addf %438, %439 : vector<8x128xf32>
    %441 = vector.extract_strided_slice %424 {offsets = [0, 256], sizes = [8, 128], strides = [1, 1]} : vector<8x512xf32> to vector<8x128xf32>
    %442 = math.tanh %441 : vector<8x128xf32>
    %443 = vector.extract_strided_slice %424 {offsets = [0, 384], sizes = [8, 128], strides = [1, 1]} : vector<8x512xf32> to vector<8x128xf32>
    %cst_165 = arith.constant 5.000000e-01 : f32
    %444 = vector.broadcast %cst_165 : f32 to vector<8x128xf32>
    %445 = arith.mulf %444, %443 : vector<8x128xf32>
    %446 = math.tanh %445 : vector<8x128xf32>
    %cst_166 = arith.constant 5.000000e-01 : f32
    %447 = vector.broadcast %cst_166 : f32 to vector<8x128xf32>
    %448 = arith.mulf %447, %446 : vector<8x128xf32>
    %cst_167 = arith.constant 5.000000e-01 : f32
    %449 = vector.broadcast %cst_167 : f32 to vector<8x128xf32>
    %450 = arith.addf %448, %449 : vector<8x128xf32>
    %451 = arith.mulf %440, %415 : vector<8x128xf32>
    %452 = arith.mulf %432, %442 : vector<8x128xf32>
    %453 = arith.addf %451, %452 : vector<8x128xf32>
    %454 = math.tanh %453 : vector<8x128xf32>
    %455 = arith.mulf %450, %454 : vector<8x128xf32>
    %c3_i32_168 = arith.constant 3 : i32
    %c8_i32_169 = arith.constant 8 : i32
    %456 = arith.muli %c3_i32_168, %c8_i32_169 : i32
    %457 = tpu.assume_multiple %456, 8 : i32
    %458 = arith.index_cast %457 : i32 to index
    %c0_170 = arith.constant 0 : index
    %459 = vector.load %arg11[%458, %c0_170] : memref<64x512xf32, #tpu.memory_space<vmem>>, vector<8x512xf32>
    %460 = arith.truncf %455 : vector<8x128xf32> to vector<8x128xbf16>
    %cst_171 = arith.constant dense<0.000000e+00> : vector<8x512xf32>
    %461 = tpu.matmul %460, %339, %cst_171 {dimension_numbers = #tpu.dot_dimension_numbers<[1], [0], [0], [1], [0, 0, 1, 1], [], []>} : vector<8x128xbf16>, vector<128x512xbf16>, vector<8x512xf32> -> vector<8x512xf32>
    %462 = arith.addf %459, %461 : vector<8x512xf32>
    %463 = vector.extract_strided_slice %462 {offsets = [0, 0], sizes = [8, 128], strides = [1, 1]} : vector<8x512xf32> to vector<8x128xf32>
    %cst_172 = arith.constant 5.000000e-01 : f32
    %464 = vector.broadcast %cst_172 : f32 to vector<8x128xf32>
    %465 = arith.mulf %464, %463 : vector<8x128xf32>
    %466 = math.tanh %465 : vector<8x128xf32>
    %cst_173 = arith.constant 5.000000e-01 : f32
    %467 = vector.broadcast %cst_173 : f32 to vector<8x128xf32>
    %468 = arith.mulf %467, %466 : vector<8x128xf32>
    %cst_174 = arith.constant 5.000000e-01 : f32
    %469 = vector.broadcast %cst_174 : f32 to vector<8x128xf32>
    %470 = arith.addf %468, %469 : vector<8x128xf32>
    %471 = vector.extract_strided_slice %462 {offsets = [0, 128], sizes = [8, 128], strides = [1, 1]} : vector<8x512xf32> to vector<8x128xf32>
    %cst_175 = arith.constant 5.000000e-01 : f32
    %472 = vector.broadcast %cst_175 : f32 to vector<8x128xf32>
    %473 = arith.mulf %472, %471 : vector<8x128xf32>
    %474 = math.tanh %473 : vector<8x128xf32>
    %cst_176 = arith.constant 5.000000e-01 : f32
    %475 = vector.broadcast %cst_176 : f32 to vector<8x128xf32>
    %476 = arith.mulf %475, %474 : vector<8x128xf32>
    %cst_177 = arith.constant 5.000000e-01 : f32
    %477 = vector.broadcast %cst_177 : f32 to vector<8x128xf32>
    %478 = arith.addf %476, %477 : vector<8x128xf32>
    %479 = vector.extract_strided_slice %462 {offsets = [0, 256], sizes = [8, 128], strides = [1, 1]} : vector<8x512xf32> to vector<8x128xf32>
    %480 = math.tanh %479 : vector<8x128xf32>
    %481 = vector.extract_strided_slice %462 {offsets = [0, 384], sizes = [8, 128], strides = [1, 1]} : vector<8x512xf32> to vector<8x128xf32>
    %cst_178 = arith.constant 5.000000e-01 : f32
    %482 = vector.broadcast %cst_178 : f32 to vector<8x128xf32>
    %483 = arith.mulf %482, %481 : vector<8x128xf32>
    %484 = math.tanh %483 : vector<8x128xf32>
    %cst_179 = arith.constant 5.000000e-01 : f32
    %485 = vector.broadcast %cst_179 : f32 to vector<8x128xf32>
    %486 = arith.mulf %485, %484 : vector<8x128xf32>
    %cst_180 = arith.constant 5.000000e-01 : f32
    %487 = vector.broadcast %cst_180 : f32 to vector<8x128xf32>
    %488 = arith.addf %486, %487 : vector<8x128xf32>
    %489 = arith.mulf %478, %453 : vector<8x128xf32>
    %490 = arith.mulf %470, %480 : vector<8x128xf32>
    %491 = arith.addf %489, %490 : vector<8x128xf32>
    %492 = math.tanh %491 : vector<8x128xf32>
    %493 = arith.mulf %488, %492 : vector<8x128xf32>
    %c4_i32_181 = arith.constant 4 : i32
    %c8_i32_182 = arith.constant 8 : i32
    %494 = arith.muli %c4_i32_181, %c8_i32_182 : i32
    %495 = tpu.assume_multiple %494, 8 : i32
    %496 = arith.index_cast %495 : i32 to index
    %c0_183 = arith.constant 0 : index
    %497 = vector.load %arg11[%496, %c0_183] : memref<64x512xf32, #tpu.memory_space<vmem>>, vector<8x512xf32>
    %498 = arith.truncf %493 : vector<8x128xf32> to vector<8x128xbf16>
    %cst_184 = arith.constant dense<0.000000e+00> : vector<8x512xf32>
    %499 = tpu.matmul %498, %339, %cst_184 {dimension_numbers = #tpu.dot_dimension_numbers<[1], [0], [0], [1], [0, 0, 1, 1], [], []>} : vector<8x128xbf16>, vector<128x512xbf16>, vector<8x512xf32> -> vector<8x512xf32>
    %500 = arith.addf %497, %499 : vector<8x512xf32>
    %501 = vector.extract_strided_slice %500 {offsets = [0, 0], sizes = [8, 128], strides = [1, 1]} : vector<8x512xf32> to vector<8x128xf32>
    %cst_185 = arith.constant 5.000000e-01 : f32
    %502 = vector.broadcast %cst_185 : f32 to vector<8x128xf32>
    %503 = arith.mulf %502, %501 : vector<8x128xf32>
    %504 = math.tanh %503 : vector<8x128xf32>
    %cst_186 = arith.constant 5.000000e-01 : f32
    %505 = vector.broadcast %cst_186 : f32 to vector<8x128xf32>
    %506 = arith.mulf %505, %504 : vector<8x128xf32>
    %cst_187 = arith.constant 5.000000e-01 : f32
    %507 = vector.broadcast %cst_187 : f32 to vector<8x128xf32>
    %508 = arith.addf %506, %507 : vector<8x128xf32>
    %509 = vector.extract_strided_slice %500 {offsets = [0, 128], sizes = [8, 128], strides = [1, 1]} : vector<8x512xf32> to vector<8x128xf32>
    %cst_188 = arith.constant 5.000000e-01 : f32
    %510 = vector.broadcast %cst_188 : f32 to vector<8x128xf32>
    %511 = arith.mulf %510, %509 : vector<8x128xf32>
    %512 = math.tanh %511 : vector<8x128xf32>
    %cst_189 = arith.constant 5.000000e-01 : f32
    %513 = vector.broadcast %cst_189 : f32 to vector<8x128xf32>
    %514 = arith.mulf %513, %512 : vector<8x128xf32>
    %cst_190 = arith.constant 5.000000e-01 : f32
    %515 = vector.broadcast %cst_190 : f32 to vector<8x128xf32>
    %516 = arith.addf %514, %515 : vector<8x128xf32>
    %517 = vector.extract_strided_slice %500 {offsets = [0, 256], sizes = [8, 128], strides = [1, 1]} : vector<8x512xf32> to vector<8x128xf32>
    %518 = math.tanh %517 : vector<8x128xf32>
    %519 = vector.extract_strided_slice %500 {offsets = [0, 384], sizes = [8, 128], strides = [1, 1]} : vector<8x512xf32> to vector<8x128xf32>
    %cst_191 = arith.constant 5.000000e-01 : f32
    %520 = vector.broadcast %cst_191 : f32 to vector<8x128xf32>
    %521 = arith.mulf %520, %519 : vector<8x128xf32>
    %522 = math.tanh %521 : vector<8x128xf32>
    %cst_192 = arith.constant 5.000000e-01 : f32
    %523 = vector.broadcast %cst_192 : f32 to vector<8x128xf32>
    %524 = arith.mulf %523, %522 : vector<8x128xf32>
    %cst_193 = arith.constant 5.000000e-01 : f32
    %525 = vector.broadcast %cst_193 : f32 to vector<8x128xf32>
    %526 = arith.addf %524, %525 : vector<8x128xf32>
    %527 = arith.mulf %516, %491 : vector<8x128xf32>
    %528 = arith.mulf %508, %518 : vector<8x128xf32>
    %529 = arith.addf %527, %528 : vector<8x128xf32>
    %530 = math.tanh %529 : vector<8x128xf32>
    %531 = arith.mulf %526, %530 : vector<8x128xf32>
    %c5_i32_194 = arith.constant 5 : i32
    %c8_i32_195 = arith.constant 8 : i32
    %532 = arith.muli %c5_i32_194, %c8_i32_195 : i32
    %533 = tpu.assume_multiple %532, 8 : i32
    %534 = arith.index_cast %533 : i32 to index
    %c0_196 = arith.constant 0 : index
    %535 = vector.load %arg11[%534, %c0_196] : memref<64x512xf32, #tpu.memory_space<vmem>>, vector<8x512xf32>
    %536 = arith.truncf %531 : vector<8x128xf32> to vector<8x128xbf16>
    %cst_197 = arith.constant dense<0.000000e+00> : vector<8x512xf32>
    %537 = tpu.matmul %536, %339, %cst_197 {dimension_numbers = #tpu.dot_dimension_numbers<[1], [0], [0], [1], [0, 0, 1, 1], [], []>} : vector<8x128xbf16>, vector<128x512xbf16>, vector<8x512xf32> -> vector<8x512xf32>
    %538 = arith.addf %535, %537 : vector<8x512xf32>
    %539 = vector.extract_strided_slice %538 {offsets = [0, 0], sizes = [8, 128], strides = [1, 1]} : vector<8x512xf32> to vector<8x128xf32>
    %cst_198 = arith.constant 5.000000e-01 : f32
    %540 = vector.broadcast %cst_198 : f32 to vector<8x128xf32>
    %541 = arith.mulf %540, %539 : vector<8x128xf32>
    %542 = math.tanh %541 : vector<8x128xf32>
    %cst_199 = arith.constant 5.000000e-01 : f32
    %543 = vector.broadcast %cst_199 : f32 to vector<8x128xf32>
    %544 = arith.mulf %543, %542 : vector<8x128xf32>
    %cst_200 = arith.constant 5.000000e-01 : f32
    %545 = vector.broadcast %cst_200 : f32 to vector<8x128xf32>
    %546 = arith.addf %544, %545 : vector<8x128xf32>
    %547 = vector.extract_strided_slice %538 {offsets = [0, 128], sizes = [8, 128], strides = [1, 1]} : vector<8x512xf32> to vector<8x128xf32>
    %cst_201 = arith.constant 5.000000e-01 : f32
    %548 = vector.broadcast %cst_201 : f32 to vector<8x128xf32>
    %549 = arith.mulf %548, %547 : vector<8x128xf32>
    %550 = math.tanh %549 : vector<8x128xf32>
    %cst_202 = arith.constant 5.000000e-01 : f32
    %551 = vector.broadcast %cst_202 : f32 to vector<8x128xf32>
    %552 = arith.mulf %551, %550 : vector<8x128xf32>
    %cst_203 = arith.constant 5.000000e-01 : f32
    %553 = vector.broadcast %cst_203 : f32 to vector<8x128xf32>
    %554 = arith.addf %552, %553 : vector<8x128xf32>
    %555 = vector.extract_strided_slice %538 {offsets = [0, 256], sizes = [8, 128], strides = [1, 1]} : vector<8x512xf32> to vector<8x128xf32>
    %556 = math.tanh %555 : vector<8x128xf32>
    %557 = vector.extract_strided_slice %538 {offsets = [0, 384], sizes = [8, 128], strides = [1, 1]} : vector<8x512xf32> to vector<8x128xf32>
    %cst_204 = arith.constant 5.000000e-01 : f32
    %558 = vector.broadcast %cst_204 : f32 to vector<8x128xf32>
    %559 = arith.mulf %558, %557 : vector<8x128xf32>
    %560 = math.tanh %559 : vector<8x128xf32>
    %cst_205 = arith.constant 5.000000e-01 : f32
    %561 = vector.broadcast %cst_205 : f32 to vector<8x128xf32>
    %562 = arith.mulf %561, %560 : vector<8x128xf32>
    %cst_206 = arith.constant 5.000000e-01 : f32
    %563 = vector.broadcast %cst_206 : f32 to vector<8x128xf32>
    %564 = arith.addf %562, %563 : vector<8x128xf32>
    %565 = arith.mulf %554, %529 : vector<8x128xf32>
    %566 = arith.mulf %546, %556 : vector<8x128xf32>
    %567 = arith.addf %565, %566 : vector<8x128xf32>
    %568 = math.tanh %567 : vector<8x128xf32>
    %569 = arith.mulf %564, %568 : vector<8x128xf32>
    %c6_i32_207 = arith.constant 6 : i32
    %c8_i32_208 = arith.constant 8 : i32
    %570 = arith.muli %c6_i32_207, %c8_i32_208 : i32
    %571 = tpu.assume_multiple %570, 8 : i32
    %572 = arith.index_cast %571 : i32 to index
    %c0_209 = arith.constant 0 : index
    %573 = vector.load %arg11[%572, %c0_209] : memref<64x512xf32, #tpu.memory_space<vmem>>, vector<8x512xf32>
    %574 = arith.truncf %569 : vector<8x128xf32> to vector<8x128xbf16>
    %cst_210 = arith.constant dense<0.000000e+00> : vector<8x512xf32>
    %575 = tpu.matmul %574, %339, %cst_210 {dimension_numbers = #tpu.dot_dimension_numbers<[1], [0], [0], [1], [0, 0, 1, 1], [], []>} : vector<8x128xbf16>, vector<128x512xbf16>, vector<8x512xf32> -> vector<8x512xf32>
    %576 = arith.addf %573, %575 : vector<8x512xf32>
    %577 = vector.extract_strided_slice %576 {offsets = [0, 0], sizes = [8, 128], strides = [1, 1]} : vector<8x512xf32> to vector<8x128xf32>
    %cst_211 = arith.constant 5.000000e-01 : f32
    %578 = vector.broadcast %cst_211 : f32 to vector<8x128xf32>
    %579 = arith.mulf %578, %577 : vector<8x128xf32>
    %580 = math.tanh %579 : vector<8x128xf32>
    %cst_212 = arith.constant 5.000000e-01 : f32
    %581 = vector.broadcast %cst_212 : f32 to vector<8x128xf32>
    %582 = arith.mulf %581, %580 : vector<8x128xf32>
    %cst_213 = arith.constant 5.000000e-01 : f32
    %583 = vector.broadcast %cst_213 : f32 to vector<8x128xf32>
    %584 = arith.addf %582, %583 : vector<8x128xf32>
    %585 = vector.extract_strided_slice %576 {offsets = [0, 128], sizes = [8, 128], strides = [1, 1]} : vector<8x512xf32> to vector<8x128xf32>
    %cst_214 = arith.constant 5.000000e-01 : f32
    %586 = vector.broadcast %cst_214 : f32 to vector<8x128xf32>
    %587 = arith.mulf %586, %585 : vector<8x128xf32>
    %588 = math.tanh %587 : vector<8x128xf32>
    %cst_215 = arith.constant 5.000000e-01 : f32
    %589 = vector.broadcast %cst_215 : f32 to vector<8x128xf32>
    %590 = arith.mulf %589, %588 : vector<8x128xf32>
    %cst_216 = arith.constant 5.000000e-01 : f32
    %591 = vector.broadcast %cst_216 : f32 to vector<8x128xf32>
    %592 = arith.addf %590, %591 : vector<8x128xf32>
    %593 = vector.extract_strided_slice %576 {offsets = [0, 256], sizes = [8, 128], strides = [1, 1]} : vector<8x512xf32> to vector<8x128xf32>
    %594 = math.tanh %593 : vector<8x128xf32>
    %595 = vector.extract_strided_slice %576 {offsets = [0, 384], sizes = [8, 128], strides = [1, 1]} : vector<8x512xf32> to vector<8x128xf32>
    %cst_217 = arith.constant 5.000000e-01 : f32
    %596 = vector.broadcast %cst_217 : f32 to vector<8x128xf32>
    %597 = arith.mulf %596, %595 : vector<8x128xf32>
    %598 = math.tanh %597 : vector<8x128xf32>
    %cst_218 = arith.constant 5.000000e-01 : f32
    %599 = vector.broadcast %cst_218 : f32 to vector<8x128xf32>
    %600 = arith.mulf %599, %598 : vector<8x128xf32>
    %cst_219 = arith.constant 5.000000e-01 : f32
    %601 = vector.broadcast %cst_219 : f32 to vector<8x128xf32>
    %602 = arith.addf %600, %601 : vector<8x128xf32>
    %603 = arith.mulf %592, %567 : vector<8x128xf32>
    %604 = arith.mulf %584, %594 : vector<8x128xf32>
    %605 = arith.addf %603, %604 : vector<8x128xf32>
    %606 = math.tanh %605 : vector<8x128xf32>
    %607 = arith.mulf %602, %606 : vector<8x128xf32>
    %c7_i32_220 = arith.constant 7 : i32
    %c8_i32_221 = arith.constant 8 : i32
    %608 = arith.muli %c7_i32_220, %c8_i32_221 : i32
    %609 = tpu.assume_multiple %608, 8 : i32
    %610 = arith.index_cast %609 : i32 to index
    %c0_222 = arith.constant 0 : index
    %611 = vector.load %arg11[%610, %c0_222] : memref<64x512xf32, #tpu.memory_space<vmem>>, vector<8x512xf32>
    %612 = arith.truncf %607 : vector<8x128xf32> to vector<8x128xbf16>
    %cst_223 = arith.constant dense<0.000000e+00> : vector<8x512xf32>
    %613 = tpu.matmul %612, %339, %cst_223 {dimension_numbers = #tpu.dot_dimension_numbers<[1], [0], [0], [1], [0, 0, 1, 1], [], []>} : vector<8x128xbf16>, vector<128x512xbf16>, vector<8x512xf32> -> vector<8x512xf32>
    %614 = arith.addf %611, %613 : vector<8x512xf32>
    %615 = vector.extract_strided_slice %614 {offsets = [0, 0], sizes = [8, 128], strides = [1, 1]} : vector<8x512xf32> to vector<8x128xf32>
    %cst_224 = arith.constant 5.000000e-01 : f32
    %616 = vector.broadcast %cst_224 : f32 to vector<8x128xf32>
    %617 = arith.mulf %616, %615 : vector<8x128xf32>
    %618 = math.tanh %617 : vector<8x128xf32>
    %cst_225 = arith.constant 5.000000e-01 : f32
    %619 = vector.broadcast %cst_225 : f32 to vector<8x128xf32>
    %620 = arith.mulf %619, %618 : vector<8x128xf32>
    %cst_226 = arith.constant 5.000000e-01 : f32
    %621 = vector.broadcast %cst_226 : f32 to vector<8x128xf32>
    %622 = arith.addf %620, %621 : vector<8x128xf32>
    %623 = vector.extract_strided_slice %614 {offsets = [0, 128], sizes = [8, 128], strides = [1, 1]} : vector<8x512xf32> to vector<8x128xf32>
    %cst_227 = arith.constant 5.000000e-01 : f32
    %624 = vector.broadcast %cst_227 : f32 to vector<8x128xf32>
    %625 = arith.mulf %624, %623 : vector<8x128xf32>
    %626 = math.tanh %625 : vector<8x128xf32>
    %cst_228 = arith.constant 5.000000e-01 : f32
    %627 = vector.broadcast %cst_228 : f32 to vector<8x128xf32>
    %628 = arith.mulf %627, %626 : vector<8x128xf32>
    %cst_229 = arith.constant 5.000000e-01 : f32
    %629 = vector.broadcast %cst_229 : f32 to vector<8x128xf32>
    %630 = arith.addf %628, %629 : vector<8x128xf32>
    %631 = vector.extract_strided_slice %614 {offsets = [0, 256], sizes = [8, 128], strides = [1, 1]} : vector<8x512xf32> to vector<8x128xf32>
    %632 = math.tanh %631 : vector<8x128xf32>
    %633 = vector.extract_strided_slice %614 {offsets = [0, 384], sizes = [8, 128], strides = [1, 1]} : vector<8x512xf32> to vector<8x128xf32>
    %cst_230 = arith.constant 5.000000e-01 : f32
    %634 = vector.broadcast %cst_230 : f32 to vector<8x128xf32>
    %635 = arith.mulf %634, %633 : vector<8x128xf32>
    %636 = math.tanh %635 : vector<8x128xf32>
    %cst_231 = arith.constant 5.000000e-01 : f32
    %637 = vector.broadcast %cst_231 : f32 to vector<8x128xf32>
    %638 = arith.mulf %637, %636 : vector<8x128xf32>
    %cst_232 = arith.constant 5.000000e-01 : f32
    %639 = vector.broadcast %cst_232 : f32 to vector<8x128xf32>
    %640 = arith.addf %638, %639 : vector<8x128xf32>
    %641 = arith.mulf %630, %605 : vector<8x128xf32>
    %642 = arith.mulf %622, %632 : vector<8x128xf32>
    %643 = arith.addf %641, %642 : vector<8x128xf32>
    %644 = math.tanh %643 : vector<8x128xf32>
    %645 = arith.mulf %640, %644 : vector<8x128xf32>
    %c8_i32_233 = arith.constant 8 : i32
    %646 = arith.truncf %645 : vector<8x128xf32> to vector<8x128xbf16>
    %c0_234 = arith.constant 0 : index
    %c0_235 = arith.constant 0 : index
    %647 = vector.load %arg8[%c0_234, %c0_235] : memref<128x128xbf16, #tpu.memory_space<vmem>>, vector<128x128xbf16>
    %cst_236 = arith.constant dense<0.000000e+00> : vector<8x128xf32>
    %648 = tpu.matmul %646, %647, %cst_236 {dimension_numbers = #tpu.dot_dimension_numbers<[1], [0], [0], [1], [0, 0, 1, 1], [], []>} : vector<8x128xbf16>, vector<128x128xbf16>, vector<8x128xf32> -> vector<8x128xf32>
    %c0_237 = arith.constant 0 : index
    %c0_238 = arith.constant 0 : index
    %649 = vector.load %arg9[%c0_237, %c0_238] : memref<1x128xf32, #tpu.memory_space<vmem>>, vector<1x128xf32>
    %650 = vector.broadcast %649 : vector<1x128xf32> to vector<8x128xf32>
    %651 = arith.addf %648, %650 : vector<8x128xf32>
    %c0_239 = arith.constant 0 : index
    %c0_240 = arith.constant 0 : index
    %652 = vector.load %arg10[%c0_239, %c0_240] : memref<8x128xf32, #tpu.memory_space<vmem>>, vector<8x128xf32>
    tpu.vector_store %arg10[%c0_239, %c0_240], %651 {strides = array<i32>} : memref<8x128xf32, #tpu.memory_space<vmem>>, vector<8x128xf32>,
    return
  }
  func.func @transform_0(%arg0: i32) -> (i32, i32, i32) {
    %c0_i32 = arith.constant 0 : i32
    %c0_i32_0 = arith.constant 0 : i32
    %c0_i32_1 = arith.constant 0 : i32
    return %arg0, %c0_i32, %c0_i32_0 : i32, i32, i32
  }
  func.func @transform_1(%arg0: i32) -> (i32, i32) {
    %c0_i32 = arith.constant 0 : i32
    %c0_i32_0 = arith.constant 0 : i32
    %c0_i32_1 = arith.constant 0 : i32
    return %c0_i32, %c0_i32_0 : i32, i32
  }
  func.func @transform_2(%arg0: i32) -> (i32, i32) {
    %c0_i32 = arith.constant 0 : i32
    %c0_i32_0 = arith.constant 0 : i32
    %c0_i32_1 = arith.constant 0 : i32
    return %c0_i32, %c0_i32_0 : i32, i32
  }
  func.func @transform_3(%arg0: i32) -> (i32, i32) {
    %c0_i32 = arith.constant 0 : i32
    %c0_i32_0 = arith.constant 0 : i32
    %c0_i32_1 = arith.constant 0 : i32
    return %c0_i32, %c0_i32_0 : i32, i32
  }
  func.func @transform_4(%arg0: i32) -> (i32, i32) {
    %c0_i32 = arith.constant 0 : i32
    %c0_i32_0 = arith.constant 0 : i32
    %c0_i32_1 = arith.constant 0 : i32
    return %c0_i32, %c0_i32_0 : i32, i32
  }
  func.func @transform_5(%arg0: i32) -> (i32, i32) {
    %c0_i32 = arith.constant 0 : i32
    %c0_i32_0 = arith.constant 0 : i32
    %c0_i32_1 = arith.constant 0 : i32
    return %c0_i32, %c0_i32_0 : i32, i32
  }
  func.func @transform_6(%arg0: i32) -> (i32, i32) {
    %c0_i32 = arith.constant 0 : i32
    %c0_i32_0 = arith.constant 0 : i32
    %c0_i32_1 = arith.constant 0 : i32
    return %c0_i32, %c0_i32_0 : i32, i32
  }
  func.func @transform_7(%arg0: i32) -> (i32, i32) {
    %c0_i32 = arith.constant 0 : i32
    %c0_i32_0 = arith.constant 0 : i32
    %c0_i32_1 = arith.constant 0 : i32
    return %c0_i32, %c0_i32_0 : i32, i32
  }
  func.func @transform_8(%arg0: i32) -> (i32, i32) {
    %c0_i32 = arith.constant 0 : i32
    %c0_i32_0 = arith.constant 0 : i32
    %c0_i32_1 = arith.constant 0 : i32
    return %c0_i32, %c0_i32_0 : i32, i32
  }
  func.func @transform_9(%arg0: i32) -> (i32, i32) {
    %c0_i32 = arith.constant 0 : i32
    %c0_i32_0 = arith.constant 0 : i32
    return %arg0, %c0_i32 : i32, i32
  }
}

</mosaic_0001>

<llo_original>
// kernel: lstm_model_forward.1
$region0: #{lstm_model_forward.1}
  #allocation0 [shape = 'u32[]', space=smem, size = 0x4, offset = 0x4, fixed_abs, tag = 'smem constant byte address 0x4 - core index']
  #allocation1 [shape = 'u32[144,128]{1,0:T(1,128)}', space=vmem, size = 0x12000, scoped, tag = 'internal scratch']
  #allocation2 [shape = 'f32[64,512]{1,0:T(8,128)}', space=vmem, size = 0x20000, scoped, tag = 'scratch operand']
  #allocation3 [shape = 'f32[64,128]{1,0:T(8,128)}', space=vmem, size = 0x8000, scoped, tag = 'scratch operand']
  %s0 = inlined_call_operand.vmem [shape: bf16[1,64,32], index: 0, kind: input, shape index: {}]
  %s1 = inlined_call_operand.vmem [shape: bf16[32,512], index: 1, kind: input, shape index: {}]
  %s2 = inlined_call_operand.vmem [shape: bf16[128,512], index: 2, kind: input, shape index: {}]
  %s3 = inlined_call_operand.vmem [shape: f32[1,512], index: 3, kind: input, shape index: {}]
  %s4 = inlined_call_operand.vmem [shape: bf16[128,512], index: 4, kind: input, shape index: {}]
  %s5 = inlined_call_operand.vmem [shape: bf16[128,512], index: 5, kind: input, shape index: {}]
  %s6 = inlined_call_operand.vmem [shape: f32[1,512], index: 6, kind: input, shape index: {}]
  %s7 = inlined_call_operand.vmem [shape: bf16[128,128], index: 7, kind: input, shape index: {}]
  %s8 = inlined_call_operand.vmem [shape: f32[1,128], index: 8, kind: input, shape index: {}]
  %s9 = inlined_call_operand.vmem [shape: f32[8,128], index: 9, kind: output, shape index: {}]
  %s10 = sld [smem:[#allocation0]]
  $region46: #{lstm_model_forward.1} parent=0
    _
  %s12 = ssub.s32 1, %s10
  %s13 = scalar_select 0, %s12, %s10
  // Predicated region
  $region2: #{lstm_model_forward.1} parent=0 // pred_check
    _
  $region3: #{lstm_model_forward.1} parent=0 // pred_check_branch
    %15 = sbr.rel (0) target = $region5
  $region4: #{lstm_model_forward.1} parent=0 // pred_region
    _
  $region5: #{lstm_model_forward.1} parent=0 // pred_fallthru
    _
  // Predicated region
  $region6: #{lstm_model_forward.1} parent=0 // pred_check
    _
  $region7: #{lstm_model_forward.1} parent=0 // pred_check_branch
    %17 = sbr.rel (0) target = $region9
  $region8: #{lstm_model_forward.1} parent=0 // pred_region
    _
  $region9: #{lstm_model_forward.1} parent=0 // pred_fallthru
    _
  // Predicated region
  $region10: #{lstm_model_forward.1} parent=0 // pred_check
    _
  $region11: #{lstm_model_forward.1} parent=0 // pred_check_branch
    %19 = sbr.rel (0) target = $region13
  $region12: #{lstm_model_forward.1} parent=0 // pred_region
    _
  $region13: #{lstm_model_forward.1} parent=0 // pred_fallthru
    _
  // Predicated region
  $region14: #{lstm_model_forward.1} parent=0 // pred_check
    _
  $region15: #{lstm_model_forward.1} parent=0 // pred_check_branch
    %21 = sbr.rel (0) target = $region17
  $region16: #{lstm_model_forward.1} parent=0 // pred_region
    _
  $region17: #{lstm_model_forward.1} parent=0 // pred_fallthru
    _
  // Predicated region
  $region18: #{lstm_model_forward.1} parent=0 // pred_check
    _
  $region19: #{lstm_model_forward.1} parent=0 // pred_check_branch
    %23 = sbr.rel (0) target = $region21
  $region20: #{lstm_model_forward.1} parent=0 // pred_region
    _
  $region21: #{lstm_model_forward.1} parent=0 // pred_fallthru
    _
  // Predicated region
  $region22: #{lstm_model_forward.1} parent=0 // pred_check
    _
  $region23: #{lstm_model_forward.1} parent=0 // pred_check_branch
    %25 = sbr.rel (0) target = $region25
  $region24: #{lstm_model_forward.1} parent=0 // pred_region
    _
  $region25: #{lstm_model_forward.1} parent=0 // pred_fallthru
    _
  // Predicated region
  $region26: #{lstm_model_forward.1} parent=0 // pred_check
    _
  $region27: #{lstm_model_forward.1} parent=0 // pred_check_branch
    %27 = sbr.rel (0) target = $region29
  $region28: #{lstm_model_forward.1} parent=0 // pred_region
    _
  $region29: #{lstm_model_forward.1} parent=0 // pred_fallthru
    _
  // Predicated region
  $region30: #{lstm_model_forward.1} parent=0 // pred_check
    _
  $region31: #{lstm_model_forward.1} parent=0 // pred_check_branch
    %29 = sbr.rel (0) target = $region33
  $region32: #{lstm_model_forward.1} parent=0 // pred_region
    _
  $region33: #{lstm_model_forward.1} parent=0 // pred_fallthru
    _
  // Predicated region
  $region34: #{lstm_model_forward.1} parent=0 // pred_check
    _
  $region35: #{lstm_model_forward.1} parent=0 // pred_check_branch
    %31 = sbr.rel (0) target = $region37
  $region36: #{lstm_model_forward.1} parent=0 // pred_region
    _
  $region37: #{lstm_model_forward.1} parent=0 // pred_fallthru
    _
  %v33 = vld [vmem:[%s0] sm:$0xf]
  %v34 = vld [vmem:[%s0 + $0x4] sm:$0xf]
  %v35 = vld [vmem:[%s0 + $0x8] sm:$0xf]
  %v36 = vld [vmem:[%s0 + $0xc] sm:$0xf]
  %v37 = vld [vmem:[%s0 + $0x10] sm:$0xf]
  %v38 = vld [vmem:[%s0 + $0x14] sm:$0xf]
  %v39 = vld [vmem:[%s0 + $0x18] sm:$0xf]
  %v40 = vld [vmem:[%s0 + $0x1c] sm:$0xf]
  %v41 = vld [vmem:[%s1] sm:$0xff]
  %v42 = vld [vmem:[%s1 + $0x8] sm:$0xff]
  %v43 = vld [vmem:[%s1 + $0x10] sm:$0xff]
  %v44 = vld [vmem:[%s1 + $0x18] sm:$0xff]
  %v45 = vld [vmem:[%s1 + $0x20] sm:$0xff]
  %v46 = vld [vmem:[%s1 + $0x28] sm:$0xff]
  %v47 = vld [vmem:[%s1 + $0x30] sm:$0xff]
  %v48 = vld [vmem:[%s1 + $0x38] sm:$0xff]
  %v49 = vld [vmem:[%s3] sm:$0xf]
  %v51 = vlaneseq
  %v52 = vshrl.u32 %v51, 7
  %v53 = vsub.s32 0, %v52
  %v54 = vrot.slane %v49, %v53
  %v55 = vlaneseq
  %v56 = vshrl.u32 %v55, 7
  %v57 = vsub.s32 1, %v56
  %v58 = vrot.slane %v49, %v57
  %v59 = vlaneseq
  %v60 = vshrl.u32 %v59, 7
  %v61 = vsub.s32 2, %v60
  %v62 = vrot.slane %v49, %v61
  %v63 = vlaneseq
  %v64 = vshrl.u32 %v63, 7
  %v65 = vsub.s32 3, %v64
  %v66 = vrot.slane %v49, %v65
  %v79 = vunpack.c.l.b16 %v33
  %v80 = vunpack.c.l.b16 %v34
  %v81 = vunpack.c.l.b16 %v35
  %v82 = vunpack.c.l.b16 %v36
  %v83 = vunpack.c.l.b16 %v37
  %v84 = vunpack.c.l.b16 %v38
  %v85 = vunpack.c.l.b16 %v39
  %v86 = vunpack.c.l.b16 %v40
  %v87 = vpack.c.b16 %v80, %v79
  %v88 = vpack.c.b16 %v82, %v81
  %v89 = vpack.c.b16 %v84, %v83
  %v90 = vpack.c.b16 %v86, %v85
  %v99 = vunpack.c.l.b16 %v41
  %v100 = vunpack.c.h.b16 %v41
  %v101 = vunpack.c.l.b16 %v42
  %v102 = vunpack.c.h.b16 %v42
  %v103 = vunpack.c.l.b16 %v43
  %v104 = vunpack.c.h.b16 %v43
  %v105 = vunpack.c.l.b16 %v44
  %v106 = vunpack.c.h.b16 %v44
  %v107 = vunpack.c.l.b16 %v45
  %v108 = vunpack.c.h.b16 %v45
  %v109 = vunpack.c.l.b16 %v46
  %v110 = vunpack.c.h.b16 %v46
  %v111 = vunpack.c.l.b16 %v47
  %v112 = vunpack.c.h.b16 %v47
  %v113 = vunpack.c.l.b16 %v48
  %v114 = vunpack.c.h.b16 %v48
  %v115 = vpack.c.b16 %v103, %v99
  %v116 = vpack.c.b16 %v104, %v100
  %v117 = vpack.c.b16 %v105, %v101
  %v118 = vpack.c.b16 %v106, %v102
  %v119 = vpack.c.b16 %v111, %v107
  %v120 = vpack.c.b16 %v112, %v108
  %v121 = vpack.c.b16 %v113, %v109
  %v122 = vpack.c.b16 %v114, %v110
  %vm131 = vcmask 261120
  %v133 = vsel %vm131, %v87, 0
  %v136 = vsel %vm131, %v88, 0
  %v139 = vsel %vm131, %v89, 0
  %v142 = vsel %vm131, %v90, 0
  %144 = vmatprep.subr.bf16.mxu0 %v116
  %145 = vmatpush1.bf16.msra.mxu0 %v115
  %146 = vmatprep.subr.bf16.mxu0 %v120
  %147 = vmatpush1.bf16.msra.mxu0 %v119
  %148 = vmatprep.subr.bf16.mxu0 0
  %149 = vmatpush1.bf16.msra.mxu0 0
  %150 = vmatprep.subr.bf16.mxu0 0
  %151 = vmatpush1.bf16.msra.mxu0 0
  %152 = vmatprep.subr.bf16.mxu0 0
  %153 = vmatpush1.bf16.msra.mxu0 0
  %154 = vmatprep.subr.bf16.mxu0 0
  %155 = vmatpush1.bf16.msra.mxu0 0
  %156 = vmatprep.subr.bf16.mxu0 0
  %157 = vmatpush1.bf16.msra.mxu0 0
  %158 = vmatprep.subr.bf16.mxu0 0
  %159 = vmatpush1.bf16.msra.mxu0 0
  %160 = vmatprep.subr.bf16.mxu0 0
  %161 = vmatpush1.bf16.msra.mxu0 0
  %162 = vmatprep.subr.bf16.mxu0 0
  %163 = vmatpush1.bf16.msra.mxu0 0
  %164 = vmatprep.subr.bf16.mxu0 0
  %165 = vmatpush1.bf16.msra.mxu0 0
  %166 = vmatprep.subr.bf16.mxu0 0
  %167 = vmatpush1.bf16.msra.mxu0 0
  %168 = vmatprep.subr.bf16.mxu0 0
  %169 = vmatpush1.bf16.msra.mxu0 0
  %170 = vmatprep.subr.bf16.mxu0 0
  %171 = vmatpush1.bf16.msra.mxu0 0
  %172 = vmatprep.subr.bf16.mxu0 0
  %173 = vmatpush1.bf16.msra.mxu0 0
  %174 = vmatprep.subr.bf16.mxu0 0
  %175 = vmatpush1.bf16.msra.mxu0 0
  %176 = vmatprep.mubr.bf16.mxu0 0
  %177 = vmatmul.mubr.bf16.gmra.mrb[0].mxu0 %v133
  %v178 = vpop.f32.mrb[0].mxu0
  %v179 = vadd.f32 %v54, %v178
  %v180 = vpop.f32.mrb[0].mxu0
  %v181 = vadd.f32 %v58, %v180
  %v182 = vpop.f32.mrb[0].mxu0
  %v183 = vadd.f32 %v54, %v182
  %v184 = vpop.f32.mrb[0].mxu0
  %v185 = vadd.f32 %v58, %v184
  %186 = vmatprep.mubr.bf16.mxu0 0
  %187 = vmatmul.mubr.bf16.gmra.mrb[0].mxu0 %v136
  %v188 = vpop.f32.mrb[0].mxu0
  %v189 = vadd.f32 %v54, %v188
  %v190 = vpop.f32.mrb[0].mxu0
  %v191 = vadd.f32 %v58, %v190
  %v192 = vpop.f32.mrb[0].mxu0
  %v193 = vadd.f32 %v54, %v192
  %v194 = vpop.f32.mrb[0].mxu0
  %v195 = vadd.f32 %v58, %v194
  %196 = vmatprep.mubr.bf16.mxu0 0
  %197 = vmatmul.mubr.bf16.gmra.mrb[0].mxu0 %v139
  %v198 = vpop.f32.mrb[0].mxu0
  %v199 = vadd.f32 %v54, %v198
  %v200 = vpop.f32.mrb[0].mxu0
  %v201 = vadd.f32 %v58, %v200
  %v202 = vpop.f32.mrb[0].mxu0
  %v203 = vadd.f32 %v54, %v202
  %v204 = vpop.f32.mrb[0].mxu0
  %v205 = vadd.f32 %v58, %v204
  %206 = vmatprep.mubr.bf16.mxu0 0
  %207 = vmatmul.mubr.bf16.gmra.mrb[0].mxu0 %v142
  %v208 = vpop.f32.mrb[0].mxu0
  %v209 = vadd.f32 %v54, %v208
  %v210 = vpop.f32.mrb[0].mxu0
  %v211 = vadd.f32 %v58, %v210
  %v212 = vpop.f32.mrb[0].mxu0
  %v213 = vadd.f32 %v54, %v212
  %v214 = vpop.f32.mrb[0].mxu0
  %v215 = vadd.f32 %v58, %v214
  %216 = vdwg.mxu0
  %217 = vmatprep.subr.bf16.mxu0 %v118
  %218 = vmatpush1.bf16.msra.mxu0 %v117
  %219 = vmatprep.subr.bf16.mxu0 %v122
  %220 = vmatpush1.bf16.msra.mxu0 %v121
  %221 = vmatprep.subr.bf16.mxu0 0
  %222 = vmatpush1.bf16.msra.mxu0 0
  %223 = vmatprep.subr.bf16.mxu0 0
  %224 = vmatpush1.bf16.msra.mxu0 0
  %225 = vmatprep.subr.bf16.mxu0 0
  %226 = vmatpush1.bf16.msra.mxu0 0
  %227 = vmatprep.subr.bf16.mxu0 0
  %228 = vmatpush1.bf16.msra.mxu0 0
  %229 = vmatprep.subr.bf16.mxu0 0
  %230 = vmatpush1.bf16.msra.mxu0 0
  %231 = vmatprep.subr.bf16.mxu0 0
  %232 = vmatpush1.bf16.msra.mxu0 0
  %233 = vmatprep.subr.bf16.mxu0 0
  %234 = vmatpush1.bf16.msra.mxu0 0
  %235 = vmatprep.subr.bf16.mxu0 0
  %236 = vmatpush1.bf16.msra.mxu0 0
  %237 = vmatprep.subr.bf16.mxu0 0
  %238 = vmatpush1.bf16.msra.mxu0 0
  %239 = vmatprep.subr.bf16.mxu0 0
  %240 = vmatpush1.bf16.msra.mxu0 0
  %241 = vmatprep.subr.bf16.mxu0 0
  %242 = vmatpush1.bf16.msra.mxu0 0
  %243 = vmatprep.subr.bf16.mxu0 0
  %244 = vmatpush1.bf16.msra.mxu0 0
  %245 = vmatprep.subr.bf16.mxu0 0
  %246 = vmatpush1.bf16.msra.mxu0 0
  %247 = vmatprep.subr.bf16.mxu0 0
  %248 = vmatpush1.bf16.msra.mxu0 0
  %249 = vmatprep.mubr.bf16.mxu0 0
  %250 = vmatmul.mubr.bf16.gmra.mrb[0].mxu0 %v133
  %v251 = vpop.f32.mrb[0].mxu0
  %v252 = vadd.f32 %v62, %v251
  %v253 = vpop.f32.mrb[0].mxu0
  %v254 = vadd.f32 %v66, %v253
  %v255 = vpop.f32.mrb[0].mxu0
  %v256 = vadd.f32 %v62, %v255
  %v257 = vpop.f32.mrb[0].mxu0
  %v258 = vadd.f32 %v66, %v257
  %259 = vmatprep.mubr.bf16.mxu0 0
  %260 = vmatmul.mubr.bf16.gmra.mrb[0].mxu0 %v136
  %v261 = vpop.f32.mrb[0].mxu0
  %v262 = vadd.f32 %v62, %v261
  %v263 = vpop.f32.mrb[0].mxu0
  %v264 = vadd.f32 %v66, %v263
  %v265 = vpop.f32.mrb[0].mxu0
  %v266 = vadd.f32 %v62, %v265
  %v267 = vpop.f32.mrb[0].mxu0
  %v268 = vadd.f32 %v66, %v267
  %269 = vmatprep.mubr.bf16.mxu0 0
  %270 = vmatmul.mubr.bf16.gmra.mrb[0].mxu0 %v139
  %v271 = vpop.f32.mrb[0].mxu0
  %v272 = vadd.f32 %v62, %v271
  %v273 = vpop.f32.mrb[0].mxu0
  %v274 = vadd.f32 %v66, %v273
  %v275 = vpop.f32.mrb[0].mxu0
  %v276 = vadd.f32 %v62, %v275
  %v277 = vpop.f32.mrb[0].mxu0
  %v278 = vadd.f32 %v66, %v277
  %279 = vmatprep.mubr.bf16.mxu0 0
  %280 = vmatmul.mubr.bf16.gmra.mrb[0].mxu0 %v142
  %v281 = vpop.f32.mrb[0].mxu0
  %v282 = vadd.f32 %v62, %v281
  %v283 = vpop.f32.mrb[0].mxu0
  %v284 = vadd.f32 %v66, %v283
  %v285 = vpop.f32.mrb[0].mxu0
  %v286 = vadd.f32 %v62, %v285
  %v287 = vpop.f32.mrb[0].mxu0
  %v288 = vadd.f32 %v66, %v287
  %289 = vdwg.mxu0
  %290 = vst [vmem:[#allocation2] sm:$0xff] %v179
  %291 = vst [vmem:[#allocation2 + $0x8] sm:$0xff] %v181
  %292 = vst [vmem:[#allocation2 + $0x10] sm:$0xff] %v252
  %293 = vst [vmem:[#allocation2 + $0x18] sm:$0xff] %v254
  %294 = vst [vmem:[#allocation2 + $0x20] sm:$0xff] %v183
  %295 = vst [vmem:[#allocation2 + $0x28] sm:$0xff] %v185
  %296 = vst [vmem:[#allocation2 + $0x30] sm:$0xff] %v256
  %297 = vst [vmem:[#allocation2 + $0x38] sm:$0xff] %v258
  %298 = vst [vmem:[#allocation2 + $0x40] sm:$0xff] %v189
  %299 = vst [vmem:[#allocation2 + $0x48] sm:$0xff] %v191
  %300 = vst [vmem:[#allocation2 + $0x50] sm:$0xff] %v262
  %301 = vst [vmem:[#allocation2 + $0x58] sm:$0xff] %v264
  %302 = vst [vmem:[#allocation2 + $0x60] sm:$0xff] %v193
  %303 = vst [vmem:[#allocation2 + $0x68] sm:$0xff] %v195
  %304 = vst [vmem:[#allocation2 + $0x70] sm:$0xff] %v266
  %305 = vst [vmem:[#allocation2 + $0x78] sm:$0xff] %v268
  %306 = vst [vmem:[#allocation2 + $0x80] sm:$0xff] %v199
  %307 = vst [vmem:[#allocation2 + $0x88] sm:$0xff] %v201
  %308 = vst [vmem:[#allocation2 + $0x90] sm:$0xff] %v272
  %309 = vst [vmem:[#allocation2 + $0x98] sm:$0xff] %v274
  %310 = vst [vmem:[#allocation2 + $0xa0] sm:$0xff] %v203
  %311 = vst [vmem:[#allocation2 + $0xa8] sm:$0xff] %v205
  %312 = vst [vmem:[#allocation2 + $0xb0] sm:$0xff] %v276
  %313 = vst [vmem:[#allocation2 + $0xb8] sm:$0xff] %v278
  %314 = vst [vmem:[#allocation2 + $0xc0] sm:$0xff] %v209
  %315 = vst [vmem:[#allocation2 + $0xc8] sm:$0xff] %v211
  %316 = vst [vmem:[#allocation2 + $0xd0] sm:$0xff] %v282
  %317 = vst [vmem:[#allocation2 + $0xd8] sm:$0xff] %v284
  %318 = vst [vmem:[#allocation2 + $0xe0] sm:$0xff] %v213
  %319 = vst [vmem:[#allocation2 + $0xe8] sm:$0xff] %v215
  %320 = vst [vmem:[#allocation2 + $0xf0] sm:$0xff] %v286
  %321 = vst [vmem:[#allocation2 + $0xf8] sm:$0xff] %v288
  %v322 = vld [vmem:[%s2] sm:$0xff]
  %v323 = vld [vmem:[%s2 + $0x8] sm:$0xff]
  %v324 = vld [vmem:[%s2 + $0x10] sm:$0xff]
  %v325 = vld [vmem:[%s2 + $0x18] sm:$0xff]
  %v326 = vld [vmem:[%s2 + $0x20] sm:$0xff]
  %v327 = vld [vmem:[%s2 + $0x28] sm:$0xff]
  %v328 = vld [vmem:[%s2 + $0x30] sm:$0xff]
  %v329 = vld [vmem:[%s2 + $0x38] sm:$0xff]
  %v330 = vld [vmem:[%s2 + $0x40] sm:$0xff]
  %v331 = vld [vmem:[%s2 + $0x48] sm:$0xff]
  %v332 = vld [vmem:[%s2 + $0x50] sm:$0xff]
  %v333 = vld [vmem:[%s2 + $0x58] sm:$0xff]
  %v334 = vld [vmem:[%s2 + $0x60] sm:$0xff]
  %v335 = vld [vmem:[%s2 + $0x68] sm:$0xff]
  %v336 = vld [vmem:[%s2 + $0x70] sm:$0xff]
  %v337 = vld [vmem:[%s2 + $0x78] sm:$0xff]
  %v338 = vld [vmem:[%s2 + $0x80] sm:$0xff]
  %v339 = vld [vmem:[%s2 + $0x88] sm:$0xff]
  %v340 = vld [vmem:[%s2 + $0x90] sm:$0xff]
  %v341 = vld [vmem:[%s2 + $0x98] sm:$0xff]
  %v342 = vld [vmem:[%s2 + $0xa0] sm:$0xff]
  %v343 = vld [vmem:[%s2 + $0xa8] sm:$0xff]
  %v344 = vld [vmem:[%s2 + $0xb0] sm:$0xff]
  %v345 = vld [vmem:[%s2 + $0xb8] sm:$0xff]
  %v346 = vld [vmem:[%s2 + $0xc0] sm:$0xff]
  %v347 = vld [vmem:[%s2 + $0xc8] sm:$0xff]
  %v348 = vld [vmem:[%s2 + $0xd0] sm:$0xff]
  %v349 = vld [vmem:[%s2 + $0xd8] sm:$0xff]
  %v350 = vld [vmem:[%s2 + $0xe0] sm:$0xff]
  %v351 = vld [vmem:[%s2 + $0xe8] sm:$0xff]
  %v352 = vld [vmem:[%s2 + $0xf0] sm:$0xff]
  %v353 = vld [vmem:[%s2 + $0xf8] sm:$0xff]
  %s354 = smul.u32 0, 4
  %s355 = smul.addr %s354, 8
  %s356 = scalar_lea.vmem [#allocation2], %s355
  %v357 = vld [vmem:[%s356] sm:$0xff]
  %v358 = vld [vmem:[%s356 + $0x8] sm:$0xff]
  %v359 = vld [vmem:[%s356 + $0x10] sm:$0xff]
  %v360 = vld [vmem:[%s356 + $0x18] sm:$0xff]
  %v393 = vunpack.c.l.b16 %v322
  %v394 = vunpack.c.h.b16 %v322
  %v395 = vunpack.c.l.b16 %v323
  %v396 = vunpack.c.h.b16 %v323
  %v397 = vunpack.c.l.b16 %v324
  %v398 = vunpack.c.h.b16 %v324
  %v399 = vunpack.c.l.b16 %v325
  %v400 = vunpack.c.h.b16 %v325
  %v401 = vunpack.c.l.b16 %v326
  %v402 = vunpack.c.h.b16 %v326
  %v403 = vunpack.c.l.b16 %v327
  %v404 = vunpack.c.h.b16 %v327
  %v405 = vunpack.c.l.b16 %v328
  %v406 = vunpack.c.h.b16 %v328
  %v407 = vunpack.c.l.b16 %v329
  %v408 = vunpack.c.h.b16 %v329
  %v409 = vunpack.c.l.b16 %v330
  %v410 = vunpack.c.h.b16 %v330
  %v411 = vunpack.c.l.b16 %v331
  %v412 = vunpack.c.h.b16 %v331
  %v413 = vunpack.c.l.b16 %v332
  %v414 = vunpack.c.h.b16 %v332
  %v415 = vunpack.c.l.b16 %v333
  %v416 = vunpack.c.h.b16 %v333
  %v417 = vunpack.c.l.b16 %v334
  %v418 = vunpack.c.h.b16 %v334
  %v419 = vunpack.c.l.b16 %v335
  %v420 = vunpack.c.h.b16 %v335
  %v421 = vunpack.c.l.b16 %v336
  %v422 = vunpack.c.h.b16 %v336
  %v423 = vunpack.c.l.b16 %v337
  %v424 = vunpack.c.h.b16 %v337
  %v425 = vunpack.c.l.b16 %v338
  %v426 = vunpack.c.h.b16 %v338
  %v427 = vunpack.c.l.b16 %v339
  %v428 = vunpack.c.h.b16 %v339
  %v429 = vunpack.c.l.b16 %v340
  %v430 = vunpack.c.h.b16 %v340
  %v431 = vunpack.c.l.b16 %v341
  %v432 = vunpack.c.h.b16 %v341
  %v433 = vunpack.c.l.b16 %v342
  %v434 = vunpack.c.h.b16 %v342
  %v435 = vunpack.c.l.b16 %v343
  %v436 = vunpack.c.h.b16 %v343
  %v437 = vunpack.c.l.b16 %v344
  %v438 = vunpack.c.h.b16 %v344
  %v439 = vunpack.c.l.b16 %v345
  %v440 = vunpack.c.h.b16 %v345
  %v441 = vunpack.c.l.b16 %v346
  %v442 = vunpack.c.h.b16 %v346
  %v443 = vunpack.c.l.b16 %v347
  %v444 = vunpack.c.h.b16 %v347
  %v445 = vunpack.c.l.b16 %v348
  %v446 = vunpack.c.h.b16 %v348
  %v447 = vunpack.c.l.b16 %v349
  %v448 = vunpack.c.h.b16 %v349
  %v449 = vunpack.c.l.b16 %v350
  %v450 = vunpack.c.h.b16 %v350
  %v451 = vunpack.c.l.b16 %v351
  %v452 = vunpack.c.h.b16 %v351
  %v453 = vunpack.c.l.b16 %v352
  %v454 = vunpack.c.h.b16 %v352
  %v455 = vunpack.c.l.b16 %v353
  %v456 = vunpack.c.h.b16 %v353
  %v457 = vpack.c.b16 %v397, %v393
  %v458 = vpack.c.b16 %v398, %v394
  %v459 = vpack.c.b16 %v399, %v395
  %v460 = vpack.c.b16 %v400, %v396
  %v461 = vpack.c.b16 %v405, %v401
  %v462 = vpack.c.b16 %v406, %v402
  %v463 = vpack.c.b16 %v407, %v403
  %v464 = vpack.c.b16 %v408, %v404
  %v465 = vpack.c.b16 %v413, %v409
  %v466 = vpack.c.b16 %v414, %v410
  %v467 = vpack.c.b16 %v415, %v411
  %v468 = vpack.c.b16 %v416, %v412
  %v469 = vpack.c.b16 %v421, %v417
  %v470 = vpack.c.b16 %v422, %v418
  %v471 = vpack.c.b16 %v423, %v419
  %v472 = vpack.c.b16 %v424, %v420
  %v473 = vpack.c.b16 %v429, %v425
  %v474 = vpack.c.b16 %v430, %v426
  %v475 = vpack.c.b16 %v431, %v427
  %v476 = vpack.c.b16 %v432, %v428
  %v477 = vpack.c.b16 %v437, %v433
  %v478 = vpack.c.b16 %v438, %v434
  %v479 = vpack.c.b16 %v439, %v435
  %v480 = vpack.c.b16 %v440, %v436
  %v481 = vpack.c.b16 %v445, %v441
  %v482 = vpack.c.b16 %v446, %v442
  %v483 = vpack.c.b16 %v447, %v443
  %v484 = vpack.c.b16 %v448, %v444
  %v485 = vpack.c.b16 %v453, %v449
  %v486 = vpack.c.b16 %v454, %v450
  %v487 = vpack.c.b16 %v455, %v451
  %v488 = vpack.c.b16 %v456, %v452
  %521 = vmatprep.subr.bf16.mxu0 %v458
  %522 = vmatpush1.bf16.msra.mxu0 %v457
  %523 = vmatprep.subr.bf16.mxu0 %v462
  %524 = vmatpush1.bf16.msra.mxu0 %v461
  %525 = vmatprep.subr.bf16.mxu0 %v466
  %526 = vmatpush1.bf16.msra.mxu0 %v465
  %527 = vmatprep.subr.bf16.mxu0 %v470
  %528 = vmatpush1.bf16.msra.mxu0 %v469
  %529 = vmatprep.subr.bf16.mxu0 %v474
  %530 = vmatpush1.bf16.msra.mxu0 %v473
  %531 = vmatprep.subr.bf16.mxu0 %v478
  %532 = vmatpush1.bf16.msra.mxu0 %v477
  %533 = vmatprep.subr.bf16.mxu0 %v482
  %534 = vmatpush1.bf16.msra.mxu0 %v481
  %535 = vmatprep.subr.bf16.mxu0 %v486
  %536 = vmatpush1.bf16.msra.mxu0 %v485
  %537 = vmatprep.subr.bf16.mxu0 0
  %538 = vmatpush1.bf16.msra.mxu0 0
  %539 = vmatprep.subr.bf16.mxu0 0
  %540 = vmatpush1.bf16.msra.mxu0 0
  %541 = vmatprep.subr.bf16.mxu0 0
  %542 = vmatpush1.bf16.msra.mxu0 0
  %543 = vmatprep.subr.bf16.mxu0 0
  %544 = vmatpush1.bf16.msra.mxu0 0
  %545 = vmatprep.subr.bf16.mxu0 0
  %546 = vmatpush1.bf16.msra.mxu0 0
  %547 = vmatprep.subr.bf16.mxu0 0
  %548 = vmatpush1.bf16.msra.mxu0 0
  %549 = vmatprep.subr.bf16.mxu0 0
  %550 = vmatpush1.bf16.msra.mxu0 0
  %551 = vmatprep.subr.bf16.mxu0 0
  %552 = vmatpush1.bf16.msra.mxu0 0
  %553 = vmatprep.mubr.bf16.mxu0 0
  %554 = vmatmul.mubr.bf16.gmra.mrb[0].mxu0 0
  %v555 = vpop.f32.mrb[0].mxu0
  %v556 = vadd.f32 0.0, %v555
  %v557 = vpop.f32.mrb[0].mxu0
  %v558 = vadd.f32 0.0, %v557
  %v559 = vpop.f32.mrb[0].mxu0
  %v560 = vpop.f32.mrb[0].mxu0
  %561 = vdwg.mxu0
  %562 = vmatprep.subr.bf16.mxu0 %v460
  %563 = vmatpush1.bf16.msra.mxu0 %v459
  %564 = vmatprep.subr.bf16.mxu0 %v464
  %565 = vmatpush1.bf16.msra.mxu0 %v463
  %566 = vmatprep.subr.bf16.mxu0 %v468
  %567 = vmatpush1.bf16.msra.mxu0 %v467
  %568 = vmatprep.subr.bf16.mxu0 %v472
  %569 = vmatpush1.bf16.msra.mxu0 %v471
  %570 = vmatprep.subr.bf16.mxu0 %v476
  %571 = vmatpush1.bf16.msra.mxu0 %v475
  %572 = vmatprep.subr.bf16.mxu0 %v480
  %573 = vmatpush1.bf16.msra.mxu0 %v479
  %574 = vmatprep.subr.bf16.mxu0 %v484
  %575 = vmatpush1.bf16.msra.mxu0 %v483
  %576 = vmatprep.subr.bf16.mxu0 %v488
  %577 = vmatpush1.bf16.msra.mxu0 %v487
  %578 = vmatprep.subr.bf16.mxu0 0
  %579 = vmatpush1.bf16.msra.mxu0 0
  %580 = vmatprep.subr.bf16.mxu0 0
  %581 = vmatpush1.bf16.msra.mxu0 0
  %582 = vmatprep.subr.bf16.mxu0 0
  %583 = vmatpush1.bf16.msra.mxu0 0
  %584 = vmatprep.subr.bf16.mxu0 0
  %585 = vmatpush1.bf16.msra.mxu0 0
  %586 = vmatprep.subr.bf16.mxu0 0
  %587 = vmatpush1.bf16.msra.mxu0 0
  %588 = vmatprep.subr.bf16.mxu0 0
  %589 = vmatpush1.bf16.msra.mxu0 0
  %590 = vmatprep.subr.bf16.mxu0 0
  %591 = vmatpush1.bf16.msra.mxu0 0
  %592 = vmatprep.subr.bf16.mxu0 0
  %593 = vmatpush1.bf16.msra.mxu0 0
  %594 = vmatprep.mubr.bf16.mxu0 0
  %595 = vmatmul.mubr.bf16.gmra.mrb[0].mxu0 0
  %v596 = vpop.f32.mrb[0].mxu0
  %v597 = vadd.f32 0.0, %v596
  %v598 = vpop.f32.mrb[0].mxu0
  %v599 = vadd.f32 0.0, %v598
  %v600 = vpop.f32.mrb[0].mxu0
  %v601 = vpop.f32.mrb[0].mxu0
  %602 = vdwg.mxu0
  %v603 = vadd.f32 %v357, %v556
  %v604 = vadd.f32 %v358, %v558
  %v605 = vadd.f32 %v359, %v597
  %v606 = vadd.f32 %v360, %v599
  %v607 = vmul.f32 %v603, 0.5
  %v608 = vtanh.pop %v607
  %v609 = vmul.f32 %v608, 0.5
  %v610 = vadd.f32 %v609, 0.5
  %v611 = vmul.f32 %v604, 0.5
  %v612 = vtanh.pop %v611
  %v613 = vmul.f32 %v612, 0.5
  %v614 = vadd.f32 %v613, 0.5
  %v615 = vtanh.pop %v605
  %v616 = vmul.f32 %v606, 0.5
  %v617 = vtanh.pop %v616
  %v618 = vmul.f32 %v617, 0.5
  %v619 = vadd.f32 %v618, 0.5
  %v620 = vmul.f32 %v614, 0.0
  %v621 = vmul.f32 %v610, %v615
  %v622 = vadd.f32 %v620, %v621
  %v623 = vtanh.pop %v622
  %v624 = vmul.f32 %v619, %v623
  %625 = vst [vmem:[#allocation3] sm:$0xff] %v624
  %s626 = smul.u32 1, 4
  %s627 = smul.addr %s626, 8
  %s628 = scalar_lea.vmem [#allocation2], %s627
  %v629 = vld [vmem:[%s628] sm:$0xff]
  %v630 = vld [vmem:[%s628 + $0x8] sm:$0xff]
  %v631 = vld [vmem:[%s628 + $0x10] sm:$0xff]
  %v632 = vld [vmem:[%s628 + $0x18] sm:$0xff]
  %v633 = vpack.c.bf16 %v624, %v624
  %634 = vmatprep.subr.bf16.mxu0 %v458
  %635 = vmatpush1.bf16.msra.mxu0 %v457
  %636 = vmatprep.subr.bf16.mxu0 %v462
  %637 = vmatpush1.bf16.msra.mxu0 %v461
  %638 = vmatprep.subr.bf16.mxu0 %v466
  %639 = vmatpush1.bf16.msra.mxu0 %v465
  %640 = vmatprep.subr.bf16.mxu0 %v470
  %641 = vmatpush1.bf16.msra.mxu0 %v469
  %642 = vmatprep.subr.bf16.mxu0 %v474
  %643 = vmatpush1.bf16.msra.mxu0 %v473
  %644 = vmatprep.subr.bf16.mxu0 %v478
  %645 = vmatpush1.bf16.msra.mxu0 %v477
  %646 = vmatprep.subr.bf16.mxu0 %v482
  %647 = vmatpush1.bf16.msra.mxu0 %v481
  %648 = vmatprep.subr.bf16.mxu0 %v486
  %649 = vmatpush1.bf16.msra.mxu0 %v485
  %650 = vmatprep.subr.bf16.mxu0 0
  %651 = vmatpush1.bf16.msra.mxu0 0
  %652 = vmatprep.subr.bf16.mxu0 0
  %653 = vmatpush1.bf16.msra.mxu0 0
  %654 = vmatprep.subr.bf16.mxu0 0
  %655 = vmatpush1.bf16.msra.mxu0 0
  %656 = vmatprep.subr.bf16.mxu0 0
  %657 = vmatpush1.bf16.msra.mxu0 0
  %658 = vmatprep.subr.bf16.mxu0 0
  %659 = vmatpush1.bf16.msra.mxu0 0
  %660 = vmatprep.subr.bf16.mxu0 0
  %661 = vmatpush1.bf16.msra.mxu0 0
  %662 = vmatprep.subr.bf16.mxu0 0
  %663 = vmatpush1.bf16.msra.mxu0 0
  %664 = vmatprep.subr.bf16.mxu0 0
  %665 = vmatpush1.bf16.msra.mxu0 0
  %666 = vmatprep.mubr.bf16.mxu0 0
  %667 = vmatmul.mubr.bf16.gmra.mrb[0].mxu0 %v633
  %v668 = vpop.f32.mrb[0].mxu0
  %v669 = vadd.f32 0.0, %v668
  %v670 = vpop.f32.mrb[0].mxu0
  %v671 = vadd.f32 0.0, %v670
  %v672 = vpop.f32.mrb[0].mxu0
  %v673 = vpop.f32.mrb[0].mxu0
  %674 = vdwg.mxu0
  %675 = vmatprep.subr.bf16.mxu0 %v460
  %676 = vmatpush1.bf16.msra.mxu0 %v459
  %677 = vmatprep.subr.bf16.mxu0 %v464
  %678 = vmatpush1.bf16.msra.mxu0 %v463
  %679 = vmatprep.subr.bf16.mxu0 %v468
  %680 = vmatpush1.bf16.msra.mxu0 %v467
  %681 = vmatprep.subr.bf16.mxu0 %v472
  %682 = vmatpush1.bf16.msra.mxu0 %v471
  %683 = vmatprep.subr.bf16.mxu0 %v476
  %684 = vmatpush1.bf16.msra.mxu0 %v475
  %685 = vmatprep.subr.bf16.mxu0 %v480
  %686 = vmatpush1.bf16.msra.mxu0 %v479
  %687 = vmatprep.subr.bf16.mxu0 %v484
  %688 = vmatpush1.bf16.msra.mxu0 %v483
  %689 = vmatprep.subr.bf16.mxu0 %v488
  %690 = vmatpush1.bf16.msra.mxu0 %v487
  %691 = vmatprep.subr.bf16.mxu0 0
  %692 = vmatpush1.bf16.msra.mxu0 0
  %693 = vmatprep.subr.bf16.mxu0 0
  %694 = vmatpush1.bf16.msra.mxu0 0
  %695 = vmatprep.subr.bf16.mxu0 0
  %696 = vmatpush1.bf16.msra.mxu0 0
  %697 = vmatprep.subr.bf16.mxu0 0
  %698 = vmatpush1.bf16.msra.mxu0 0
  %699 = vmatprep.subr.bf16.mxu0 0
  %700 = vmatpush1.bf16.msra.mxu0 0
  %701 = vmatprep.subr.bf16.mxu0 0
  %702 = vmatpush1.bf16.msra.mxu0 0
  %703 = vmatprep.subr.bf16.mxu0 0
  %704 = vmatpush1.bf16.msra.mxu0 0
  %705 = vmatprep.subr.bf16.mxu0 0
  %706 = vmatpush1.bf16.msra.mxu0 0
  %707 = vmatprep.mubr.bf16.mxu0 0
  %708 = vmatmul.mubr.bf16.gmra.mrb[0].mxu0 %v633
  %v709 = vpop.f32.mrb[0].mxu0
  %v710 = vadd.f32 0.0, %v709
  %v711 = vpop.f32.mrb[0].mxu0
  %v712 = vadd.f32 0.0, %v711
  %v713 = vpop.f32.mrb[0].mxu0
  %v714 = vpop.f32.mrb[0].mxu0
  %715 = vdwg.mxu0
  %v716 = vadd.f32 %v629, %v669
  %v717 = vadd.f32 %v630, %v671
  %v718 = vadd.f32 %v631, %v710
  %v719 = vadd.f32 %v632, %v712
  %v720 = vmul.f32 %v716, 0.5
  %v721 = vtanh.pop %v720
  %v722 = vmul.f32 %v721, 0.5
  %v723 = vadd.f32 %v722, 0.5
  %v724 = vmul.f32 %v717, 0.5
  %v725 = vtanh.pop %v724
  %v726 = vmul.f32 %v725, 0.5
  %v727 = vadd.f32 %v726, 0.5
  %v728 = vtanh.pop %v718
  %v729 = vmul.f32 %v719, 0.5
  %v730 = vtanh.pop %v729
  %v731 = vmul.f32 %v730, 0.5
  %v732 = vadd.f32 %v731, 0.5
  %v733 = vmul.f32 %v727, %v622
  %v734 = vmul.f32 %v723, %v728
  %v735 = vadd.f32 %v733, %v734
  %v736 = vtanh.pop %v735
  %v737 = vmul.f32 %v732, %v736
  %s738 = scalar_lea.vmem [#allocation3], 8
  %739 = vst [vmem:[%s738] sm:$0xff] %v737
  %s740 = smul.u32 2, 4
  %s741 = smul.addr %s740, 8
  %s742 = scalar_lea.vmem [#allocation2], %s741
  %v743 = vld [vmem:[%s742] sm:$0xff]
  %v744 = vld [vmem:[%s742 + $0x8] sm:$0xff]
  %v745 = vld [vmem:[%s742 + $0x10] sm:$0xff]
  %v746 = vld [vmem:[%s742 + $0x18] sm:$0xff]
  %v747 = vpack.c.bf16 %v737, %v737
  %748 = vmatprep.subr.bf16.mxu0 %v458
  %749 = vmatpush1.bf16.msra.mxu0 %v457
  %750 = vmatprep.subr.bf16.mxu0 %v462
  %751 = vmatpush1.bf16.msra.mxu0 %v461
  %752 = vmatprep.subr.bf16.mxu0 %v466
  %753 = vmatpush1.bf16.msra.mxu0 %v465
  %754 = vmatprep.subr.bf16.mxu0 %v470
  %755 = vmatpush1.bf16.msra.mxu0 %v469
  %756 = vmatprep.subr.bf16.mxu0 %v474
  %757 = vmatpush1.bf16.msra.mxu0 %v473
  %758 = vmatprep.subr.bf16.mxu0 %v478
  %759 = vmatpush1.bf16.msra.mxu0 %v477
  %760 = vmatprep.subr.bf16.mxu0 %v482
  %761 = vmatpush1.bf16.msra.mxu0 %v481
  %762 = vmatprep.subr.bf16.mxu0 %v486
  %763 = vmatpush1.bf16.msra.mxu0 %v485
  %764 = vmatprep.subr.bf16.mxu0 0
  %765 = vmatpush1.bf16.msra.mxu0 0
  %766 = vmatprep.subr.bf16.mxu0 0
  %767 = vmatpush1.bf16.msra.mxu0 0
  %768 = vmatprep.subr.bf16.mxu0 0
  %769 = vmatpush1.bf16.msra.mxu0 0
  %770 = vmatprep.subr.bf16.mxu0 0
  %771 = vmatpush1.bf16.msra.mxu0 0
  %772 = vmatprep.subr.bf16.mxu0 0
  %773 = vmatpush1.bf16.msra.mxu0 0
  %774 = vmatprep.subr.bf16.mxu0 0
  %775 = vmatpush1.bf16.msra.mxu0 0
  %776 = vmatprep.subr.bf16.mxu0 0
  %777 = vmatpush1.bf16.msra.mxu0 0
  %778 = vmatprep.subr.bf16.mxu0 0
  %779 = vmatpush1.bf16.msra.mxu0 0
  %780 = vmatprep.mubr.bf16.mxu0 0
  %781 = vmatmul.mubr.bf16.gmra.mrb[0].mxu0 %v747
  %v782 = vpop.f32.mrb[0].mxu0
  %v783 = vadd.f32 0.0, %v782
  %v784 = vpop.f32.mrb[0].mxu0
  %v785 = vadd.f32 0.0, %v784
  %v786 = vpop.f32.mrb[0].mxu0
  %v787 = vpop.f32.mrb[0].mxu0
  %788 = vdwg.mxu0
  %789 = vmatprep.subr.bf16.mxu0 %v460
  %790 = vmatpush1.bf16.msra.mxu0 %v459
  %791 = vmatprep.subr.bf16.mxu0 %v464
  %792 = vmatpush1.bf16.msra.mxu0 %v463
  %793 = vmatprep.subr.bf16.mxu0 %v468
  %794 = vmatpush1.bf16.msra.mxu0 %v467
  %795 = vmatprep.subr.bf16.mxu0 %v472
  %796 = vmatpush1.bf16.msra.mxu0 %v471
  %797 = vmatprep.subr.bf16.mxu0 %v476
  %798 = vmatpush1.bf16.msra.mxu0 %v475
  %799 = vmatprep.subr.bf16.mxu0 %v480
  %800 = vmatpush1.bf16.msra.mxu0 %v479
  %801 = vmatprep.subr.bf16.mxu0 %v484
  %802 = vmatpush1.bf16.msra.mxu0 %v483
  %803 = vmatprep.subr.bf16.mxu0 %v488
  %804 = vmatpush1.bf16.msra.mxu0 %v487
  %805 = vmatprep.subr.bf16.mxu0 0
  %806 = vmatpush1.bf16.msra.mxu0 0
  %807 = vmatprep.subr.bf16.mxu0 0
  %808 = vmatpush1.bf16.msra.mxu0 0
  %809 = vmatprep.subr.bf16.mxu0 0
  %810 = vmatpush1.bf16.msra.mxu0 0
  %811 = vmatprep.subr.bf16.mxu0 0
  %812 = vmatpush1.bf16.msra.mxu0 0
  %813 = vmatprep.subr.bf16.mxu0 0
  %814 = vmatpush1.bf16.msra.mxu0 0
  %815 = vmatprep.subr.bf16.mxu0 0
  %816 = vmatpush1.bf16.msra.mxu0 0
  %817 = vmatprep.subr.bf16.mxu0 0
  %818 = vmatpush1.bf16.msra.mxu0 0
  %819 = vmatprep.subr.bf16.mxu0 0
  %820 = vmatpush1.bf16.msra.mxu0 0
  %821 = vmatprep.mubr.bf16.mxu0 0
  %822 = vmatmul.mubr.bf16.gmra.mrb[0].mxu0 %v747
  %v823 = vpop.f32.mrb[0].mxu0
  %v824 = vadd.f32 0.0, %v823
  %v825 = vpop.f32.mrb[0].mxu0
  %v826 = vadd.f32 0.0, %v825
  %v827 = vpop.f32.mrb[0].mxu0
  %v828 = vpop.f32.mrb[0].mxu0
  %829 = vdwg.mxu0
  %v830 = vadd.f32 %v743, %v783
  %v831 = vadd.f32 %v744, %v785
  %v832 = vadd.f32 %v745, %v824
  %v833 = vadd.f32 %v746, %v826
  %v834 = vmul.f32 %v830, 0.5
  %v835 = vtanh.pop %v834
  %v836 = vmul.f32 %v835, 0.5
  %v837 = vadd.f32 %v836, 0.5
  %v838 = vmul.f32 %v831, 0.5
  %v839 = vtanh.pop %v838
  %v840 = vmul.f32 %v839, 0.5
  %v841 = vadd.f32 %v840, 0.5
  %v842 = vtanh.pop %v832
  %v843 = vmul.f32 %v833, 0.5
  %v844 = vtanh.pop %v843
  %v845 = vmul.f32 %v844, 0.5
  %v846 = vadd.f32 %v845, 0.5
  %v847 = vmul.f32 %v841, %v735
  %v848 = vmul.f32 %v837, %v842
  %v849 = vadd.f32 %v847, %v848
  %v850 = vtanh.pop %v849
  %v851 = vmul.f32 %v846, %v850
  %s852 = scalar_lea.vmem [#allocation3], 16
  %853 = vst [vmem:[%s852] sm:$0xff] %v851
  %s854 = smul.u32 3, 4
  %s855 = smul.addr %s854, 8
  %s856 = scalar_lea.vmem [#allocation2], %s855
  %v857 = vld [vmem:[%s856] sm:$0xff]
  %v858 = vld [vmem:[%s856 + $0x8] sm:$0xff]
  %v859 = vld [vmem:[%s856 + $0x10] sm:$0xff]
  %v860 = vld [vmem:[%s856 + $0x18] sm:$0xff]
  %v861 = vpack.c.bf16 %v851, %v851
  %862 = vmatprep.subr.bf16.mxu0 %v458
  %863 = vmatpush1.bf16.msra.mxu0 %v457
  %864 = vmatprep.subr.bf16.mxu0 %v462
  %865 = vmatpush1.bf16.msra.mxu0 %v461
  %866 = vmatprep.subr.bf16.mxu0 %v466
  %867 = vmatpush1.bf16.msra.mxu0 %v465
  %868 = vmatprep.subr.bf16.mxu0 %v470
  %869 = vmatpush1.bf16.msra.mxu0 %v469
  %870 = vmatprep.subr.bf16.mxu0 %v474
  %871 = vmatpush1.bf16.msra.mxu0 %v473
  %872 = vmatprep.subr.bf16.mxu0 %v478
  %873 = vmatpush1.bf16.msra.mxu0 %v477
  %874 = vmatprep.subr.bf16.mxu0 %v482
  %875 = vmatpush1.bf16.msra.mxu0 %v481
  %876 = vmatprep.subr.bf16.mxu0 %v486
  %877 = vmatpush1.bf16.msra.mxu0 %v485
  %878 = vmatprep.subr.bf16.mxu0 0
  %879 = vmatpush1.bf16.msra.mxu0 0
  %880 = vmatprep.subr.bf16.mxu0 0
  %881 = vmatpush1.bf16.msra.mxu0 0
  %882 = vmatprep.subr.bf16.mxu0 0
  %883 = vmatpush1.bf16.msra.mxu0 0
  %884 = vmatprep.subr.bf16.mxu0 0
  %885 = vmatpush1.bf16.msra.mxu0 0
  %886 = vmatprep.subr.bf16.mxu0 0
  %887 = vmatpush1.bf16.msra.mxu0 0
  %888 = vmatprep.subr.bf16.mxu0 0
  %889 = vmatpush1.bf16.msra.mxu0 0
  %890 = vmatprep.subr.bf16.mxu0 0
  %891 = vmatpush1.bf16.msra.mxu0 0
  %892 = vmatprep.subr.bf16.mxu0 0
  %893 = vmatpush1.bf16.msra.mxu0 0
  %894 = vmatprep.mubr.bf16.mxu0 0
  %895 = vmatmul.mubr.bf16.gmra.mrb[0].mxu0 %v861
  %v896 = vpop.f32.mrb[0].mxu0
  %v897 = vadd.f32 0.0, %v896
  %v898 = vpop.f32.mrb[0].mxu0
  %v899 = vadd.f32 0.0, %v898
  %v900 = vpop.f32.mrb[0].mxu0
  %v901 = vpop.f32.mrb[0].mxu0
  %902 = vdwg.mxu0
  %903 = vmatprep.subr.bf16.mxu0 %v460
  %904 = vmatpush1.bf16.msra.mxu0 %v459
  %905 = vmatprep.subr.bf16.mxu0 %v464
  %906 = vmatpush1.bf16.msra.mxu0 %v463
  %907 = vmatprep.subr.bf16.mxu0 %v468
  %908 = vmatpush1.bf16.msra.mxu0 %v467
  %909 = vmatprep.subr.bf16.mxu0 %v472
  %910 = vmatpush1.bf16.msra.mxu0 %v471
  %911 = vmatprep.subr.bf16.mxu0 %v476
  %912 = vmatpush1.bf16.msra.mxu0 %v475
  %913 = vmatprep.subr.bf16.mxu0 %v480
  %914 = vmatpush1.bf16.msra.mxu0 %v479
  %915 = vmatprep.subr.bf16.mxu0 %v484
  %916 = vmatpush1.bf16.msra.mxu0 %v483
  %917 = vmatprep.subr.bf16.mxu0 %v488
  %918 = vmatpush1.bf16.msra.mxu0 %v487
  %919 = vmatprep.subr.bf16.mxu0 0
  %920 = vmatpush1.bf16.msra.mxu0 0
  %921 = vmatprep.subr.bf16.mxu0 0
  %922 = vmatpush1.bf16.msra.mxu0 0
  %923 = vmatprep.subr.bf16.mxu0 0
  %924 = vmatpush1.bf16.msra.mxu0 0
  %925 = vmatprep.subr.bf16.mxu0 0
  %926 = vmatpush1.bf16.msra.mxu0 0
  %927 = vmatprep.subr.bf16.mxu0 0
  %928 = vmatpush1.bf16.msra.mxu0 0
  %929 = vmatprep.subr.bf16.mxu0 0
  %930 = vmatpush1.bf16.msra.mxu0 0
  %931 = vmatprep.subr.bf16.mxu0 0
  %932 = vmatpush1.bf16.msra.mxu0 0
  %933 = vmatprep.subr.bf16.mxu0 0
  %934 = vmatpush1.bf16.msra.mxu0 0
  %935 = vmatprep.mubr.bf16.mxu0 0
  %936 = vmatmul.mubr.bf16.gmra.mrb[0].mxu0 %v861
  %v937 = vpop.f32.mrb[0].mxu0
  %v938 = vadd.f32 0.0, %v937
  %v939 = vpop.f32.mrb[0].mxu0
  %v940 = vadd.f32 0.0, %v939
  %v941 = vpop.f32.mrb[0].mxu0
  %v942 = vpop.f32.mrb[0].mxu0
  %943 = vdwg.mxu0
  %v944 = vadd.f32 %v857, %v897
  %v945 = vadd.f32 %v858, %v899
  %v946 = vadd.f32 %v859, %v938
  %v947 = vadd.f32 %v860, %v940
  %v948 = vmul.f32 %v944, 0.5
  %v949 = vtanh.pop %v948
  %v950 = vmul.f32 %v949, 0.5
  %v951 = vadd.f32 %v950, 0.5
  %v952 = vmul.f32 %v945, 0.5
  %v953 = vtanh.pop %v952
  %v954 = vmul.f32 %v953, 0.5
  %v955 = vadd.f32 %v954, 0.5
  %v956 = vtanh.pop %v946
  %v957 = vmul.f32 %v947, 0.5
  %v958 = vtanh.pop %v957
  %v959 = vmul.f32 %v958, 0.5
  %v960 = vadd.f32 %v959, 0.5
  %v961 = vmul.f32 %v955, %v849
  %v962 = vmul.f32 %v951, %v956
  %v963 = vadd.f32 %v961, %v962
  %v964 = vtanh.pop %v963
  %v965 = vmul.f32 %v960, %v964
  %s966 = scalar_lea.vmem [#allocation3], 24
  %967 = vst [vmem:[%s966] sm:$0xff] %v965
  %s968 = smul.u32 4, 4
  %s969 = smul.addr %s968, 8
  %s970 = scalar_lea.vmem [#allocation2], %s969
  %v971 = vld [vmem:[%s970] sm:$0xff]
  %v972 = vld [vmem:[%s970 + $0x8] sm:$0xff]
  %v973 = vld [vmem:[%s970 + $0x10] sm:$0xff]
  %v974 = vld [vmem:[%s970 + $0x18] sm:$0xff]
  %v975 = vpack.c.bf16 %v965, %v965
  %976 = vmatprep.subr.bf16.mxu0 %v458
  %977 = vmatpush1.bf16.msra.mxu0 %v457
  %978 = vmatprep.subr.bf16.mxu0 %v462
  %979 = vmatpush1.bf16.msra.mxu0 %v461
  %980 = vmatprep.subr.bf16.mxu0 %v466
  %981 = vmatpush1.bf16.msra.mxu0 %v465
  %982 = vmatprep.subr.bf16.mxu0 %v470
  %983 = vmatpush1.bf16.msra.mxu0 %v469
  %984 = vmatprep.subr.bf16.mxu0 %v474
  %985 = vmatpush1.bf16.msra.mxu0 %v473
  %986 = vmatprep.subr.bf16.mxu0 %v478
  %987 = vmatpush1.bf16.msra.mxu0 %v477
  %988 = vmatprep.subr.bf16.mxu0 %v482
  %989 = vmatpush1.bf16.msra.mxu0 %v481
  %990 = vmatprep.subr.bf16.mxu0 %v486
  %991 = vmatpush1.bf16.msra.mxu0 %v485
  %992 = vmatprep.subr.bf16.mxu0 0
  %993 = vmatpush1.bf16.msra.mxu0 0
  %994 = vmatprep.subr.bf16.mxu0 0
  %995 = vmatpush1.bf16.msra.mxu0 0
  %996 = vmatprep.subr.bf16.mxu0 0
  %997 = vmatpush1.bf16.msra.mxu0 0
  %998 = vmatprep.subr.bf16.mxu0 0
  %999 = vmatpush1.bf16.msra.mxu0 0
  %1000 = vmatprep.subr.bf16.mxu0 0
  %1001 = vmatpush1.bf16.msra.mxu0 0
  %1002 = vmatprep.subr.bf16.mxu0 0
  %1003 = vmatpush1.bf16.msra.mxu0 0
  %1004 = vmatprep.subr.bf16.mxu0 0
  %1005 = vmatpush1.bf16.msra.mxu0 0
  %1006 = vmatprep.subr.bf16.mxu0 0
  %1007 = vmatpush1.bf16.msra.mxu0 0
  %1008 = vmatprep.mubr.bf16.mxu0 0
  %1009 = vmatmul.mubr.bf16.gmra.mrb[0].mxu0 %v975
  %v1010 = vpop.f32.mrb[0].mxu0
  %v1011 = vadd.f32 0.0, %v1010
  %v1012 = vpop.f32.mrb[0].mxu0
  %v1013 = vadd.f32 0.0, %v1012
  %v1014 = vpop.f32.mrb[0].mxu0
  %v1015 = vpop.f32.mrb[0].mxu0
  %1016 = vdwg.mxu0
  %1017 = vmatprep.subr.bf16.mxu0 %v460
  %1018 = vmatpush1.bf16.msra.mxu0 %v459
  %1019 = vmatprep.subr.bf16.mxu0 %v464
  %1020 = vmatpush1.bf16.msra.mxu0 %v463
  %1021 = vmatprep.subr.bf16.mxu0 %v468
  %1022 = vmatpush1.bf16.msra.mxu0 %v467
  %1023 = vmatprep.subr.bf16.mxu0 %v472
  %1024 = vmatpush1.bf16.msra.mxu0 %v471
  %1025 = vmatprep.subr.bf16.mxu0 %v476
  %1026 = vmatpush1.bf16.msra.mxu0 %v475
  %1027 = vmatprep.subr.bf16.mxu0 %v480
  %1028 = vmatpush1.bf16.msra.mxu0 %v479
  %1029 = vmatprep.subr.bf16.mxu0 %v484
  %1030 = vmatpush1.bf16.msra.mxu0 %v483
  %1031 = vmatprep.subr.bf16.mxu0 %v488
  %1032 = vmatpush1.bf16.msra.mxu0 %v487
  %1033 = vmatprep.subr.bf16.mxu0 0
  %1034 = vmatpush1.bf16.msra.mxu0 0
  %1035 = vmatprep.subr.bf16.mxu0 0
  %1036 = vmatpush1.bf16.msra.mxu0 0
  %1037 = vmatprep.subr.bf16.mxu0 0
  %1038 = vmatpush1.bf16.msra.mxu0 0
  %1039 = vmatprep.subr.bf16.mxu0 0
  %1040 = vmatpush1.bf16.msra.mxu0 0
  %1041 = vmatprep.subr.bf16.mxu0 0
  %1042 = vmatpush1.bf16.msra.mxu0 0
  %1043 = vmatprep.subr.bf16.mxu0 0
  %1044 = vmatpush1.bf16.msra.mxu0 0
  %1045 = vmatprep.subr.bf16.mxu0 0
  %1046 = vmatpush1.bf16.msra.mxu0 0
  %1047 = vmatprep.subr.bf16.mxu0 0
  %1048 = vmatpush1.bf16.msra.mxu0 0
  %1049 = vmatprep.mubr.bf16.mxu0 0
  %1050 = vmatmul.mubr.bf16.gmra.mrb[0].mxu0 %v975
  %v1051 = vpop.f32.mrb[0].mxu0
  %v1052 = vadd.f32 0.0, %v1051
  %v1053 = vpop.f32.mrb[0].mxu0
  %v1054 = vadd.f32 0.0, %v1053
  %v1055 = vpop.f32.mrb[0].mxu0
  %v1056 = vpop.f32.mrb[0].mxu0
  %1057 = vdwg.mxu0
  %v1058 = vadd.f32 %v971, %v1011
  %v1059 = vadd.f32 %v972, %v1013
  %v1060 = vadd.f32 %v973, %v1052
  %v1061 = vadd.f32 %v974, %v1054
  %v1062 = vmul.f32 %v1058, 0.5
  %v1063 = vtanh.pop %v1062
  %v1064 = vmul.f32 %v1063, 0.5
  %v1065 = vadd.f32 %v1064, 0.5
  %v1066 = vmul.f32 %v1059, 0.5
  %v1067 = vtanh.pop %v1066
  %v1068 = vmul.f32 %v1067, 0.5
  %v1069 = vadd.f32 %v1068, 0.5
  %v1070 = vtanh.pop %v1060
  %v1071 = vmul.f32 %v1061, 0.5
  %v1072 = vtanh.pop %v1071
  %v1073 = vmul.f32 %v1072, 0.5
  %v1074 = vadd.f32 %v1073, 0.5
  %v1075 = vmul.f32 %v1069, %v963
  %v1076 = vmul.f32 %v1065, %v1070
  %v1077 = vadd.f32 %v1075, %v1076
  %v1078 = vtanh.pop %v1077
  %v1079 = vmul.f32 %v1074, %v1078
  %s1080 = scalar_lea.vmem [#allocation3], 32
  %1081 = vst [vmem:[%s1080] sm:$0xff] %v1079
  %s1082 = smul.u32 5, 4
  %s1083 = smul.addr %s1082, 8
  %s1084 = scalar_lea.vmem [#allocation2], %s1083
  %v1085 = vld [vmem:[%s1084] sm:$0xff]
  %v1086 = vld [vmem:[%s1084 + $0x8] sm:$0xff]
  %v1087 = vld [vmem:[%s1084 + $0x10] sm:$0xff]
  %v1088 = vld [vmem:[%s1084 + $0x18] sm:$0xff]
  %v1089 = vpack.c.bf16 %v1079, %v1079
  %1090 = vmatprep.subr.bf16.mxu0 %v458
  %1091 = vmatpush1.bf16.msra.mxu0 %v457
  %1092 = vmatprep.subr.bf16.mxu0 %v462
  %1093 = vmatpush1.bf16.msra.mxu0 %v461
  %1094 = vmatprep.subr.bf16.mxu0 %v466
  %1095 = vmatpush1.bf16.msra.mxu0 %v465
  %1096 = vmatprep.subr.bf16.mxu0 %v470
  %1097 = vmatpush1.bf16.msra.mxu0 %v469
  %1098 = vmatprep.subr.bf16.mxu0 %v474
  %1099 = vmatpush1.bf16.msra.mxu0 %v473
  %1100 = vmatprep.subr.bf16.mxu0 %v478
  %1101 = vmatpush1.bf16.msra.mxu0 %v477
  %1102 = vmatprep.subr.bf16.mxu0 %v482
  %1103 = vmatpush1.bf16.msra.mxu0 %v481
  %1104 = vmatprep.subr.bf16.mxu0 %v486
  %1105 = vmatpush1.bf16.msra.mxu0 %v485
  %1106 = vmatprep.subr.bf16.mxu0 0
  %1107 = vmatpush1.bf16.msra.mxu0 0
  %1108 = vmatprep.subr.bf16.mxu0 0
  %1109 = vmatpush1.bf16.msra.mxu0 0
  %1110 = vmatprep.subr.bf16.mxu0 0
  %1111 = vmatpush1.bf16.msra.mxu0 0
  %1112 = vmatprep.subr.bf16.mxu0 0
  %1113 = vmatpush1.bf16.msra.mxu0 0
  %1114 = vmatprep.subr.bf16.mxu0 0
  %1115 = vmatpush1.bf16.msra.mxu0 0
  %1116 = vmatprep.subr.bf16.mxu0 0
  %1117 = vmatpush1.bf16.msra.mxu0 0
  %1118 = vmatprep.subr.bf16.mxu0 0
  %1119 = vmatpush1.bf16.msra.mxu0 0
  %1120 = vmatprep.subr.bf16.mxu0 0
  %1121 = vmatpush1.bf16.msra.mxu0 0
  %1122 = vmatprep.mubr.bf16.mxu0 0
  %1123 = vmatmul.mubr.bf16.gmra.mrb[0].mxu0 %v1089
  %v1124 = vpop.f32.mrb[0].mxu0
  %v1125 = vadd.f32 0.0, %v1124
  %v1126 = vpop.f32.mrb[0].mxu0
  %v1127 = vadd.f32 0.0, %v1126
  %v1128 = vpop.f32.mrb[0].mxu0
  %v1129 = vpop.f32.mrb[0].mxu0
  %1130 = vdwg.mxu0
  %1131 = vmatprep.subr.bf16.mxu0 %v460
  %1132 = vmatpush1.bf16.msra.mxu0 %v459
  %1133 = vmatprep.subr.bf16.mxu0 %v464
  %1134 = vmatpush1.bf16.msra.mxu0 %v463
  %1135 = vmatprep.subr.bf16.mxu0 %v468
  %1136 = vmatpush1.bf16.msra.mxu0 %v467
  %1137 = vmatprep.subr.bf16.mxu0 %v472
  %1138 = vmatpush1.bf16.msra.mxu0 %v471
  %1139 = vmatprep.subr.bf16.mxu0 %v476
  %1140 = vmatpush1.bf16.msra.mxu0 %v475
  %1141 = vmatprep.subr.bf16.mxu0 %v480
  %1142 = vmatpush1.bf16.msra.mxu0 %v479
  %1143 = vmatprep.subr.bf16.mxu0 %v484
  %1144 = vmatpush1.bf16.msra.mxu0 %v483
  %1145 = vmatprep.subr.bf16.mxu0 %v488
  %1146 = vmatpush1.bf16.msra.mxu0 %v487
  %1147 = vmatprep.subr.bf16.mxu0 0
  %1148 = vmatpush1.bf16.msra.mxu0 0
  %1149 = vmatprep.subr.bf16.mxu0 0
  %1150 = vmatpush1.bf16.msra.mxu0 0
  %1151 = vmatprep.subr.bf16.mxu0 0
  %1152 = vmatpush1.bf16.msra.mxu0 0
  %1153 = vmatprep.subr.bf16.mxu0 0
  %1154 = vmatpush1.bf16.msra.mxu0 0
  %1155 = vmatprep.subr.bf16.mxu0 0
  %1156 = vmatpush1.bf16.msra.mxu0 0
  %1157 = vmatprep.subr.bf16.mxu0 0
  %1158 = vmatpush1.bf16.msra.mxu0 0
  %1159 = vmatprep.subr.bf16.mxu0 0
  %1160 = vmatpush1.bf16.msra.mxu0 0
  %1161 = vmatprep.subr.bf16.mxu0 0
  %1162 = vmatpush1.bf16.msra.mxu0 0
  %1163 = vmatprep.mubr.bf16.mxu0 0
  %1164 = vmatmul.mubr.bf16.gmra.mrb[0].mxu0 %v1089
  %v1165 = vpop.f32.mrb[0].mxu0
  %v1166 = vadd.f32 0.0, %v1165
  %v1167 = vpop.f32.mrb[0].mxu0
  %v1168 = vadd.f32 0.0, %v1167
  %v1169 = vpop.f32.mrb[0].mxu0
  %v1170 = vpop.f32.mrb[0].mxu0
  %1171 = vdwg.mxu0
  %v1172 = vadd.f32 %v1085, %v1125
  %v1173 = vadd.f32 %v1086, %v1127
  %v1174 = vadd.f32 %v1087, %v1166
  %v1175 = vadd.f32 %v1088, %v1168
  %v1176 = vmul.f32 %v1172, 0.5
  %v1177 = vtanh.pop %v1176
  %v1178 = vmul.f32 %v1177, 0.5
  %v1179 = vadd.f32 %v1178, 0.5
  %v1180 = vmul.f32 %v1173, 0.5
  %v1181 = vtanh.pop %v1180
  %v1182 = vmul.f32 %v1181, 0.5
  %v1183 = vadd.f32 %v1182, 0.5
  %v1184 = vtanh.pop %v1174
  %v1185 = vmul.f32 %v1175, 0.5
  %v1186 = vtanh.pop %v1185
  %v1187 = vmul.f32 %v1186, 0.5
  %v1188 = vadd.f32 %v1187, 0.5
  %v1189 = vmul.f32 %v1183, %v1077
  %v1190 = vmul.f32 %v1179, %v1184
  %v1191 = vadd.f32 %v1189, %v1190
  %v1192 = vtanh.pop %v1191
  %v1193 = vmul.f32 %v1188, %v1192
  %s1194 = scalar_lea.vmem [#allocation3], 40
  %1195 = vst [vmem:[%s1194] sm:$0xff] %v1193
  %s1196 = smul.u32 6, 4
  %s1197 = smul.addr %s1196, 8
  %s1198 = scalar_lea.vmem [#allocation2], %s1197
  %v1199 = vld [vmem:[%s1198] sm:$0xff]
  %v1200 = vld [vmem:[%s1198 + $0x8] sm:$0xff]
  %v1201 = vld [vmem:[%s1198 + $0x10] sm:$0xff]
  %v1202 = vld [vmem:[%s1198 + $0x18] sm:$0xff]
  %v1203 = vpack.c.bf16 %v1193, %v1193
  %1204 = vmatprep.subr.bf16.mxu0 %v458
  %1205 = vmatpush1.bf16.msra.mxu0 %v457
  %1206 = vmatprep.subr.bf16.mxu0 %v462
  %1207 = vmatpush1.bf16.msra.mxu0 %v461
  %1208 = vmatprep.subr.bf16.mxu0 %v466
  %1209 = vmatpush1.bf16.msra.mxu0 %v465
  %1210 = vmatprep.subr.bf16.mxu0 %v470
  %1211 = vmatpush1.bf16.msra.mxu0 %v469
  %1212 = vmatprep.subr.bf16.mxu0 %v474
  %1213 = vmatpush1.bf16.msra.mxu0 %v473
  %1214 = vmatprep.subr.bf16.mxu0 %v478
  %1215 = vmatpush1.bf16.msra.mxu0 %v477
  %1216 = vmatprep.subr.bf16.mxu0 %v482
  %1217 = vmatpush1.bf16.msra.mxu0 %v481
  %1218 = vmatprep.subr.bf16.mxu0 %v486
  %1219 = vmatpush1.bf16.msra.mxu0 %v485
  %1220 = vmatprep.subr.bf16.mxu0 0
  %1221 = vmatpush1.bf16.msra.mxu0 0
  %1222 = vmatprep.subr.bf16.mxu0 0
  %1223 = vmatpush1.bf16.msra.mxu0 0
  %1224 = vmatprep.subr.bf16.mxu0 0
  %1225 = vmatpush1.bf16.msra.mxu0 0
  %1226 = vmatprep.subr.bf16.mxu0 0
  %1227 = vmatpush1.bf16.msra.mxu0 0
  %1228 = vmatprep.subr.bf16.mxu0 0
  %1229 = vmatpush1.bf16.msra.mxu0 0
  %1230 = vmatprep.subr.bf16.mxu0 0
  %1231 = vmatpush1.bf16.msra.mxu0 0
  %1232 = vmatprep.subr.bf16.mxu0 0
  %1233 = vmatpush1.bf16.msra.mxu0 0
  %1234 = vmatprep.subr.bf16.mxu0 0
  %1235 = vmatpush1.bf16.msra.mxu0 0
  %1236 = vmatprep.mubr.bf16.mxu0 0
  %1237 = vmatmul.mubr.bf16.gmra.mrb[0].mxu0 %v1203
  %v1238 = vpop.f32.mrb[0].mxu0
  %v1239 = vadd.f32 0.0, %v1238
  %v1240 = vpop.f32.mrb[0].mxu0
  %v1241 = vadd.f32 0.0, %v1240
  %v1242 = vpop.f32.mrb[0].mxu0
  %v1243 = vpop.f32.mrb[0].mxu0
  %1244 = vdwg.mxu0
  %1245 = vmatprep.subr.bf16.mxu0 %v460
  %1246 = vmatpush1.bf16.msra.mxu0 %v459
  %1247 = vmatprep.subr.bf16.mxu0 %v464
  %1248 = vmatpush1.bf16.msra.mxu0 %v463
  %1249 = vmatprep.subr.bf16.mxu0 %v468
  %1250 = vmatpush1.bf16.msra.mxu0 %v467
  %1251 = vmatprep.subr.bf16.mxu0 %v472
  %1252 = vmatpush1.bf16.msra.mxu0 %v471
  %1253 = vmatprep.subr.bf16.mxu0 %v476
  %1254 = vmatpush1.bf16.msra.mxu0 %v475
  %1255 = vmatprep.subr.bf16.mxu0 %v480
  %1256 = vmatpush1.bf16.msra.mxu0 %v479
  %1257 = vmatprep.subr.bf16.mxu0 %v484
  %1258 = vmatpush1.bf16.msra.mxu0 %v483
  %1259 = vmatprep.subr.bf16.mxu0 %v488
  %1260 = vmatpush1.bf16.msra.mxu0 %v487
  %1261 = vmatprep.subr.bf16.mxu0 0
  %1262 = vmatpush1.bf16.msra.mxu0 0
  %1263 = vmatprep.subr.bf16.mxu0 0
  %1264 = vmatpush1.bf16.msra.mxu0 0
  %1265 = vmatprep.subr.bf16.mxu0 0
  %1266 = vmatpush1.bf16.msra.mxu0 0
  %1267 = vmatprep.subr.bf16.mxu0 0
  %1268 = vmatpush1.bf16.msra.mxu0 0
  %1269 = vmatprep.subr.bf16.mxu0 0
  %1270 = vmatpush1.bf16.msra.mxu0 0
  %1271 = vmatprep.subr.bf16.mxu0 0
  %1272 = vmatpush1.bf16.msra.mxu0 0
  %1273 = vmatprep.subr.bf16.mxu0 0
  %1274 = vmatpush1.bf16.msra.mxu0 0
  %1275 = vmatprep.subr.bf16.mxu0 0
  %1276 = vmatpush1.bf16.msra.mxu0 0
  %1277 = vmatprep.mubr.bf16.mxu0 0
  %1278 = vmatmul.mubr.bf16.gmra.mrb[0].mxu0 %v1203
  %v1279 = vpop.f32.mrb[0].mxu0
  %v1280 = vadd.f32 0.0, %v1279
  %v1281 = vpop.f32.mrb[0].mxu0
  %v1282 = vadd.f32 0.0, %v1281
  %v1283 = vpop.f32.mrb[0].mxu0
  %v1284 = vpop.f32.mrb[0].mxu0
  %1285 = vdwg.mxu0
  %v1286 = vadd.f32 %v1199, %v1239
  %v1287 = vadd.f32 %v1200, %v1241
  %v1288 = vadd.f32 %v1201, %v1280
  %v1289 = vadd.f32 %v1202, %v1282
  %v1290 = vmul.f32 %v1286, 0.5
  %v1291 = vtanh.pop %v1290
  %v1292 = vmul.f32 %v1291, 0.5
  %v1293 = vadd.f32 %v1292, 0.5
  %v1294 = vmul.f32 %v1287, 0.5
  %v1295 = vtanh.pop %v1294
  %v1296 = vmul.f32 %v1295, 0.5
  %v1297 = vadd.f32 %v1296, 0.5
  %v1298 = vtanh.pop %v1288
  %v1299 = vmul.f32 %v1289, 0.5
  %v1300 = vtanh.pop %v1299
  %v1301 = vmul.f32 %v1300, 0.5
  %v1302 = vadd.f32 %v1301, 0.5
  %v1303 = vmul.f32 %v1297, %v1191
  %v1304 = vmul.f32 %v1293, %v1298
  %v1305 = vadd.f32 %v1303, %v1304
  %v1306 = vtanh.pop %v1305
  %v1307 = vmul.f32 %v1302, %v1306
  %s1308 = scalar_lea.vmem [#allocation3], 48
  %1309 = vst [vmem:[%s1308] sm:$0xff] %v1307
  %s1310 = smul.u32 7, 4
  %s1311 = smul.addr %s1310, 8
  %s1312 = scalar_lea.vmem [#allocation2], %s1311
  %v1313 = vld [vmem:[%s1312] sm:$0xff]
  %v1314 = vld [vmem:[%s1312 + $0x8] sm:$0xff]
  %v1315 = vld [vmem:[%s1312 + $0x10] sm:$0xff]
  %v1316 = vld [vmem:[%s1312 + $0x18] sm:$0xff]
  %v1317 = vpack.c.bf16 %v1307, %v1307
  %1318 = vmatprep.subr.bf16.mxu0 %v458
  %1319 = vmatpush1.bf16.msra.mxu0 %v457
  %1320 = vmatprep.subr.bf16.mxu0 %v462
  %1321 = vmatpush1.bf16.msra.mxu0 %v461
  %1322 = vmatprep.subr.bf16.mxu0 %v466
  %1323 = vmatpush1.bf16.msra.mxu0 %v465
  %1324 = vmatprep.subr.bf16.mxu0 %v470
  %1325 = vmatpush1.bf16.msra.mxu0 %v469
  %1326 = vmatprep.subr.bf16.mxu0 %v474
  %1327 = vmatpush1.bf16.msra.mxu0 %v473
  %1328 = vmatprep.subr.bf16.mxu0 %v478
  %1329 = vmatpush1.bf16.msra.mxu0 %v477
  %1330 = vmatprep.subr.bf16.mxu0 %v482
  %1331 = vmatpush1.bf16.msra.mxu0 %v481
  %1332 = vmatprep.subr.bf16.mxu0 %v486
  %1333 = vmatpush1.bf16.msra.mxu0 %v485
  %1334 = vmatprep.subr.bf16.mxu0 0
  %1335 = vmatpush1.bf16.msra.mxu0 0
  %1336 = vmatprep.subr.bf16.mxu0 0
  %1337 = vmatpush1.bf16.msra.mxu0 0
  %1338 = vmatprep.subr.bf16.mxu0 0
  %1339 = vmatpush1.bf16.msra.mxu0 0
  %1340 = vmatprep.subr.bf16.mxu0 0
  %1341 = vmatpush1.bf16.msra.mxu0 0
  %1342 = vmatprep.subr.bf16.mxu0 0
  %1343 = vmatpush1.bf16.msra.mxu0 0
  %1344 = vmatprep.subr.bf16.mxu0 0
  %1345 = vmatpush1.bf16.msra.mxu0 0
  %1346 = vmatprep.subr.bf16.mxu0 0
  %1347 = vmatpush1.bf16.msra.mxu0 0
  %1348 = vmatprep.subr.bf16.mxu0 0
  %1349 = vmatpush1.bf16.msra.mxu0 0
  %1350 = vmatprep.mubr.bf16.mxu0 0
  %1351 = vmatmul.mubr.bf16.gmra.mrb[0].mxu0 %v1317
  %v1352 = vpop.f32.mrb[0].mxu0
  %v1353 = vadd.f32 0.0, %v1352
  %v1354 = vpop.f32.mrb[0].mxu0
  %v1355 = vadd.f32 0.0, %v1354
  %v1356 = vpop.f32.mrb[0].mxu0
  %v1357 = vpop.f32.mrb[0].mxu0
  %1358 = vdwg.mxu0
  %1359 = vmatprep.subr.bf16.mxu0 %v460
  %1360 = vmatpush1.bf16.msra.mxu0 %v459
  %1361 = vmatprep.subr.bf16.mxu0 %v464
  %1362 = vmatpush1.bf16.msra.mxu0 %v463
  %1363 = vmatprep.subr.bf16.mxu0 %v468
  %1364 = vmatpush1.bf16.msra.mxu0 %v467
  %1365 = vmatprep.subr.bf16.mxu0 %v472
  %1366 = vmatpush1.bf16.msra.mxu0 %v471
  %1367 = vmatprep.subr.bf16.mxu0 %v476
  %1368 = vmatpush1.bf16.msra.mxu0 %v475
  %1369 = vmatprep.subr.bf16.mxu0 %v480
  %1370 = vmatpush1.bf16.msra.mxu0 %v479
  %1371 = vmatprep.subr.bf16.mxu0 %v484
  %1372 = vmatpush1.bf16.msra.mxu0 %v483
  %1373 = vmatprep.subr.bf16.mxu0 %v488
  %1374 = vmatpush1.bf16.msra.mxu0 %v487
  %1375 = vmatprep.subr.bf16.mxu0 0
  %1376 = vmatpush1.bf16.msra.mxu0 0
  %1377 = vmatprep.subr.bf16.mxu0 0
  %1378 = vmatpush1.bf16.msra.mxu0 0
  %1379 = vmatprep.subr.bf16.mxu0 0
  %1380 = vmatpush1.bf16.msra.mxu0 0
  %1381 = vmatprep.subr.bf16.mxu0 0
  %1382 = vmatpush1.bf16.msra.mxu0 0
  %1383 = vmatprep.subr.bf16.mxu0 0
  %1384 = vmatpush1.bf16.msra.mxu0 0
  %1385 = vmatprep.subr.bf16.mxu0 0
  %1386 = vmatpush1.bf16.msra.mxu0 0
  %1387 = vmatprep.subr.bf16.mxu0 0
  %1388 = vmatpush1.bf16.msra.mxu0 0
  %1389 = vmatprep.subr.bf16.mxu0 0
  %1390 = vmatpush1.bf16.msra.mxu0 0
  %1391 = vmatprep.mubr.bf16.mxu0 0
  %1392 = vmatmul.mubr.bf16.gmra.mrb[0].mxu0 %v1317
  %v1393 = vpop.f32.mrb[0].mxu0
  %v1394 = vadd.f32 0.0, %v1393
  %v1395 = vpop.f32.mrb[0].mxu0
  %v1396 = vadd.f32 0.0, %v1395
  %v1397 = vpop.f32.mrb[0].mxu0
  %v1398 = vpop.f32.mrb[0].mxu0
  %1399 = vdwg.mxu0
  %v1400 = vadd.f32 %v1313, %v1353
  %v1401 = vadd.f32 %v1314, %v1355
  %v1402 = vadd.f32 %v1315, %v1394
  %v1403 = vadd.f32 %v1316, %v1396
  %v1404 = vmul.f32 %v1400, 0.5
  %v1405 = vtanh.pop %v1404
  %v1406 = vmul.f32 %v1405, 0.5
  %v1407 = vadd.f32 %v1406, 0.5
  %v1408 = vmul.f32 %v1401, 0.5
  %v1409 = vtanh.pop %v1408
  %v1410 = vmul.f32 %v1409, 0.5
  %v1411 = vadd.f32 %v1410, 0.5
  %v1412 = vtanh.pop %v1402
  %v1413 = vmul.f32 %v1403, 0.5
  %v1414 = vtanh.pop %v1413
  %v1415 = vmul.f32 %v1414, 0.5
  %v1416 = vadd.f32 %v1415, 0.5
  %v1417 = vmul.f32 %v1411, %v1305
  %v1418 = vmul.f32 %v1407, %v1412
  %v1419 = vadd.f32 %v1417, %v1418
  %v1420 = vtanh.pop %v1419
  %v1421 = vmul.f32 %v1416, %v1420
  %s1422 = scalar_lea.vmem [#allocation3], 56
  %1423 = vst [vmem:[%s1422] sm:$0xff] %v1421
  %v1424 = vld [vmem:[#allocation3] sm:$0xff]
  %v1425 = vld [vmem:[#allocation3 + $0x8] sm:$0xff]
  %v1426 = vld [vmem:[#allocation3 + $0x10] sm:$0xff]
  %v1427 = vld [vmem:[#allocation3 + $0x18] sm:$0xff]
  %v1428 = vld [vmem:[#allocation3 + $0x20] sm:$0xff]
  %v1429 = vld [vmem:[#allocation3 + $0x28] sm:$0xff]
  %v1430 = vld [vmem:[#allocation3 + $0x30] sm:$0xff]
  %v1431 = vld [vmem:[#allocation3 + $0x38] sm:$0xff]
  %v1432 = vpack.c.bf16 %v1425, %v1424
  %v1433 = vpack.c.bf16 %v1427, %v1426
  %v1434 = vpack.c.bf16 %v1429, %v1428
  %v1435 = vpack.c.bf16 %v1431, %v1430
  %v1436 = vld [vmem:[%s4] sm:$0xff]
  %v1437 = vld [vmem:[%s4 + $0x8] sm:$0xff]
  %v1438 = vld [vmem:[%s4 + $0x10] sm:$0xff]
  %v1439 = vld [vmem:[%s4 + $0x18] sm:$0xff]
  %v1440 = vld [vmem:[%s4 + $0x20] sm:$0xff]
  %v1441 = vld [vmem:[%s4 + $0x28] sm:$0xff]
  %v1442 = vld [vmem:[%s4 + $0x30] sm:$0xff]
  %v1443 = vld [vmem:[%s4 + $0x38] sm:$0xff]
  %v1444 = vld [vmem:[%s4 + $0x40] sm:$0xff]
  %v1445 = vld [vmem:[%s4 + $0x48] sm:$0xff]
  %v1446 = vld [vmem:[%s4 + $0x50] sm:$0xff]
  %v1447 = vld [vmem:[%s4 + $0x58] sm:$0xff]
  %v1448 = vld [vmem:[%s4 + $0x60] sm:$0xff]
  %v1449 = vld [vmem:[%s4 + $0x68] sm:$0xff]
  %v1450 = vld [vmem:[%s4 + $0x70] sm:$0xff]
  %v1451 = vld [vmem:[%s4 + $0x78] sm:$0xff]
  %v1452 = vld [vmem:[%s4 + $0x80] sm:$0xff]
  %v1453 = vld [vmem:[%s4 + $0x88] sm:$0xff]
  %v1454 = vld [vmem:[%s4 + $0x90] sm:$0xff]
  %v1455 = vld [vmem:[%s4 + $0x98] sm:$0xff]
  %v1456 = vld [vmem:[%s4 + $0xa0] sm:$0xff]
  %v1457 = vld [vmem:[%s4 + $0xa8] sm:$0xff]
  %v1458 = vld [vmem:[%s4 + $0xb0] sm:$0xff]
  %v1459 = vld [vmem:[%s4 + $0xb8] sm:$0xff]
  %v1460 = vld [vmem:[%s4 + $0xc0] sm:$0xff]
  %v1461 = vld [vmem:[%s4 + $0xc8] sm:$0xff]
  %v1462 = vld [vmem:[%s4 + $0xd0] sm:$0xff]
  %v1463 = vld [vmem:[%s4 + $0xd8] sm:$0xff]
  %v1464 = vld [vmem:[%s4 + $0xe0] sm:$0xff]
  %v1465 = vld [vmem:[%s4 + $0xe8] sm:$0xff]
  %v1466 = vld [vmem:[%s4 + $0xf0] sm:$0xff]
  %v1467 = vld [vmem:[%s4 + $0xf8] sm:$0xff]
  %v1468 = vld [vmem:[%s6] sm:$0xf]
  %v1470 = vlaneseq
  %v1471 = vshrl.u32 %v1470, 7
  %v1472 = vsub.s32 0, %v1471
  %v1473 = vrot.slane %v1468, %v1472
  %v1474 = vlaneseq
  %v1475 = vshrl.u32 %v1474, 7
  %v1476 = vsub.s32 1, %v1475
  %v1477 = vrot.slane %v1468, %v1476
  %v1478 = vlaneseq
  %v1479 = vshrl.u32 %v1478, 7
  %v1480 = vsub.s32 2, %v1479
  %v1481 = vrot.slane %v1468, %v1480
  %v1482 = vlaneseq
  %v1483 = vshrl.u32 %v1482, 7
  %v1484 = vsub.s32 3, %v1483
  %v1485 = vrot.slane %v1468, %v1484
  %v1522 = vunpack.c.l.b16 %v1436
  %v1523 = vunpack.c.h.b16 %v1436
  %v1524 = vunpack.c.l.b16 %v1437
  %v1525 = vunpack.c.h.b16 %v1437
  %v1526 = vunpack.c.l.b16 %v1438
  %v1527 = vunpack.c.h.b16 %v1438
  %v1528 = vunpack.c.l.b16 %v1439
  %v1529 = vunpack.c.h.b16 %v1439
  %v1530 = vunpack.c.l.b16 %v1440
  %v1531 = vunpack.c.h.b16 %v1440
  %v1532 = vunpack.c.l.b16 %v1441
  %v1533 = vunpack.c.h.b16 %v1441
  %v1534 = vunpack.c.l.b16 %v1442
  %v1535 = vunpack.c.h.b16 %v1442
  %v1536 = vunpack.c.l.b16 %v1443
  %v1537 = vunpack.c.h.b16 %v1443
  %v1538 = vunpack.c.l.b16 %v1444
  %v1539 = vunpack.c.h.b16 %v1444
  %v1540 = vunpack.c.l.b16 %v1445
  %v1541 = vunpack.c.h.b16 %v1445
  %v1542 = vunpack.c.l.b16 %v1446
  %v1543 = vunpack.c.h.b16 %v1446
  %v1544 = vunpack.c.l.b16 %v1447
  %v1545 = vunpack.c.h.b16 %v1447
  %v1546 = vunpack.c.l.b16 %v1448
  %v1547 = vunpack.c.h.b16 %v1448
  %v1548 = vunpack.c.l.b16 %v1449
  %v1549 = vunpack.c.h.b16 %v1449
  %v1550 = vunpack.c.l.b16 %v1450
  %v1551 = vunpack.c.h.b16 %v1450
  %v1552 = vunpack.c.l.b16 %v1451
  %v1553 = vunpack.c.h.b16 %v1451
  %v1554 = vunpack.c.l.b16 %v1452
  %v1555 = vunpack.c.h.b16 %v1452
  %v1556 = vunpack.c.l.b16 %v1453
  %v1557 = vunpack.c.h.b16 %v1453
  %v1558 = vunpack.c.l.b16 %v1454
  %v1559 = vunpack.c.h.b16 %v1454
  %v1560 = vunpack.c.l.b16 %v1455
  %v1561 = vunpack.c.h.b16 %v1455
  %v1562 = vunpack.c.l.b16 %v1456
  %v1563 = vunpack.c.h.b16 %v1456
  %v1564 = vunpack.c.l.b16 %v1457
  %v1565 = vunpack.c.h.b16 %v1457
  %v1566 = vunpack.c.l.b16 %v1458
  %v1567 = vunpack.c.h.b16 %v1458
  %v1568 = vunpack.c.l.b16 %v1459
  %v1569 = vunpack.c.h.b16 %v1459
  %v1570 = vunpack.c.l.b16 %v1460
  %v1571 = vunpack.c.h.b16 %v1460
  %v1572 = vunpack.c.l.b16 %v1461
  %v1573 = vunpack.c.h.b16 %v1461
  %v1574 = vunpack.c.l.b16 %v1462
  %v1575 = vunpack.c.h.b16 %v1462
  %v1576 = vunpack.c.l.b16 %v1463
  %v1577 = vunpack.c.h.b16 %v1463
  %v1578 = vunpack.c.l.b16 %v1464
  %v1579 = vunpack.c.h.b16 %v1464
  %v1580 = vunpack.c.l.b16 %v1465
  %v1581 = vunpack.c.h.b16 %v1465
  %v1582 = vunpack.c.l.b16 %v1466
  %v1583 = vunpack.c.h.b16 %v1466
  %v1584 = vunpack.c.l.b16 %v1467
  %v1585 = vunpack.c.h.b16 %v1467
  %v1586 = vpack.c.b16 %v1526, %v1522
  %v1587 = vpack.c.b16 %v1527, %v1523
  %v1588 = vpack.c.b16 %v1528, %v1524
  %v1589 = vpack.c.b16 %v1529, %v1525
  %v1590 = vpack.c.b16 %v1534, %v1530
  %v1591 = vpack.c.b16 %v1535, %v1531
  %v1592 = vpack.c.b16 %v1536, %v1532
  %v1593 = vpack.c.b16 %v1537, %v1533
  %v1594 = vpack.c.b16 %v1542, %v1538
  %v1595 = vpack.c.b16 %v1543, %v1539
  %v1596 = vpack.c.b16 %v1544, %v1540
  %v1597 = vpack.c.b16 %v1545, %v1541
  %v1598 = vpack.c.b16 %v1550, %v1546
  %v1599 = vpack.c.b16 %v1551, %v1547
  %v1600 = vpack.c.b16 %v1552, %v1548
  %v1601 = vpack.c.b16 %v1553, %v1549
  %v1602 = vpack.c.b16 %v1558, %v1554
  %v1603 = vpack.c.b16 %v1559, %v1555
  %v1604 = vpack.c.b16 %v1560, %v1556
  %v1605 = vpack.c.b16 %v1561, %v1557
  %v1606 = vpack.c.b16 %v1566, %v1562
  %v1607 = vpack.c.b16 %v1567, %v1563
  %v1608 = vpack.c.b16 %v1568, %v1564
  %v1609 = vpack.c.b16 %v1569, %v1565
  %v1610 = vpack.c.b16 %v1574, %v1570
  %v1611 = vpack.c.b16 %v1575, %v1571
  %v1612 = vpack.c.b16 %v1576, %v1572
  %v1613 = vpack.c.b16 %v1577, %v1573
  %v1614 = vpack.c.b16 %v1582, %v1578
  %v1615 = vpack.c.b16 %v1583, %v1579
  %v1616 = vpack.c.b16 %v1584, %v1580
  %v1617 = vpack.c.b16 %v1585, %v1581
  %1650 = vmatprep.subr.bf16.mxu0 %v1587
  %1651 = vmatpush1.bf16.msra.mxu0 %v1586
  %1652 = vmatprep.subr.bf16.mxu0 %v1591
  %1653 = vmatpush1.bf16.msra.mxu0 %v1590
  %1654 = vmatprep.subr.bf16.mxu0 %v1595
  %1655 = vmatpush1.bf16.msra.mxu0 %v1594
  %1656 = vmatprep.subr.bf16.mxu0 %v1599
  %1657 = vmatpush1.bf16.msra.mxu0 %v1598
  %1658 = vmatprep.subr.bf16.mxu0 %v1603
  %1659 = vmatpush1.bf16.msra.mxu0 %v1602
  %1660 = vmatprep.subr.bf16.mxu0 %v1607
  %1661 = vmatpush1.bf16.msra.mxu0 %v1606
  %1662 = vmatprep.subr.bf16.mxu0 %v1611
  %1663 = vmatpush1.bf16.msra.mxu0 %v1610
  %1664 = vmatprep.subr.bf16.mxu0 %v1615
  %1665 = vmatpush1.bf16.msra.mxu0 %v1614
  %1666 = vmatprep.subr.bf16.mxu0 0
  %1667 = vmatpush1.bf16.msra.mxu0 0
  %1668 = vmatprep.subr.bf16.mxu0 0
  %1669 = vmatpush1.bf16.msra.mxu0 0
  %1670 = vmatprep.subr.bf16.mxu0 0
  %1671 = vmatpush1.bf16.msra.mxu0 0
  %1672 = vmatprep.subr.bf16.mxu0 0
  %1673 = vmatpush1.bf16.msra.mxu0 0
  %1674 = vmatprep.subr.bf16.mxu0 0
  %1675 = vmatpush1.bf16.msra.mxu0 0
  %1676 = vmatprep.subr.bf16.mxu0 0
  %1677 = vmatpush1.bf16.msra.mxu0 0
  %1678 = vmatprep.subr.bf16.mxu0 0
  %1679 = vmatpush1.bf16.msra.mxu0 0
  %1680 = vmatprep.subr.bf16.mxu0 0
  %1681 = vmatpush1.bf16.msra.mxu0 0
  %1682 = vmatprep.mubr.bf16.mxu0 0
  %1683 = vmatmul.mubr.bf16.gmra.mrb[0].mxu0 %v1432
  %v1684 = vpop.f32.mrb[0].mxu0
  %v1685 = vadd.f32 %v1473, %v1684
  %v1686 = vpop.f32.mrb[0].mxu0
  %v1687 = vadd.f32 %v1477, %v1686
  %v1688 = vpop.f32.mrb[0].mxu0
  %v1689 = vadd.f32 %v1473, %v1688
  %v1690 = vpop.f32.mrb[0].mxu0
  %v1691 = vadd.f32 %v1477, %v1690
  %1692 = vmatprep.mubr.bf16.mxu0 0
  %1693 = vmatmul.mubr.bf16.gmra.mrb[0].mxu0 %v1433
  %v1694 = vpop.f32.mrb[0].mxu0
  %v1695 = vadd.f32 %v1473, %v1694
  %v1696 = vpop.f32.mrb[0].mxu0
  %v1697 = vadd.f32 %v1477, %v1696
  %v1698 = vpop.f32.mrb[0].mxu0
  %v1699 = vadd.f32 %v1473, %v1698
  %v1700 = vpop.f32.mrb[0].mxu0
  %v1701 = vadd.f32 %v1477, %v1700
  %1702 = vmatprep.mubr.bf16.mxu0 0
  %1703 = vmatmul.mubr.bf16.gmra.mrb[0].mxu0 %v1434
  %v1704 = vpop.f32.mrb[0].mxu0
  %v1705 = vadd.f32 %v1473, %v1704
  %v1706 = vpop.f32.mrb[0].mxu0
  %v1707 = vadd.f32 %v1477, %v1706
  %v1708 = vpop.f32.mrb[0].mxu0
  %v1709 = vadd.f32 %v1473, %v1708
  %v1710 = vpop.f32.mrb[0].mxu0
  %v1711 = vadd.f32 %v1477, %v1710
  %1712 = vmatprep.mubr.bf16.mxu0 0
  %1713 = vmatmul.mubr.bf16.gmra.mrb[0].mxu0 %v1435
  %v1714 = vpop.f32.mrb[0].mxu0
  %v1715 = vadd.f32 %v1473, %v1714
  %v1716 = vpop.f32.mrb[0].mxu0
  %v1717 = vadd.f32 %v1477, %v1716
  %v1718 = vpop.f32.mrb[0].mxu0
  %v1719 = vadd.f32 %v1473, %v1718
  %v1720 = vpop.f32.mrb[0].mxu0
  %v1721 = vadd.f32 %v1477, %v1720
  %1722 = vdwg.mxu0
  %1723 = vmatprep.subr.bf16.mxu0 %v1589
  %1724 = vmatpush1.bf16.msra.mxu0 %v1588
  %1725 = vmatprep.subr.bf16.mxu0 %v1593
  %1726 = vmatpush1.bf16.msra.mxu0 %v1592
  %1727 = vmatprep.subr.bf16.mxu0 %v1597
  %1728 = vmatpush1.bf16.msra.mxu0 %v1596
  %1729 = vmatprep.subr.bf16.mxu0 %v1601
  %1730 = vmatpush1.bf16.msra.mxu0 %v1600
  %1731 = vmatprep.subr.bf16.mxu0 %v1605
  %1732 = vmatpush1.bf16.msra.mxu0 %v1604
  %1733 = vmatprep.subr.bf16.mxu0 %v1609
  %1734 = vmatpush1.bf16.msra.mxu0 %v1608
  %1735 = vmatprep.subr.bf16.mxu0 %v1613
  %1736 = vmatpush1.bf16.msra.mxu0 %v1612
  %1737 = vmatprep.subr.bf16.mxu0 %v1617
  %1738 = vmatpush1.bf16.msra.mxu0 %v1616
  %1739 = vmatprep.subr.bf16.mxu0 0
  %1740 = vmatpush1.bf16.msra.mxu0 0
  %1741 = vmatprep.subr.bf16.mxu0 0
  %1742 = vmatpush1.bf16.msra.mxu0 0
  %1743 = vmatprep.subr.bf16.mxu0 0
  %1744 = vmatpush1.bf16.msra.mxu0 0
  %1745 = vmatprep.subr.bf16.mxu0 0
  %1746 = vmatpush1.bf16.msra.mxu0 0
  %1747 = vmatprep.subr.bf16.mxu0 0
  %1748 = vmatpush1.bf16.msra.mxu0 0
  %1749 = vmatprep.subr.bf16.mxu0 0
  %1750 = vmatpush1.bf16.msra.mxu0 0
  %1751 = vmatprep.subr.bf16.mxu0 0
  %1752 = vmatpush1.bf16.msra.mxu0 0
  %1753 = vmatprep.subr.bf16.mxu0 0
  %1754 = vmatpush1.bf16.msra.mxu0 0
  %1755 = vmatprep.mubr.bf16.mxu0 0
  %1756 = vmatmul.mubr.bf16.gmra.mrb[0].mxu0 %v1432
  %v1757 = vpop.f32.mrb[0].mxu0
  %v1758 = vadd.f32 %v1481, %v1757
  %v1759 = vpop.f32.mrb[0].mxu0
  %v1760 = vadd.f32 %v1485, %v1759
  %v1761 = vpop.f32.mrb[0].mxu0
  %v1762 = vadd.f32 %v1481, %v1761
  %v1763 = vpop.f32.mrb[0].mxu0
  %v1764 = vadd.f32 %v1485, %v1763
  %1765 = vmatprep.mubr.bf16.mxu0 0
  %1766 = vmatmul.mubr.bf16.gmra.mrb[0].mxu0 %v1433
  %v1767 = vpop.f32.mrb[0].mxu0
  %v1768 = vadd.f32 %v1481, %v1767
  %v1769 = vpop.f32.mrb[0].mxu0
  %v1770 = vadd.f32 %v1485, %v1769
  %v1771 = vpop.f32.mrb[0].mxu0
  %v1772 = vadd.f32 %v1481, %v1771
  %v1773 = vpop.f32.mrb[0].mxu0
  %v1774 = vadd.f32 %v1485, %v1773
  %1775 = vmatprep.mubr.bf16.mxu0 0
  %1776 = vmatmul.mubr.bf16.gmra.mrb[0].mxu0 %v1434
  %v1777 = vpop.f32.mrb[0].mxu0
  %v1778 = vadd.f32 %v1481, %v1777
  %v1779 = vpop.f32.mrb[0].mxu0
  %v1780 = vadd.f32 %v1485, %v1779
  %v1781 = vpop.f32.mrb[0].mxu0
  %v1782 = vadd.f32 %v1481, %v1781
  %v1783 = vpop.f32.mrb[0].mxu0
  %v1784 = vadd.f32 %v1485, %v1783
  %1785 = vmatprep.mubr.bf16.mxu0 0
  %1786 = vmatmul.mubr.bf16.gmra.mrb[0].mxu0 %v1435
  %v1787 = vpop.f32.mrb[0].mxu0
  %v1788 = vadd.f32 %v1481, %v1787
  %v1789 = vpop.f32.mrb[0].mxu0
  %v1790 = vadd.f32 %v1485, %v1789
  %v1791 = vpop.f32.mrb[0].mxu0
  %v1792 = vadd.f32 %v1481, %v1791
  %v1793 = vpop.f32.mrb[0].mxu0
  %v1794 = vadd.f32 %v1485, %v1793
  %1795 = vdwg.mxu0
  %1796 = vst [vmem:[#allocation2] sm:$0xff] %v1685
  %1797 = vst [vmem:[#allocation2 + $0x8] sm:$0xff] %v1687
  %1798 = vst [vmem:[#allocation2 + $0x10] sm:$0xff] %v1758
  %1799 = vst [vmem:[#allocation2 + $0x18] sm:$0xff] %v1760
  %1800 = vst [vmem:[#allocation2 + $0x20] sm:$0xff] %v1689
  %1801 = vst [vmem:[#allocation2 + $0x28] sm:$0xff] %v1691
  %1802 = vst [vmem:[#allocation2 + $0x30] sm:$0xff] %v1762
  %1803 = vst [vmem:[#allocation2 + $0x38] sm:$0xff] %v1764
  %1804 = vst [vmem:[#allocation2 + $0x40] sm:$0xff] %v1695
  %1805 = vst [vmem:[#allocation2 + $0x48] sm:$0xff] %v1697
  %1806 = vst [vmem:[#allocation2 + $0x50] sm:$0xff] %v1768
  %1807 = vst [vmem:[#allocation2 + $0x58] sm:$0xff] %v1770
  %1808 = vst [vmem:[#allocation2 + $0x60] sm:$0xff] %v1699
  %1809 = vst [vmem:[#allocation2 + $0x68] sm:$0xff] %v1701
  %1810 = vst [vmem:[#allocation2 + $0x70] sm:$0xff] %v1772
  %1811 = vst [vmem:[#allocation2 + $0x78] sm:$0xff] %v1774
  %1812 = vst [vmem:[#allocation2 + $0x80] sm:$0xff] %v1705
  %1813 = vst [vmem:[#allocation2 + $0x88] sm:$0xff] %v1707
  %1814 = vst [vmem:[#allocation2 + $0x90] sm:$0xff] %v1778
  %1815 = vst [vmem:[#allocation2 + $0x98] sm:$0xff] %v1780
  %1816 = vst [vmem:[#allocation2 + $0xa0] sm:$0xff] %v1709
  %1817 = vst [vmem:[#allocation2 + $0xa8] sm:$0xff] %v1711
  %1818 = vst [vmem:[#allocation2 + $0xb0] sm:$0xff] %v1782
  %1819 = vst [vmem:[#allocation2 + $0xb8] sm:$0xff] %v1784
  %1820 = vst [vmem:[#allocation2 + $0xc0] sm:$0xff] %v1715
  %1821 = vst [vmem:[#allocation2 + $0xc8] sm:$0xff] %v1717
  %1822 = vst [vmem:[#allocation2 + $0xd0] sm:$0xff] %v1788
  %1823 = vst [vmem:[#allocation2 + $0xd8] sm:$0xff] %v1790
  %1824 = vst [vmem:[#allocation2 + $0xe0] sm:$0xff] %v1719
  %1825 = vst [vmem:[#allocation2 + $0xe8] sm:$0xff] %v1721
  %1826 = vst [vmem:[#allocation2 + $0xf0] sm:$0xff] %v1792
  %1827 = vst [vmem:[#allocation2 + $0xf8] sm:$0xff] %v1794
  %v1828 = vld [vmem:[%s5] sm:$0xff]
  %v1829 = vld [vmem:[%s5 + $0x8] sm:$0xff]
  %v1830 = vld [vmem:[%s5 + $0x10] sm:$0xff]
  %v1831 = vld [vmem:[%s5 + $0x18] sm:$0xff]
  %v1832 = vld [vmem:[%s5 + $0x20] sm:$0xff]
  %v1833 = vld [vmem:[%s5 + $0x28] sm:$0xff]
  %v1834 = vld [vmem:[%s5 + $0x30] sm:$0xff]
  %v1835 = vld [vmem:[%s5 + $0x38] sm:$0xff]
  %v1836 = vld [vmem:[%s5 + $0x40] sm:$0xff]
  %v1837 = vld [vmem:[%s5 + $0x48] sm:$0xff]
  %v1838 = vld [vmem:[%s5 + $0x50] sm:$0xff]
  %v1839 = vld [vmem:[%s5 + $0x58] sm:$0xff]
  %v1840 = vld [vmem:[%s5 + $0x60] sm:$0xff]
  %v1841 = vld [vmem:[%s5 + $0x68] sm:$0xff]
  %v1842 = vld [vmem:[%s5 + $0x70] sm:$0xff]
  %v1843 = vld [vmem:[%s5 + $0x78] sm:$0xff]
  %v1844 = vld [vmem:[%s5 + $0x80] sm:$0xff]
  %v1845 = vld [vmem:[%s5 + $0x88] sm:$0xff]
  %v1846 = vld [vmem:[%s5 + $0x90] sm:$0xff]
  %v1847 = vld [vmem:[%s5 + $0x98] sm:$0xff]
  %v1848 = vld [vmem:[%s5 + $0xa0] sm:$0xff]
  %v1849 = vld [vmem:[%s5 + $0xa8] sm:$0xff]
  %v1850 = vld [vmem:[%s5 + $0xb0] sm:$0xff]
  %v1851 = vld [vmem:[%s5 + $0xb8] sm:$0xff]
  %v1852 = vld [vmem:[%s5 + $0xc0] sm:$0xff]
  %v1853 = vld [vmem:[%s5 + $0xc8] sm:$0xff]
  %v1854 = vld [vmem:[%s5 + $0xd0] sm:$0xff]
  %v1855 = vld [vmem:[%s5 + $0xd8] sm:$0xff]
  %v1856 = vld [vmem:[%s5 + $0xe0] sm:$0xff]
  %v1857 = vld [vmem:[%s5 + $0xe8] sm:$0xff]
  %v1858 = vld [vmem:[%s5 + $0xf0] sm:$0xff]
  %v1859 = vld [vmem:[%s5 + $0xf8] sm:$0xff]
  %v1860 = vld [vmem:[%s356] sm:$0xff]
  %v1861 = vld [vmem:[%s356 + $0x8] sm:$0xff]
  %v1862 = vld [vmem:[%s356 + $0x10] sm:$0xff]
  %v1863 = vld [vmem:[%s356 + $0x18] sm:$0xff]
  %v1896 = vunpack.c.l.b16 %v1828
  %v1897 = vunpack.c.h.b16 %v1828
  %v1898 = vunpack.c.l.b16 %v1829
  %v1899 = vunpack.c.h.b16 %v1829
  %v1900 = vunpack.c.l.b16 %v1830
  %v1901 = vunpack.c.h.b16 %v1830
  %v1902 = vunpack.c.l.b16 %v1831
  %v1903 = vunpack.c.h.b16 %v1831
  %v1904 = vunpack.c.l.b16 %v1832
  %v1905 = vunpack.c.h.b16 %v1832
  %v1906 = vunpack.c.l.b16 %v1833
  %v1907 = vunpack.c.h.b16 %v1833
  %v1908 = vunpack.c.l.b16 %v1834
  %v1909 = vunpack.c.h.b16 %v1834
  %v1910 = vunpack.c.l.b16 %v1835
  %v1911 = vunpack.c.h.b16 %v1835
  %v1912 = vunpack.c.l.b16 %v1836
  %v1913 = vunpack.c.h.b16 %v1836
  %v1914 = vunpack.c.l.b16 %v1837
  %v1915 = vunpack.c.h.b16 %v1837
  %v1916 = vunpack.c.l.b16 %v1838
  %v1917 = vunpack.c.h.b16 %v1838
  %v1918 = vunpack.c.l.b16 %v1839
  %v1919 = vunpack.c.h.b16 %v1839
  %v1920 = vunpack.c.l.b16 %v1840
  %v1921 = vunpack.c.h.b16 %v1840
  %v1922 = vunpack.c.l.b16 %v1841
  %v1923 = vunpack.c.h.b16 %v1841
  %v1924 = vunpack.c.l.b16 %v1842
  %v1925 = vunpack.c.h.b16 %v1842
  %v1926 = vunpack.c.l.b16 %v1843
  %v1927 = vunpack.c.h.b16 %v1843
  %v1928 = vunpack.c.l.b16 %v1844
  %v1929 = vunpack.c.h.b16 %v1844
  %v1930 = vunpack.c.l.b16 %v1845
  %v1931 = vunpack.c.h.b16 %v1845
  %v1932 = vunpack.c.l.b16 %v1846
  %v1933 = vunpack.c.h.b16 %v1846
  %v1934 = vunpack.c.l.b16 %v1847
  %v1935 = vunpack.c.h.b16 %v1847
  %v1936 = vunpack.c.l.b16 %v1848
  %v1937 = vunpack.c.h.b16 %v1848
  %v1938 = vunpack.c.l.b16 %v1849
  %v1939 = vunpack.c.h.b16 %v1849
  %v1940 = vunpack.c.l.b16 %v1850
  %v1941 = vunpack.c.h.b16 %v1850
  %v1942 = vunpack.c.l.b16 %v1851
  %v1943 = vunpack.c.h.b16 %v1851
  %v1944 = vunpack.c.l.b16 %v1852
  %v1945 = vunpack.c.h.b16 %v1852
  %v1946 = vunpack.c.l.b16 %v1853
  %v1947 = vunpack.c.h.b16 %v1853
  %v1948 = vunpack.c.l.b16 %v1854
  %v1949 = vunpack.c.h.b16 %v1854
  %v1950 = vunpack.c.l.b16 %v1855
  %v1951 = vunpack.c.h.b16 %v1855
  %v1952 = vunpack.c.l.b16 %v1856
  %v1953 = vunpack.c.h.b16 %v1856
  %v1954 = vunpack.c.l.b16 %v1857
  %v1955 = vunpack.c.h.b16 %v1857
  %v1956 = vunpack.c.l.b16 %v1858
  %v1957 = vunpack.c.h.b16 %v1858
  %v1958 = vunpack.c.l.b16 %v1859
  %v1959 = vunpack.c.h.b16 %v1859
  %v1960 = vpack.c.b16 %v1900, %v1896
  %v1961 = vpack.c.b16 %v1901, %v1897
  %v1962 = vpack.c.b16 %v1902, %v1898
  %v1963 = vpack.c.b16 %v1903, %v1899
  %v1964 = vpack.c.b16 %v1908, %v1904
  %v1965 = vpack.c.b16 %v1909, %v1905
  %v1966 = vpack.c.b16 %v1910, %v1906
  %v1967 = vpack.c.b16 %v1911, %v1907
  %v1968 = vpack.c.b16 %v1916, %v1912
  %v1969 = vpack.c.b16 %v1917, %v1913
  %v1970 = vpack.c.b16 %v1918, %v1914
  %v1971 = vpack.c.b16 %v1919, %v1915
  %v1972 = vpack.c.b16 %v1924, %v1920
  %v1973 = vpack.c.b16 %v1925, %v1921
  %v1974 = vpack.c.b16 %v1926, %v1922
  %v1975 = vpack.c.b16 %v1927, %v1923
  %v1976 = vpack.c.b16 %v1932, %v1928
  %v1977 = vpack.c.b16 %v1933, %v1929
  %v1978 = vpack.c.b16 %v1934, %v1930
  %v1979 = vpack.c.b16 %v1935, %v1931
  %v1980 = vpack.c.b16 %v1940, %v1936
  %v1981 = vpack.c.b16 %v1941, %v1937
  %v1982 = vpack.c.b16 %v1942, %v1938
  %v1983 = vpack.c.b16 %v1943, %v1939
  %v1984 = vpack.c.b16 %v1948, %v1944
  %v1985 = vpack.c.b16 %v1949, %v1945
  %v1986 = vpack.c.b16 %v1950, %v1946
  %v1987 = vpack.c.b16 %v1951, %v1947
  %v1988 = vpack.c.b16 %v1956, %v1952
  %v1989 = vpack.c.b16 %v1957, %v1953
  %v1990 = vpack.c.b16 %v1958, %v1954
  %v1991 = vpack.c.b16 %v1959, %v1955
  %2024 = vmatprep.subr.bf16.mxu0 %v1961
  %2025 = vmatpush1.bf16.msra.mxu0 %v1960
  %2026 = vmatprep.subr.bf16.mxu0 %v1965
  %2027 = vmatpush1.bf16.msra.mxu0 %v1964
  %2028 = vmatprep.subr.bf16.mxu0 %v1969
  %2029 = vmatpush1.bf16.msra.mxu0 %v1968
  %2030 = vmatprep.subr.bf16.mxu0 %v1973
  %2031 = vmatpush1.bf16.msra.mxu0 %v1972
  %2032 = vmatprep.subr.bf16.mxu0 %v1977
  %2033 = vmatpush1.bf16.msra.mxu0 %v1976
  %2034 = vmatprep.subr.bf16.mxu0 %v1981
  %2035 = vmatpush1.bf16.msra.mxu0 %v1980
  %2036 = vmatprep.subr.bf16.mxu0 %v1985
  %2037 = vmatpush1.bf16.msra.mxu0 %v1984
  %2038 = vmatprep.subr.bf16.mxu0 %v1989
  %2039 = vmatpush1.bf16.msra.mxu0 %v1988
  %2040 = vmatprep.subr.bf16.mxu0 0
  %2041 = vmatpush1.bf16.msra.mxu0 0
  %2042 = vmatprep.subr.bf16.mxu0 0
  %2043 = vmatpush1.bf16.msra.mxu0 0
  %2044 = vmatprep.subr.bf16.mxu0 0
  %2045 = vmatpush1.bf16.msra.mxu0 0
  %2046 = vmatprep.subr.bf16.mxu0 0
  %2047 = vmatpush1.bf16.msra.mxu0 0
  %2048 = vmatprep.subr.bf16.mxu0 0
  %2049 = vmatpush1.bf16.msra.mxu0 0
  %2050 = vmatprep.subr.bf16.mxu0 0
  %2051 = vmatpush1.bf16.msra.mxu0 0
  %2052 = vmatprep.subr.bf16.mxu0 0
  %2053 = vmatpush1.bf16.msra.mxu0 0
  %2054 = vmatprep.subr.bf16.mxu0 0
  %2055 = vmatpush1.bf16.msra.mxu0 0
  %2056 = vmatprep.mubr.bf16.mxu0 0
  %2057 = vmatmul.mubr.bf16.gmra.mrb[0].mxu0 0
  %v2058 = vpop.f32.mrb[0].mxu0
  %v2059 = vadd.f32 0.0, %v2058
  %v2060 = vpop.f32.mrb[0].mxu0
  %v2061 = vadd.f32 0.0, %v2060
  %v2062 = vpop.f32.mrb[0].mxu0
  %v2063 = vpop.f32.mrb[0].mxu0
  %2064 = vdwg.mxu0
  %2065 = vmatprep.subr.bf16.mxu0 %v1963
  %2066 = vmatpush1.bf16.msra.mxu0 %v1962
  %2067 = vmatprep.subr.bf16.mxu0 %v1967
  %2068 = vmatpush1.bf16.msra.mxu0 %v1966
  %2069 = vmatprep.subr.bf16.mxu0 %v1971
  %2070 = vmatpush1.bf16.msra.mxu0 %v1970
  %2071 = vmatprep.subr.bf16.mxu0 %v1975
  %2072 = vmatpush1.bf16.msra.mxu0 %v1974
  %2073 = vmatprep.subr.bf16.mxu0 %v1979
  %2074 = vmatpush1.bf16.msra.mxu0 %v1978
  %2075 = vmatprep.subr.bf16.mxu0 %v1983
  %2076 = vmatpush1.bf16.msra.mxu0 %v1982
  %2077 = vmatprep.subr.bf16.mxu0 %v1987
  %2078 = vmatpush1.bf16.msra.mxu0 %v1986
  %2079 = vmatprep.subr.bf16.mxu0 %v1991
  %2080 = vmatpush1.bf16.msra.mxu0 %v1990
  %2081 = vmatprep.subr.bf16.mxu0 0
  %2082 = vmatpush1.bf16.msra.mxu0 0
  %2083 = vmatprep.subr.bf16.mxu0 0
  %2084 = vmatpush1.bf16.msra.mxu0 0
  %2085 = vmatprep.subr.bf16.mxu0 0
  %2086 = vmatpush1.bf16.msra.mxu0 0
  %2087 = vmatprep.subr.bf16.mxu0 0
  %2088 = vmatpush1.bf16.msra.mxu0 0
  %2089 = vmatprep.subr.bf16.mxu0 0
  %2090 = vmatpush1.bf16.msra.mxu0 0
  %2091 = vmatprep.subr.bf16.mxu0 0
  %2092 = vmatpush1.bf16.msra.mxu0 0
  %2093 = vmatprep.subr.bf16.mxu0 0
  %2094 = vmatpush1.bf16.msra.mxu0 0
  %2095 = vmatprep.subr.bf16.mxu0 0
  %2096 = vmatpush1.bf16.msra.mxu0 0
  %2097 = vmatprep.mubr.bf16.mxu0 0
  %2098 = vmatmul.mubr.bf16.gmra.mrb[0].mxu0 0
  %v2099 = vpop.f32.mrb[0].mxu0
  %v2100 = vadd.f32 0.0, %v2099
  %v2101 = vpop.f32.mrb[0].mxu0
  %v2102 = vadd.f32 0.0, %v2101
  %v2103 = vpop.f32.mrb[0].mxu0
  %v2104 = vpop.f32.mrb[0].mxu0
  %2105 = vdwg.mxu0
  %v2106 = vadd.f32 %v1860, %v2059
  %v2107 = vadd.f32 %v1861, %v2061
  %v2108 = vadd.f32 %v1862, %v2100
  %v2109 = vadd.f32 %v1863, %v2102
  %v2110 = vmul.f32 %v2106, 0.5
  %v2111 = vtanh.pop %v2110
  %v2112 = vmul.f32 %v2111, 0.5
  %v2113 = vadd.f32 %v2112, 0.5
  %v2114 = vmul.f32 %v2107, 0.5
  %v2115 = vtanh.pop %v2114
  %v2116 = vmul.f32 %v2115, 0.5
  %v2117 = vadd.f32 %v2116, 0.5
  %v2118 = vtanh.pop %v2108
  %v2119 = vmul.f32 %v2109, 0.5
  %v2120 = vtanh.pop %v2119
  %v2121 = vmul.f32 %v2120, 0.5
  %v2122 = vadd.f32 %v2121, 0.5
  %v2123 = vmul.f32 %v2117, 0.0
  %v2124 = vmul.f32 %v2113, %v2118
  %v2125 = vadd.f32 %v2123, %v2124
  %v2126 = vtanh.pop %v2125
  %v2127 = vmul.f32 %v2122, %v2126
  %v2128 = vld [vmem:[%s628] sm:$0xff]
  %v2129 = vld [vmem:[%s628 + $0x8] sm:$0xff]
  %v2130 = vld [vmem:[%s628 + $0x10] sm:$0xff]
  %v2131 = vld [vmem:[%s628 + $0x18] sm:$0xff]
  %v2132 = vpack.c.bf16 %v2127, %v2127
  %2133 = vmatprep.subr.bf16.mxu0 %v1961
  %2134 = vmatpush1.bf16.msra.mxu0 %v1960
  %2135 = vmatprep.subr.bf16.mxu0 %v1965
  %2136 = vmatpush1.bf16.msra.mxu0 %v1964
  %2137 = vmatprep.subr.bf16.mxu0 %v1969
  %2138 = vmatpush1.bf16.msra.mxu0 %v1968
  %2139 = vmatprep.subr.bf16.mxu0 %v1973
  %2140 = vmatpush1.bf16.msra.mxu0 %v1972
  %2141 = vmatprep.subr.bf16.mxu0 %v1977
  %2142 = vmatpush1.bf16.msra.mxu0 %v1976
  %2143 = vmatprep.subr.bf16.mxu0 %v1981
  %2144 = vmatpush1.bf16.msra.mxu0 %v1980
  %2145 = vmatprep.subr.bf16.mxu0 %v1985
  %2146 = vmatpush1.bf16.msra.mxu0 %v1984
  %2147 = vmatprep.subr.bf16.mxu0 %v1989
  %2148 = vmatpush1.bf16.msra.mxu0 %v1988
  %2149 = vmatprep.subr.bf16.mxu0 0
  %2150 = vmatpush1.bf16.msra.mxu0 0
  %2151 = vmatprep.subr.bf16.mxu0 0
  %2152 = vmatpush1.bf16.msra.mxu0 0
  %2153 = vmatprep.subr.bf16.mxu0 0
  %2154 = vmatpush1.bf16.msra.mxu0 0
  %2155 = vmatprep.subr.bf16.mxu0 0
  %2156 = vmatpush1.bf16.msra.mxu0 0
  %2157 = vmatprep.subr.bf16.mxu0 0
  %2158 = vmatpush1.bf16.msra.mxu0 0
  %2159 = vmatprep.subr.bf16.mxu0 0
  %2160 = vmatpush1.bf16.msra.mxu0 0
  %2161 = vmatprep.subr.bf16.mxu0 0
  %2162 = vmatpush1.bf16.msra.mxu0 0
  %2163 = vmatprep.subr.bf16.mxu0 0
  %2164 = vmatpush1.bf16.msra.mxu0 0
  %2165 = vmatprep.mubr.bf16.mxu0 0
  %2166 = vmatmul.mubr.bf16.gmra.mrb[0].mxu0 %v2132
  %v2167 = vpop.f32.mrb[0].mxu0
  %v2168 = vadd.f32 0.0, %v2167
  %v2169 = vpop.f32.mrb[0].mxu0
  %v2170 = vadd.f32 0.0, %v2169
  %v2171 = vpop.f32.mrb[0].mxu0
  %v2172 = vpop.f32.mrb[0].mxu0
  %2173 = vdwg.mxu0
  %2174 = vmatprep.subr.bf16.mxu0 %v1963
  %2175 = vmatpush1.bf16.msra.mxu0 %v1962
  %2176 = vmatprep.subr.bf16.mxu0 %v1967
  %2177 = vmatpush1.bf16.msra.mxu0 %v1966
  %2178 = vmatprep.subr.bf16.mxu0 %v1971
  %2179 = vmatpush1.bf16.msra.mxu0 %v1970
  %2180 = vmatprep.subr.bf16.mxu0 %v1975
  %2181 = vmatpush1.bf16.msra.mxu0 %v1974
  %2182 = vmatprep.subr.bf16.mxu0 %v1979
  %2183 = vmatpush1.bf16.msra.mxu0 %v1978
  %2184 = vmatprep.subr.bf16.mxu0 %v1983
  %2185 = vmatpush1.bf16.msra.mxu0 %v1982
  %2186 = vmatprep.subr.bf16.mxu0 %v1987
  %2187 = vmatpush1.bf16.msra.mxu0 %v1986
  %2188 = vmatprep.subr.bf16.mxu0 %v1991
  %2189 = vmatpush1.bf16.msra.mxu0 %v1990
  %2190 = vmatprep.subr.bf16.mxu0 0
  %2191 = vmatpush1.bf16.msra.mxu0 0
  %2192 = vmatprep.subr.bf16.mxu0 0
  %2193 = vmatpush1.bf16.msra.mxu0 0
  %2194 = vmatprep.subr.bf16.mxu0 0
  %2195 = vmatpush1.bf16.msra.mxu0 0
  %2196 = vmatprep.subr.bf16.mxu0 0
  %2197 = vmatpush1.bf16.msra.mxu0 0
  %2198 = vmatprep.subr.bf16.mxu0 0
  %2199 = vmatpush1.bf16.msra.mxu0 0
  %2200 = vmatprep.subr.bf16.mxu0 0
  %2201 = vmatpush1.bf16.msra.mxu0 0
  %2202 = vmatprep.subr.bf16.mxu0 0
  %2203 = vmatpush1.bf16.msra.mxu0 0
  %2204 = vmatprep.subr.bf16.mxu0 0
  %2205 = vmatpush1.bf16.msra.mxu0 0
  %2206 = vmatprep.mubr.bf16.mxu0 0
  %2207 = vmatmul.mubr.bf16.gmra.mrb[0].mxu0 %v2132
  %v2208 = vpop.f32.mrb[0].mxu0
  %v2209 = vadd.f32 0.0, %v2208
  %v2210 = vpop.f32.mrb[0].mxu0
  %v2211 = vadd.f32 0.0, %v2210
  %v2212 = vpop.f32.mrb[0].mxu0
  %v2213 = vpop.f32.mrb[0].mxu0
  %2214 = vdwg.mxu0
  %v2215 = vadd.f32 %v2128, %v2168
  %v2216 = vadd.f32 %v2129, %v2170
  %v2217 = vadd.f32 %v2130, %v2209
  %v2218 = vadd.f32 %v2131, %v2211
  %v2219 = vmul.f32 %v2215, 0.5
  %v2220 = vtanh.pop %v2219
  %v2221 = vmul.f32 %v2220, 0.5
  %v2222 = vadd.f32 %v2221, 0.5
  %v2223 = vmul.f32 %v2216, 0.5
  %v2224 = vtanh.pop %v2223
  %v2225 = vmul.f32 %v2224, 0.5
  %v2226 = vadd.f32 %v2225, 0.5
  %v2227 = vtanh.pop %v2217
  %v2228 = vmul.f32 %v2218, 0.5
  %v2229 = vtanh.pop %v2228
  %v2230 = vmul.f32 %v2229, 0.5
  %v2231 = vadd.f32 %v2230, 0.5
  %v2232 = vmul.f32 %v2226, %v2125
  %v2233 = vmul.f32 %v2222, %v2227
  %v2234 = vadd.f32 %v2232, %v2233
  %v2235 = vtanh.pop %v2234
  %v2236 = vmul.f32 %v2231, %v2235
  %v2237 = vld [vmem:[%s742] sm:$0xff]
  %v2238 = vld [vmem:[%s742 + $0x8] sm:$0xff]
  %v2239 = vld [vmem:[%s742 + $0x10] sm:$0xff]
  %v2240 = vld [vmem:[%s742 + $0x18] sm:$0xff]
  %v2241 = vpack.c.bf16 %v2236, %v2236
  %2242 = vmatprep.subr.bf16.mxu0 %v1961
  %2243 = vmatpush1.bf16.msra.mxu0 %v1960
  %2244 = vmatprep.subr.bf16.mxu0 %v1965
  %2245 = vmatpush1.bf16.msra.mxu0 %v1964
  %2246 = vmatprep.subr.bf16.mxu0 %v1969
  %2247 = vmatpush1.bf16.msra.mxu0 %v1968
  %2248 = vmatprep.subr.bf16.mxu0 %v1973
  %2249 = vmatpush1.bf16.msra.mxu0 %v1972
  %2250 = vmatprep.subr.bf16.mxu0 %v1977
  %2251 = vmatpush1.bf16.msra.mxu0 %v1976
  %2252 = vmatprep.subr.bf16.mxu0 %v1981
  %2253 = vmatpush1.bf16.msra.mxu0 %v1980
  %2254 = vmatprep.subr.bf16.mxu0 %v1985
  %2255 = vmatpush1.bf16.msra.mxu0 %v1984
  %2256 = vmatprep.subr.bf16.mxu0 %v1989
  %2257 = vmatpush1.bf16.msra.mxu0 %v1988
  %2258 = vmatprep.subr.bf16.mxu0 0
  %2259 = vmatpush1.bf16.msra.mxu0 0
  %2260 = vmatprep.subr.bf16.mxu0 0
  %2261 = vmatpush1.bf16.msra.mxu0 0
  %2262 = vmatprep.subr.bf16.mxu0 0
  %2263 = vmatpush1.bf16.msra.mxu0 0
  %2264 = vmatprep.subr.bf16.mxu0 0
  %2265 = vmatpush1.bf16.msra.mxu0 0
  %2266 = vmatprep.subr.bf16.mxu0 0
  %2267 = vmatpush1.bf16.msra.mxu0 0
  %2268 = vmatprep.subr.bf16.mxu0 0
  %2269 = vmatpush1.bf16.msra.mxu0 0
  %2270 = vmatprep.subr.bf16.mxu0 0
  %2271 = vmatpush1.bf16.msra.mxu0 0
  %2272 = vmatprep.subr.bf16.mxu0 0
  %2273 = vmatpush1.bf16.msra.mxu0 0
  %2274 = vmatprep.mubr.bf16.mxu0 0
  %2275 = vmatmul.mubr.bf16.gmra.mrb[0].mxu0 %v2241
  %v2276 = vpop.f32.mrb[0].mxu0
  %v2277 = vadd.f32 0.0, %v2276
  %v2278 = vpop.f32.mrb[0].mxu0
  %v2279 = vadd.f32 0.0, %v2278
  %v2280 = vpop.f32.mrb[0].mxu0
  %v2281 = vpop.f32.mrb[0].mxu0
  %2282 = vdwg.mxu0
  %2283 = vmatprep.subr.bf16.mxu0 %v1963
  %2284 = vmatpush1.bf16.msra.mxu0 %v1962
  %2285 = vmatprep.subr.bf16.mxu0 %v1967
  %2286 = vmatpush1.bf16.msra.mxu0 %v1966
  %2287 = vmatprep.subr.bf16.mxu0 %v1971
  %2288 = vmatpush1.bf16.msra.mxu0 %v1970
  %2289 = vmatprep.subr.bf16.mxu0 %v1975
  %2290 = vmatpush1.bf16.msra.mxu0 %v1974
  %2291 = vmatprep.subr.bf16.mxu0 %v1979
  %2292 = vmatpush1.bf16.msra.mxu0 %v1978
  %2293 = vmatprep.subr.bf16.mxu0 %v1983
  %2294 = vmatpush1.bf16.msra.mxu0 %v1982
  %2295 = vmatprep.subr.bf16.mxu0 %v1987
  %2296 = vmatpush1.bf16.msra.mxu0 %v1986
  %2297 = vmatprep.subr.bf16.mxu0 %v1991
  %2298 = vmatpush1.bf16.msra.mxu0 %v1990
  %2299 = vmatprep.subr.bf16.mxu0 0
  %2300 = vmatpush1.bf16.msra.mxu0 0
  %2301 = vmatprep.subr.bf16.mxu0 0
  %2302 = vmatpush1.bf16.msra.mxu0 0
  %2303 = vmatprep.subr.bf16.mxu0 0
  %2304 = vmatpush1.bf16.msra.mxu0 0
  %2305 = vmatprep.subr.bf16.mxu0 0
  %2306 = vmatpush1.bf16.msra.mxu0 0
  %2307 = vmatprep.subr.bf16.mxu0 0
  %2308 = vmatpush1.bf16.msra.mxu0 0
  %2309 = vmatprep.subr.bf16.mxu0 0
  %2310 = vmatpush1.bf16.msra.mxu0 0
  %2311 = vmatprep.subr.bf16.mxu0 0
  %2312 = vmatpush1.bf16.msra.mxu0 0
  %2313 = vmatprep.subr.bf16.mxu0 0
  %2314 = vmatpush1.bf16.msra.mxu0 0
  %2315 = vmatprep.mubr.bf16.mxu0 0
  %2316 = vmatmul.mubr.bf16.gmra.mrb[0].mxu0 %v2241
  %v2317 = vpop.f32.mrb[0].mxu0
  %v2318 = vadd.f32 0.0, %v2317
  %v2319 = vpop.f32.mrb[0].mxu0
  %v2320 = vadd.f32 0.0, %v2319
  %v2321 = vpop.f32.mrb[0].mxu0
  %v2322 = vpop.f32.mrb[0].mxu0
  %2323 = vdwg.mxu0
  %v2324 = vadd.f32 %v2237, %v2277
  %v2325 = vadd.f32 %v2238, %v2279
  %v2326 = vadd.f32 %v2239, %v2318
  %v2327 = vadd.f32 %v2240, %v2320
  %v2328 = vmul.f32 %v2324, 0.5
  %v2329 = vtanh.pop %v2328
  %v2330 = vmul.f32 %v2329, 0.5
  %v2331 = vadd.f32 %v2330, 0.5
  %v2332 = vmul.f32 %v2325, 0.5
  %v2333 = vtanh.pop %v2332
  %v2334 = vmul.f32 %v2333, 0.5
  %v2335 = vadd.f32 %v2334, 0.5
  %v2336 = vtanh.pop %v2326
  %v2337 = vmul.f32 %v2327, 0.5
  %v2338 = vtanh.pop %v2337
  %v2339 = vmul.f32 %v2338, 0.5
  %v2340 = vadd.f32 %v2339, 0.5
  %v2341 = vmul.f32 %v2335, %v2234
  %v2342 = vmul.f32 %v2331, %v2336
  %v2343 = vadd.f32 %v2341, %v2342
  %v2344 = vtanh.pop %v2343
  %v2345 = vmul.f32 %v2340, %v2344
  %v2346 = vld [vmem:[%s856] sm:$0xff]
  %v2347 = vld [vmem:[%s856 + $0x8] sm:$0xff]
  %v2348 = vld [vmem:[%s856 + $0x10] sm:$0xff]
  %v2349 = vld [vmem:[%s856 + $0x18] sm:$0xff]
  %v2350 = vpack.c.bf16 %v2345, %v2345
  %2351 = vmatprep.subr.bf16.mxu0 %v1961
  %2352 = vmatpush1.bf16.msra.mxu0 %v1960
  %2353 = vmatprep.subr.bf16.mxu0 %v1965
  %2354 = vmatpush1.bf16.msra.mxu0 %v1964
  %2355 = vmatprep.subr.bf16.mxu0 %v1969
  %2356 = vmatpush1.bf16.msra.mxu0 %v1968
  %2357 = vmatprep.subr.bf16.mxu0 %v1973
  %2358 = vmatpush1.bf16.msra.mxu0 %v1972
  %2359 = vmatprep.subr.bf16.mxu0 %v1977
  %2360 = vmatpush1.bf16.msra.mxu0 %v1976
  %2361 = vmatprep.subr.bf16.mxu0 %v1981
  %2362 = vmatpush1.bf16.msra.mxu0 %v1980
  %2363 = vmatprep.subr.bf16.mxu0 %v1985
  %2364 = vmatpush1.bf16.msra.mxu0 %v1984
  %2365 = vmatprep.subr.bf16.mxu0 %v1989
  %2366 = vmatpush1.bf16.msra.mxu0 %v1988
  %2367 = vmatprep.subr.bf16.mxu0 0
  %2368 = vmatpush1.bf16.msra.mxu0 0
  %2369 = vmatprep.subr.bf16.mxu0 0
  %2370 = vmatpush1.bf16.msra.mxu0 0
  %2371 = vmatprep.subr.bf16.mxu0 0
  %2372 = vmatpush1.bf16.msra.mxu0 0
  %2373 = vmatprep.subr.bf16.mxu0 0
  %2374 = vmatpush1.bf16.msra.mxu0 0
  %2375 = vmatprep.subr.bf16.mxu0 0
  %2376 = vmatpush1.bf16.msra.mxu0 0
  %2377 = vmatprep.subr.bf16.mxu0 0
  %2378 = vmatpush1.bf16.msra.mxu0 0
  %2379 = vmatprep.subr.bf16.mxu0 0
  %2380 = vmatpush1.bf16.msra.mxu0 0
  %2381 = vmatprep.subr.bf16.mxu0 0
  %2382 = vmatpush1.bf16.msra.mxu0 0
  %2383 = vmatprep.mubr.bf16.mxu0 0
  %2384 = vmatmul.mubr.bf16.gmra.mrb[0].mxu0 %v2350
  %v2385 = vpop.f32.mrb[0].mxu0
  %v2386 = vadd.f32 0.0, %v2385
  %v2387 = vpop.f32.mrb[0].mxu0
  %v2388 = vadd.f32 0.0, %v2387
  %v2389 = vpop.f32.mrb[0].mxu0
  %v2390 = vpop.f32.mrb[0].mxu0
  %2391 = vdwg.mxu0
  %2392 = vmatprep.subr.bf16.mxu0 %v1963
  %2393 = vmatpush1.bf16.msra.mxu0 %v1962
  %2394 = vmatprep.subr.bf16.mxu0 %v1967
  %2395 = vmatpush1.bf16.msra.mxu0 %v1966
  %2396 = vmatprep.subr.bf16.mxu0 %v1971
  %2397 = vmatpush1.bf16.msra.mxu0 %v1970
  %2398 = vmatprep.subr.bf16.mxu0 %v1975
  %2399 = vmatpush1.bf16.msra.mxu0 %v1974
  %2400 = vmatprep.subr.bf16.mxu0 %v1979
  %2401 = vmatpush1.bf16.msra.mxu0 %v1978
  %2402 = vmatprep.subr.bf16.mxu0 %v1983
  %2403 = vmatpush1.bf16.msra.mxu0 %v1982
  %2404 = vmatprep.subr.bf16.mxu0 %v1987
  %2405 = vmatpush1.bf16.msra.mxu0 %v1986
  %2406 = vmatprep.subr.bf16.mxu0 %v1991
  %2407 = vmatpush1.bf16.msra.mxu0 %v1990
  %2408 = vmatprep.subr.bf16.mxu0 0
  %2409 = vmatpush1.bf16.msra.mxu0 0
  %2410 = vmatprep.subr.bf16.mxu0 0
  %2411 = vmatpush1.bf16.msra.mxu0 0
  %2412 = vmatprep.subr.bf16.mxu0 0
  %2413 = vmatpush1.bf16.msra.mxu0 0
  %2414 = vmatprep.subr.bf16.mxu0 0
  %2415 = vmatpush1.bf16.msra.mxu0 0
  %2416 = vmatprep.subr.bf16.mxu0 0
  %2417 = vmatpush1.bf16.msra.mxu0 0
  %2418 = vmatprep.subr.bf16.mxu0 0
  %2419 = vmatpush1.bf16.msra.mxu0 0
  %2420 = vmatprep.subr.bf16.mxu0 0
  %2421 = vmatpush1.bf16.msra.mxu0 0
  %2422 = vmatprep.subr.bf16.mxu0 0
  %2423 = vmatpush1.bf16.msra.mxu0 0
  %2424 = vmatprep.mubr.bf16.mxu0 0
  %2425 = vmatmul.mubr.bf16.gmra.mrb[0].mxu0 %v2350
  %v2426 = vpop.f32.mrb[0].mxu0
  %v2427 = vadd.f32 0.0, %v2426
  %v2428 = vpop.f32.mrb[0].mxu0
  %v2429 = vadd.f32 0.0, %v2428
  %v2430 = vpop.f32.mrb[0].mxu0
  %v2431 = vpop.f32.mrb[0].mxu0
  %2432 = vdwg.mxu0
  %v2433 = vadd.f32 %v2346, %v2386
  %v2434 = vadd.f32 %v2347, %v2388
  %v2435 = vadd.f32 %v2348, %v2427
  %v2436 = vadd.f32 %v2349, %v2429
  %v2437 = vmul.f32 %v2433, 0.5
  %v2438 = vtanh.pop %v2437
  %v2439 = vmul.f32 %v2438, 0.5
  %v2440 = vadd.f32 %v2439, 0.5
  %v2441 = vmul.f32 %v2434, 0.5
  %v2442 = vtanh.pop %v2441
  %v2443 = vmul.f32 %v2442, 0.5
  %v2444 = vadd.f32 %v2443, 0.5
  %v2445 = vtanh.pop %v2435
  %v2446 = vmul.f32 %v2436, 0.5
  %v2447 = vtanh.pop %v2446
  %v2448 = vmul.f32 %v2447, 0.5
  %v2449 = vadd.f32 %v2448, 0.5
  %v2450 = vmul.f32 %v2444, %v2343
  %v2451 = vmul.f32 %v2440, %v2445
  %v2452 = vadd.f32 %v2450, %v2451
  %v2453 = vtanh.pop %v2452
  %v2454 = vmul.f32 %v2449, %v2453
  %v2455 = vld [vmem:[%s970] sm:$0xff]
  %v2456 = vld [vmem:[%s970 + $0x8] sm:$0xff]
  %v2457 = vld [vmem:[%s970 + $0x10] sm:$0xff]
  %v2458 = vld [vmem:[%s970 + $0x18] sm:$0xff]
  %v2459 = vpack.c.bf16 %v2454, %v2454
  %2460 = vmatprep.subr.bf16.mxu0 %v1961
  %2461 = vmatpush1.bf16.msra.mxu0 %v1960
  %2462 = vmatprep.subr.bf16.mxu0 %v1965
  %2463 = vmatpush1.bf16.msra.mxu0 %v1964
  %2464 = vmatprep.subr.bf16.mxu0 %v1969
  %2465 = vmatpush1.bf16.msra.mxu0 %v1968
  %2466 = vmatprep.subr.bf16.mxu0 %v1973
  %2467 = vmatpush1.bf16.msra.mxu0 %v1972
  %2468 = vmatprep.subr.bf16.mxu0 %v1977
  %2469 = vmatpush1.bf16.msra.mxu0 %v1976
  %2470 = vmatprep.subr.bf16.mxu0 %v1981
  %2471 = vmatpush1.bf16.msra.mxu0 %v1980
  %2472 = vmatprep.subr.bf16.mxu0 %v1985
  %2473 = vmatpush1.bf16.msra.mxu0 %v1984
  %2474 = vmatprep.subr.bf16.mxu0 %v1989
  %2475 = vmatpush1.bf16.msra.mxu0 %v1988
  %2476 = vmatprep.subr.bf16.mxu0 0
  %2477 = vmatpush1.bf16.msra.mxu0 0
  %2478 = vmatprep.subr.bf16.mxu0 0
  %2479 = vmatpush1.bf16.msra.mxu0 0
  %2480 = vmatprep.subr.bf16.mxu0 0
  %2481 = vmatpush1.bf16.msra.mxu0 0
  %2482 = vmatprep.subr.bf16.mxu0 0
  %2483 = vmatpush1.bf16.msra.mxu0 0
  %2484 = vmatprep.subr.bf16.mxu0 0
  %2485 = vmatpush1.bf16.msra.mxu0 0
  %2486 = vmatprep.subr.bf16.mxu0 0
  %2487 = vmatpush1.bf16.msra.mxu0 0
  %2488 = vmatprep.subr.bf16.mxu0 0
  %2489 = vmatpush1.bf16.msra.mxu0 0
  %2490 = vmatprep.subr.bf16.mxu0 0
  %2491 = vmatpush1.bf16.msra.mxu0 0
  %2492 = vmatprep.mubr.bf16.mxu0 0
  %2493 = vmatmul.mubr.bf16.gmra.mrb[0].mxu0 %v2459
  %v2494 = vpop.f32.mrb[0].mxu0
  %v2495 = vadd.f32 0.0, %v2494
  %v2496 = vpop.f32.mrb[0].mxu0
  %v2497 = vadd.f32 0.0, %v2496
  %v2498 = vpop.f32.mrb[0].mxu0
  %v2499 = vpop.f32.mrb[0].mxu0
  %2500 = vdwg.mxu0
  %2501 = vmatprep.subr.bf16.mxu0 %v1963
  %2502 = vmatpush1.bf16.msra.mxu0 %v1962
  %2503 = vmatprep.subr.bf16.mxu0 %v1967
  %2504 = vmatpush1.bf16.msra.mxu0 %v1966
  %2505 = vmatprep.subr.bf16.mxu0 %v1971
  %2506 = vmatpush1.bf16.msra.mxu0 %v1970
  %2507 = vmatprep.subr.bf16.mxu0 %v1975
  %2508 = vmatpush1.bf16.msra.mxu0 %v1974
  %2509 = vmatprep.subr.bf16.mxu0 %v1979
  %2510 = vmatpush1.bf16.msra.mxu0 %v1978
  %2511 = vmatprep.subr.bf16.mxu0 %v1983
  %2512 = vmatpush1.bf16.msra.mxu0 %v1982
  %2513 = vmatprep.subr.bf16.mxu0 %v1987
  %2514 = vmatpush1.bf16.msra.mxu0 %v1986
  %2515 = vmatprep.subr.bf16.mxu0 %v1991
  %2516 = vmatpush1.bf16.msra.mxu0 %v1990
  %2517 = vmatprep.subr.bf16.mxu0 0
  %2518 = vmatpush1.bf16.msra.mxu0 0
  %2519 = vmatprep.subr.bf16.mxu0 0
  %2520 = vmatpush1.bf16.msra.mxu0 0
  %2521 = vmatprep.subr.bf16.mxu0 0
  %2522 = vmatpush1.bf16.msra.mxu0 0
  %2523 = vmatprep.subr.bf16.mxu0 0
  %2524 = vmatpush1.bf16.msra.mxu0 0
  %2525 = vmatprep.subr.bf16.mxu0 0
  %2526 = vmatpush1.bf16.msra.mxu0 0
  %2527 = vmatprep.subr.bf16.mxu0 0
  %2528 = vmatpush1.bf16.msra.mxu0 0
  %2529 = vmatprep.subr.bf16.mxu0 0
  %2530 = vmatpush1.bf16.msra.mxu0 0
  %2531 = vmatprep.subr.bf16.mxu0 0
  %2532 = vmatpush1.bf16.msra.mxu0 0
  %2533 = vmatprep.mubr.bf16.mxu0 0
  %2534 = vmatmul.mubr.bf16.gmra.mrb[0].mxu0 %v2459
  %v2535 = vpop.f32.mrb[0].mxu0
  %v2536 = vadd.f32 0.0, %v2535
  %v2537 = vpop.f32.mrb[0].mxu0
  %v2538 = vadd.f32 0.0, %v2537
  %v2539 = vpop.f32.mrb[0].mxu0
  %v2540 = vpop.f32.mrb[0].mxu0
  %2541 = vdwg.mxu0
  %v2542 = vadd.f32 %v2455, %v2495
  %v2543 = vadd.f32 %v2456, %v2497
  %v2544 = vadd.f32 %v2457, %v2536
  %v2545 = vadd.f32 %v2458, %v2538
  %v2546 = vmul.f32 %v2542, 0.5
  %v2547 = vtanh.pop %v2546
  %v2548 = vmul.f32 %v2547, 0.5
  %v2549 = vadd.f32 %v2548, 0.5
  %v2550 = vmul.f32 %v2543, 0.5
  %v2551 = vtanh.pop %v2550
  %v2552 = vmul.f32 %v2551, 0.5
  %v2553 = vadd.f32 %v2552, 0.5
  %v2554 = vtanh.pop %v2544
  %v2555 = vmul.f32 %v2545, 0.5
  %v2556 = vtanh.pop %v2555
  %v2557 = vmul.f32 %v2556, 0.5
  %v2558 = vadd.f32 %v2557, 0.5
  %v2559 = vmul.f32 %v2553, %v2452
  %v2560 = vmul.f32 %v2549, %v2554
  %v2561 = vadd.f32 %v2559, %v2560
  %v2562 = vtanh.pop %v2561
  %v2563 = vmul.f32 %v2558, %v2562
  %v2564 = vld [vmem:[%s1084] sm:$0xff]
  %v2565 = vld [vmem:[%s1084 + $0x8] sm:$0xff]
  %v2566 = vld [vmem:[%s1084 + $0x10] sm:$0xff]
  %v2567 = vld [vmem:[%s1084 + $0x18] sm:$0xff]
  %v2568 = vpack.c.bf16 %v2563, %v2563
  %2569 = vmatprep.subr.bf16.mxu0 %v1961
  %2570 = vmatpush1.bf16.msra.mxu0 %v1960
  %2571 = vmatprep.subr.bf16.mxu0 %v1965
  %2572 = vmatpush1.bf16.msra.mxu0 %v1964
  %2573 = vmatprep.subr.bf16.mxu0 %v1969
  %2574 = vmatpush1.bf16.msra.mxu0 %v1968
  %2575 = vmatprep.subr.bf16.mxu0 %v1973
  %2576 = vmatpush1.bf16.msra.mxu0 %v1972
  %2577 = vmatprep.subr.bf16.mxu0 %v1977
  %2578 = vmatpush1.bf16.msra.mxu0 %v1976
  %2579 = vmatprep.subr.bf16.mxu0 %v1981
  %2580 = vmatpush1.bf16.msra.mxu0 %v1980
  %2581 = vmatprep.subr.bf16.mxu0 %v1985
  %2582 = vmatpush1.bf16.msra.mxu0 %v1984
  %2583 = vmatprep.subr.bf16.mxu0 %v1989
  %2584 = vmatpush1.bf16.msra.mxu0 %v1988
  %2585 = vmatprep.subr.bf16.mxu0 0
  %2586 = vmatpush1.bf16.msra.mxu0 0
  %2587 = vmatprep.subr.bf16.mxu0 0
  %2588 = vmatpush1.bf16.msra.mxu0 0
  %2589 = vmatprep.subr.bf16.mxu0 0
  %2590 = vmatpush1.bf16.msra.mxu0 0
  %2591 = vmatprep.subr.bf16.mxu0 0
  %2592 = vmatpush1.bf16.msra.mxu0 0
  %2593 = vmatprep.subr.bf16.mxu0 0
  %2594 = vmatpush1.bf16.msra.mxu0 0
  %2595 = vmatprep.subr.bf16.mxu0 0
  %2596 = vmatpush1.bf16.msra.mxu0 0
  %2597 = vmatprep.subr.bf16.mxu0 0
  %2598 = vmatpush1.bf16.msra.mxu0 0
  %2599 = vmatprep.subr.bf16.mxu0 0
  %2600 = vmatpush1.bf16.msra.mxu0 0
  %2601 = vmatprep.mubr.bf16.mxu0 0
  %2602 = vmatmul.mubr.bf16.gmra.mrb[0].mxu0 %v2568
  %v2603 = vpop.f32.mrb[0].mxu0
  %v2604 = vadd.f32 0.0, %v2603
  %v2605 = vpop.f32.mrb[0].mxu0
  %v2606 = vadd.f32 0.0, %v2605
  %v2607 = vpop.f32.mrb[0].mxu0
  %v2608 = vpop.f32.mrb[0].mxu0
  %2609 = vdwg.mxu0
  %2610 = vmatprep.subr.bf16.mxu0 %v1963
  %2611 = vmatpush1.bf16.msra.mxu0 %v1962
  %2612 = vmatprep.subr.bf16.mxu0 %v1967
  %2613 = vmatpush1.bf16.msra.mxu0 %v1966
  %2614 = vmatprep.subr.bf16.mxu0 %v1971
  %2615 = vmatpush1.bf16.msra.mxu0 %v1970
  %2616 = vmatprep.subr.bf16.mxu0 %v1975
  %2617 = vmatpush1.bf16.msra.mxu0 %v1974
  %2618 = vmatprep.subr.bf16.mxu0 %v1979
  %2619 = vmatpush1.bf16.msra.mxu0 %v1978
  %2620 = vmatprep.subr.bf16.mxu0 %v1983
  %2621 = vmatpush1.bf16.msra.mxu0 %v1982
  %2622 = vmatprep.subr.bf16.mxu0 %v1987
  %2623 = vmatpush1.bf16.msra.mxu0 %v1986
  %2624 = vmatprep.subr.bf16.mxu0 %v1991
  %2625 = vmatpush1.bf16.msra.mxu0 %v1990
  %2626 = vmatprep.subr.bf16.mxu0 0
  %2627 = vmatpush1.bf16.msra.mxu0 0
  %2628 = vmatprep.subr.bf16.mxu0 0
  %2629 = vmatpush1.bf16.msra.mxu0 0
  %2630 = vmatprep.subr.bf16.mxu0 0
  %2631 = vmatpush1.bf16.msra.mxu0 0
  %2632 = vmatprep.subr.bf16.mxu0 0
  %2633 = vmatpush1.bf16.msra.mxu0 0
  %2634 = vmatprep.subr.bf16.mxu0 0
  %2635 = vmatpush1.bf16.msra.mxu0 0
  %2636 = vmatprep.subr.bf16.mxu0 0
  %2637 = vmatpush1.bf16.msra.mxu0 0
  %2638 = vmatprep.subr.bf16.mxu0 0
  %2639 = vmatpush1.bf16.msra.mxu0 0
  %2640 = vmatprep.subr.bf16.mxu0 0
  %2641 = vmatpush1.bf16.msra.mxu0 0
  %2642 = vmatprep.mubr.bf16.mxu0 0
  %2643 = vmatmul.mubr.bf16.gmra.mrb[0].mxu0 %v2568
  %v2644 = vpop.f32.mrb[0].mxu0
  %v2645 = vadd.f32 0.0, %v2644
  %v2646 = vpop.f32.mrb[0].mxu0
  %v2647 = vadd.f32 0.0, %v2646
  %v2648 = vpop.f32.mrb[0].mxu0
  %v2649 = vpop.f32.mrb[0].mxu0
  %2650 = vdwg.mxu0
  %v2651 = vadd.f32 %v2564, %v2604
  %v2652 = vadd.f32 %v2565, %v2606
  %v2653 = vadd.f32 %v2566, %v2645
  %v2654 = vadd.f32 %v2567, %v2647
  %v2655 = vmul.f32 %v2651, 0.5
  %v2656 = vtanh.pop %v2655
  %v2657 = vmul.f32 %v2656, 0.5
  %v2658 = vadd.f32 %v2657, 0.5
  %v2659 = vmul.f32 %v2652, 0.5
  %v2660 = vtanh.pop %v2659
  %v2661 = vmul.f32 %v2660, 0.5
  %v2662 = vadd.f32 %v2661, 0.5
  %v2663 = vtanh.pop %v2653
  %v2664 = vmul.f32 %v2654, 0.5
  %v2665 = vtanh.pop %v2664
  %v2666 = vmul.f32 %v2665, 0.5
  %v2667 = vadd.f32 %v2666, 0.5
  %v2668 = vmul.f32 %v2662, %v2561
  %v2669 = vmul.f32 %v2658, %v2663
  %v2670 = vadd.f32 %v2668, %v2669
  %v2671 = vtanh.pop %v2670
  %v2672 = vmul.f32 %v2667, %v2671
  %v2673 = vld [vmem:[%s1198] sm:$0xff]
  %v2674 = vld [vmem:[%s1198 + $0x8] sm:$0xff]
  %v2675 = vld [vmem:[%s1198 + $0x10] sm:$0xff]
  %v2676 = vld [vmem:[%s1198 + $0x18] sm:$0xff]
  %v2677 = vpack.c.bf16 %v2672, %v2672
  %2678 = vmatprep.subr.bf16.mxu0 %v1961
  %2679 = vmatpush1.bf16.msra.mxu0 %v1960
  %2680 = vmatprep.subr.bf16.mxu0 %v1965
  %2681 = vmatpush1.bf16.msra.mxu0 %v1964
  %2682 = vmatprep.subr.bf16.mxu0 %v1969
  %2683 = vmatpush1.bf16.msra.mxu0 %v1968
  %2684 = vmatprep.subr.bf16.mxu0 %v1973
  %2685 = vmatpush1.bf16.msra.mxu0 %v1972
  %2686 = vmatprep.subr.bf16.mxu0 %v1977
  %2687 = vmatpush1.bf16.msra.mxu0 %v1976
  %2688 = vmatprep.subr.bf16.mxu0 %v1981
  %2689 = vmatpush1.bf16.msra.mxu0 %v1980
  %2690 = vmatprep.subr.bf16.mxu0 %v1985
  %2691 = vmatpush1.bf16.msra.mxu0 %v1984
  %2692 = vmatprep.subr.bf16.mxu0 %v1989
  %2693 = vmatpush1.bf16.msra.mxu0 %v1988
  %2694 = vmatprep.subr.bf16.mxu0 0
  %2695 = vmatpush1.bf16.msra.mxu0 0
  %2696 = vmatprep.subr.bf16.mxu0 0
  %2697 = vmatpush1.bf16.msra.mxu0 0
  %2698 = vmatprep.subr.bf16.mxu0 0
  %2699 = vmatpush1.bf16.msra.mxu0 0
  %2700 = vmatprep.subr.bf16.mxu0 0
  %2701 = vmatpush1.bf16.msra.mxu0 0
  %2702 = vmatprep.subr.bf16.mxu0 0
  %2703 = vmatpush1.bf16.msra.mxu0 0
  %2704 = vmatprep.subr.bf16.mxu0 0
  %2705 = vmatpush1.bf16.msra.mxu0 0
  %2706 = vmatprep.subr.bf16.mxu0 0
  %2707 = vmatpush1.bf16.msra.mxu0 0
  %2708 = vmatprep.subr.bf16.mxu0 0
  %2709 = vmatpush1.bf16.msra.mxu0 0
  %2710 = vmatprep.mubr.bf16.mxu0 0
  %2711 = vmatmul.mubr.bf16.gmra.mrb[0].mxu0 %v2677
  %v2712 = vpop.f32.mrb[0].mxu0
  %v2713 = vadd.f32 0.0, %v2712
  %v2714 = vpop.f32.mrb[0].mxu0
  %v2715 = vadd.f32 0.0, %v2714
  %v2716 = vpop.f32.mrb[0].mxu0
  %v2717 = vpop.f32.mrb[0].mxu0
  %2718 = vdwg.mxu0
  %2719 = vmatprep.subr.bf16.mxu0 %v1963
  %2720 = vmatpush1.bf16.msra.mxu0 %v1962
  %2721 = vmatprep.subr.bf16.mxu0 %v1967
  %2722 = vmatpush1.bf16.msra.mxu0 %v1966
  %2723 = vmatprep.subr.bf16.mxu0 %v1971
  %2724 = vmatpush1.bf16.msra.mxu0 %v1970
  %2725 = vmatprep.subr.bf16.mxu0 %v1975
  %2726 = vmatpush1.bf16.msra.mxu0 %v1974
  %2727 = vmatprep.subr.bf16.mxu0 %v1979
  %2728 = vmatpush1.bf16.msra.mxu0 %v1978
  %2729 = vmatprep.subr.bf16.mxu0 %v1983
  %2730 = vmatpush1.bf16.msra.mxu0 %v1982
  %2731 = vmatprep.subr.bf16.mxu0 %v1987
  %2732 = vmatpush1.bf16.msra.mxu0 %v1986
  %2733 = vmatprep.subr.bf16.mxu0 %v1991
  %2734 = vmatpush1.bf16.msra.mxu0 %v1990
  %2735 = vmatprep.subr.bf16.mxu0 0
  %2736 = vmatpush1.bf16.msra.mxu0 0
  %2737 = vmatprep.subr.bf16.mxu0 0
  %2738 = vmatpush1.bf16.msra.mxu0 0
  %2739 = vmatprep.subr.bf16.mxu0 0
  %2740 = vmatpush1.bf16.msra.mxu0 0
  %2741 = vmatprep.subr.bf16.mxu0 0
  %2742 = vmatpush1.bf16.msra.mxu0 0
  %2743 = vmatprep.subr.bf16.mxu0 0
  %2744 = vmatpush1.bf16.msra.mxu0 0
  %2745 = vmatprep.subr.bf16.mxu0 0
  %2746 = vmatpush1.bf16.msra.mxu0 0
  %2747 = vmatprep.subr.bf16.mxu0 0
  %2748 = vmatpush1.bf16.msra.mxu0 0
  %2749 = vmatprep.subr.bf16.mxu0 0
  %2750 = vmatpush1.bf16.msra.mxu0 0
  %2751 = vmatprep.mubr.bf16.mxu0 0
  %2752 = vmatmul.mubr.bf16.gmra.mrb[0].mxu0 %v2677
  %v2753 = vpop.f32.mrb[0].mxu0
  %v2754 = vadd.f32 0.0, %v2753
  %v2755 = vpop.f32.mrb[0].mxu0
  %v2756 = vadd.f32 0.0, %v2755
  %v2757 = vpop.f32.mrb[0].mxu0
  %v2758 = vpop.f32.mrb[0].mxu0
  %2759 = vdwg.mxu0
  %v2760 = vadd.f32 %v2673, %v2713
  %v2761 = vadd.f32 %v2674, %v2715
  %v2762 = vadd.f32 %v2675, %v2754
  %v2763 = vadd.f32 %v2676, %v2756
  %v2764 = vmul.f32 %v2760, 0.5
  %v2765 = vtanh.pop %v2764
  %v2766 = vmul.f32 %v2765, 0.5
  %v2767 = vadd.f32 %v2766, 0.5
  %v2768 = vmul.f32 %v2761, 0.5
  %v2769 = vtanh.pop %v2768
  %v2770 = vmul.f32 %v2769, 0.5
  %v2771 = vadd.f32 %v2770, 0.5
  %v2772 = vtanh.pop %v2762
  %v2773 = vmul.f32 %v2763, 0.5
  %v2774 = vtanh.pop %v2773
  %v2775 = vmul.f32 %v2774, 0.5
  %v2776 = vadd.f32 %v2775, 0.5
  %v2777 = vmul.f32 %v2771, %v2670
  %v2778 = vmul.f32 %v2767, %v2772
  %v2779 = vadd.f32 %v2777, %v2778
  %v2780 = vtanh.pop %v2779
  %v2781 = vmul.f32 %v2776, %v2780
  %v2782 = vld [vmem:[%s1312] sm:$0xff]
  %v2783 = vld [vmem:[%s1312 + $0x8] sm:$0xff]
  %v2784 = vld [vmem:[%s1312 + $0x10] sm:$0xff]
  %v2785 = vld [vmem:[%s1312 + $0x18] sm:$0xff]
  %v2786 = vpack.c.bf16 %v2781, %v2781
  %2787 = vmatprep.subr.bf16.mxu0 %v1961
  %2788 = vmatpush1.bf16.msra.mxu0 %v1960
  %2789 = vmatprep.subr.bf16.mxu0 %v1965
  %2790 = vmatpush1.bf16.msra.mxu0 %v1964
  %2791 = vmatprep.subr.bf16.mxu0 %v1969
  %2792 = vmatpush1.bf16.msra.mxu0 %v1968
  %2793 = vmatprep.subr.bf16.mxu0 %v1973
  %2794 = vmatpush1.bf16.msra.mxu0 %v1972
  %2795 = vmatprep.subr.bf16.mxu0 %v1977
  %2796 = vmatpush1.bf16.msra.mxu0 %v1976
  %2797 = vmatprep.subr.bf16.mxu0 %v1981
  %2798 = vmatpush1.bf16.msra.mxu0 %v1980
  %2799 = vmatprep.subr.bf16.mxu0 %v1985
  %2800 = vmatpush1.bf16.msra.mxu0 %v1984
  %2801 = vmatprep.subr.bf16.mxu0 %v1989
  %2802 = vmatpush1.bf16.msra.mxu0 %v1988
  %2803 = vmatprep.subr.bf16.mxu0 0
  %2804 = vmatpush1.bf16.msra.mxu0 0
  %2805 = vmatprep.subr.bf16.mxu0 0
  %2806 = vmatpush1.bf16.msra.mxu0 0
  %2807 = vmatprep.subr.bf16.mxu0 0
  %2808 = vmatpush1.bf16.msra.mxu0 0
  %2809 = vmatprep.subr.bf16.mxu0 0
  %2810 = vmatpush1.bf16.msra.mxu0 0
  %2811 = vmatprep.subr.bf16.mxu0 0
  %2812 = vmatpush1.bf16.msra.mxu0 0
  %2813 = vmatprep.subr.bf16.mxu0 0
  %2814 = vmatpush1.bf16.msra.mxu0 0
  %2815 = vmatprep.subr.bf16.mxu0 0
  %2816 = vmatpush1.bf16.msra.mxu0 0
  %2817 = vmatprep.subr.bf16.mxu0 0
  %2818 = vmatpush1.bf16.msra.mxu0 0
  %2819 = vmatprep.mubr.bf16.mxu0 0
  %2820 = vmatmul.mubr.bf16.gmra.mrb[0].mxu0 %v2786
  %v2821 = vpop.f32.mrb[0].mxu0
  %v2822 = vadd.f32 0.0, %v2821
  %v2823 = vpop.f32.mrb[0].mxu0
  %v2824 = vadd.f32 0.0, %v2823
  %v2825 = vpop.f32.mrb[0].mxu0
  %v2826 = vpop.f32.mrb[0].mxu0
  %2827 = vdwg.mxu0
  %2828 = vmatprep.subr.bf16.mxu0 %v1963
  %2829 = vmatpush1.bf16.msra.mxu0 %v1962
  %2830 = vmatprep.subr.bf16.mxu0 %v1967
  %2831 = vmatpush1.bf16.msra.mxu0 %v1966
  %2832 = vmatprep.subr.bf16.mxu0 %v1971
  %2833 = vmatpush1.bf16.msra.mxu0 %v1970
  %2834 = vmatprep.subr.bf16.mxu0 %v1975
  %2835 = vmatpush1.bf16.msra.mxu0 %v1974
  %2836 = vmatprep.subr.bf16.mxu0 %v1979
  %2837 = vmatpush1.bf16.msra.mxu0 %v1978
  %2838 = vmatprep.subr.bf16.mxu0 %v1983
  %2839 = vmatpush1.bf16.msra.mxu0 %v1982
  %2840 = vmatprep.subr.bf16.mxu0 %v1987
  %2841 = vmatpush1.bf16.msra.mxu0 %v1986
  %2842 = vmatprep.subr.bf16.mxu0 %v1991
  %2843 = vmatpush1.bf16.msra.mxu0 %v1990
  %2844 = vmatprep.subr.bf16.mxu0 0
  %2845 = vmatpush1.bf16.msra.mxu0 0
  %2846 = vmatprep.subr.bf16.mxu0 0
  %2847 = vmatpush1.bf16.msra.mxu0 0
  %2848 = vmatprep.subr.bf16.mxu0 0
  %2849 = vmatpush1.bf16.msra.mxu0 0
  %2850 = vmatprep.subr.bf16.mxu0 0
  %2851 = vmatpush1.bf16.msra.mxu0 0
  %2852 = vmatprep.subr.bf16.mxu0 0
  %2853 = vmatpush1.bf16.msra.mxu0 0
  %2854 = vmatprep.subr.bf16.mxu0 0
  %2855 = vmatpush1.bf16.msra.mxu0 0
  %2856 = vmatprep.subr.bf16.mxu0 0
  %2857 = vmatpush1.bf16.msra.mxu0 0
  %2858 = vmatprep.subr.bf16.mxu0 0
  %2859 = vmatpush1.bf16.msra.mxu0 0
  %2860 = vmatprep.mubr.bf16.mxu0 0
  %2861 = vmatmul.mubr.bf16.gmra.mrb[0].mxu0 %v2786
  %v2862 = vpop.f32.mrb[0].mxu0
  %v2863 = vadd.f32 0.0, %v2862
  %v2864 = vpop.f32.mrb[0].mxu0
  %v2865 = vadd.f32 0.0, %v2864
  %v2866 = vpop.f32.mrb[0].mxu0
  %v2867 = vpop.f32.mrb[0].mxu0
  %2868 = vdwg.mxu0
  %v2869 = vadd.f32 %v2782, %v2822
  %v2870 = vadd.f32 %v2783, %v2824
  %v2871 = vadd.f32 %v2784, %v2863
  %v2872 = vadd.f32 %v2785, %v2865
  %v2873 = vmul.f32 %v2869, 0.5
  %v2874 = vtanh.pop %v2873
  %v2875 = vmul.f32 %v2874, 0.5
  %v2876 = vadd.f32 %v2875, 0.5
  %v2877 = vmul.f32 %v2870, 0.5
  %v2878 = vtanh.pop %v2877
  %v2879 = vmul.f32 %v2878, 0.5
  %v2880 = vadd.f32 %v2879, 0.5
  %v2881 = vtanh.pop %v2871
  %v2882 = vmul.f32 %v2872, 0.5
  %v2883 = vtanh.pop %v2882
  %v2884 = vmul.f32 %v2883, 0.5
  %v2885 = vadd.f32 %v2884, 0.5
  %v2886 = vmul.f32 %v2880, %v2779
  %v2887 = vmul.f32 %v2876, %v2881
  %v2888 = vadd.f32 %v2886, %v2887
  %v2889 = vtanh.pop %v2888
  %v2890 = vmul.f32 %v2885, %v2889
  %v2891 = vpack.c.bf16 %v2890, %v2890
  %v2892 = vld [vmem:[%s7] sm:$0xf]
  %v2893 = vld [vmem:[%s7 + $0x4] sm:$0xf]
  %v2894 = vld [vmem:[%s7 + $0x8] sm:$0xf]
  %v2895 = vld [vmem:[%s7 + $0xc] sm:$0xf]
  %v2896 = vld [vmem:[%s7 + $0x10] sm:$0xf]
  %v2897 = vld [vmem:[%s7 + $0x14] sm:$0xf]
  %v2898 = vld [vmem:[%s7 + $0x18] sm:$0xf]
  %v2899 = vld [vmem:[%s7 + $0x1c] sm:$0xf]
  %v2900 = vld [vmem:[%s7 + $0x20] sm:$0xf]
  %v2901 = vld [vmem:[%s7 + $0x24] sm:$0xf]
  %v2902 = vld [vmem:[%s7 + $0x28] sm:$0xf]
  %v2903 = vld [vmem:[%s7 + $0x2c] sm:$0xf]
  %v2904 = vld [vmem:[%s7 + $0x30] sm:$0xf]
  %v2905 = vld [vmem:[%s7 + $0x34] sm:$0xf]
  %v2906 = vld [vmem:[%s7 + $0x38] sm:$0xf]
  %v2907 = vld [vmem:[%s7 + $0x3c] sm:$0xf]
  %v2908 = vld [vmem:[%s8] sm:$0x1]
  %v2910 = vlaneseq
  %v2911 = vshrl.u32 %v2910, 7
  %v2912 = vsub.s32 0, %v2911
  %v2913 = vrot.slane %v2908, %v2912
  %v2931 = vunpack.c.l.b16 %v2892
  %v2932 = vunpack.c.l.b16 %v2893
  %v2933 = vunpack.c.l.b16 %v2894
  %v2934 = vunpack.c.l.b16 %v2895
  %v2935 = vunpack.c.l.b16 %v2896
  %v2936 = vunpack.c.l.b16 %v2897
  %v2937 = vunpack.c.l.b16 %v2898
  %v2938 = vunpack.c.l.b16 %v2899
  %v2939 = vunpack.c.l.b16 %v2900
  %v2940 = vunpack.c.l.b16 %v2901
  %v2941 = vunpack.c.l.b16 %v2902
  %v2942 = vunpack.c.l.b16 %v2903
  %v2943 = vunpack.c.l.b16 %v2904
  %v2944 = vunpack.c.l.b16 %v2905
  %v2945 = vunpack.c.l.b16 %v2906
  %v2946 = vunpack.c.l.b16 %v2907
  %v2947 = vpack.c.b16 %v2932, %v2931
  %v2948 = vpack.c.b16 %v2934, %v2933
  %v2949 = vpack.c.b16 %v2936, %v2935
  %v2950 = vpack.c.b16 %v2938, %v2937
  %v2951 = vpack.c.b16 %v2940, %v2939
  %v2952 = vpack.c.b16 %v2942, %v2941
  %v2953 = vpack.c.b16 %v2944, %v2943
  %v2954 = vpack.c.b16 %v2946, %v2945
  %2963 = vmatprep.subr.bf16.mxu0 0
  %2964 = vmatpush1.bf16.msra.mxu0 %v2947
  %2965 = vmatprep.subr.bf16.mxu0 0
  %2966 = vmatpush1.bf16.msra.mxu0 %v2948
  %2967 = vmatprep.subr.bf16.mxu0 0
  %2968 = vmatpush1.bf16.msra.mxu0 %v2949
  %2969 = vmatprep.subr.bf16.mxu0 0
  %2970 = vmatpush1.bf16.msra.mxu0 %v2950
  %2971 = vmatprep.subr.bf16.mxu0 0
  %2972 = vmatpush1.bf16.msra.mxu0 %v2951
  %2973 = vmatprep.subr.bf16.mxu0 0
  %2974 = vmatpush1.bf16.msra.mxu0 %v2952
  %2975 = vmatprep.subr.bf16.mxu0 0
  %2976 = vmatpush1.bf16.msra.mxu0 %v2953
  %2977 = vmatprep.subr.bf16.mxu0 0
  %2978 = vmatpush1.bf16.msra.mxu0 %v2954
  %2979 = vmatprep.subr.bf16.mxu0 0
  %2980 = vmatpush1.bf16.msra.mxu0 0
  %2981 = vmatprep.subr.bf16.mxu0 0
  %2982 = vmatpush1.bf16.msra.mxu0 0
  %2983 = vmatprep.subr.bf16.mxu0 0
  %2984 = vmatpush1.bf16.msra.mxu0 0
  %2985 = vmatprep.subr.bf16.mxu0 0
  %2986 = vmatpush1.bf16.msra.mxu0 0
  %2987 = vmatprep.subr.bf16.mxu0 0
  %2988 = vmatpush1.bf16.msra.mxu0 0
  %2989 = vmatprep.subr.bf16.mxu0 0
  %2990 = vmatpush1.bf16.msra.mxu0 0
  %2991 = vmatprep.subr.bf16.mxu0 0
  %2992 = vmatpush1.bf16.msra.mxu0 0
  %2993 = vmatprep.subr.bf16.mxu0 0
  %2994 = vmatpush1.bf16.msra.mxu0 0
  %2995 = vmatprep.mubr.bf16.mxu0 0
  %2996 = vmatmul.mubr.bf16.gmra.mrb[0].mxu0 %v2891
  %v2997 = vpop.f32.mrb[0].mxu0
  %v2998 = vadd.f32 %v2913, %v2997
  %v2999 = vpop.f32.mrb[0].mxu0
  %v3000 = vpop.f32.mrb[0].mxu0
  %v3001 = vpop.f32.mrb[0].mxu0
  %3002 = vdwg.mxu0
  %3003 = vst [vmem:[%s9] sm:$0xff] %v2998
  // Predicated region
  $region38: #{lstm_model_forward.1} parent=0 // pred_check
    _
  $region39: #{lstm_model_forward.1} parent=0 // pred_check_branch
    %3005 = sbr.rel (0) target = $region41
  $region40: #{lstm_model_forward.1} parent=0 // pred_region
    _
  $region41: #{lstm_model_forward.1} parent=0 // pred_fallthru
    _
  // Predicated region
  $region42: #{lstm_model_forward.1} parent=0 // pred_check
    _
  $region43: #{lstm_model_forward.1} parent=0 // pred_check_branch
    %3007 = sbr.rel (0) target = $region45
  $region44: #{lstm_model_forward.1} parent=0 // pred_region
    _
  $region45: #{lstm_model_forward.1} parent=0 // pred_fallthru
    _

</llo_original>
